<compile_context>
chip_gen: v7x
topology: tpu7x:2x2x1
jax: 0.10.0
libtpu: 0.0.40
codegen_flags: <defaults>
</compile_context>

<pallas_src>
import functools

import jax
import jax.numpy as jnp
from jax.experimental import pallas as pl
from jax.experimental.pallas import tpu as pltpu

# ---------------- config (small, consistent with the module) ----------------
N = 16            # N_res
TF_DIM = 21
C_Z = 32          # pair embedding dim
C_M = 32          # sequence embedding dim
RELPOS_K = 4
NO_BINS = 2 * RELPOS_K + 1   # 9
I_Z = 64          # pair_rbf channel dim
C_S = 100         # gvp node_hidden_dim_scalar
V_DIM = 16        # gvp node_hidden_dim_vector


# ------------------------------ fused kernel ---------------------------------
def gvp_embedder_kernel(d_ref, rbf_ref, w_rel_ref, w_con_ref, b_pair_ref,
                        node_s_ref, w_post_ref, b_post_ref,
                        tf_m_ref, pair_ref, *, relpos_k, no_bins):
    # d_ref      : (N*N, 1)   flat residue-index difference ri[i] - ri[j]
    # rbf_ref    : (N*N, I_Z) flat pair_rbf
    # w_rel_ref  : (no_bins, C_Z)
    # w_con_ref  : (I_Z, C_Z)
    # b_pair_ref : (1, C_Z)   = b_relpos + b_contact (folded in wrapper)
    # node_s_ref : (N, C_S), w_post_ref: (C_S, C_M), b_post_ref: (1, C_M)
    # tf_m_ref   : (N, C_M),  pair_ref: (N*N, C_Z)

    # ---- pair path: contact linear on the MXU ----
    contact = jnp.dot(rbf_ref[...], w_con_ref[...],
                      preferred_element_type=jnp.float32)        # (N*N, C_Z)

    # ---- relpos: nearest-boundary bin + table combine on the VPU ----
    # bin = clip(round(d), -k, k) + k  (round handles fractional ri safely;
    # exactly one bin fires per row, matching one_hot(argmin|d - boundary|)).
    idx = jnp.clip(jnp.round(d_ref[...]),
                   -float(relpos_k), float(relpos_k)) + float(relpos_k)

    acc = contact + b_pair_ref[...]                              # (N*N, C_Z)
    for b in range(no_bins):                                     # 9 VPU terms
        mask = (idx == b).astype(jnp.float32)                    # (N*N, 1)
        acc = acc + mask * w_rel_ref[pl.ds(b, 1), :]             # (1, C_Z) row
    pair_ref[...] = acc

    # ---- sequence path: post_gvp linear ----
    # (node_v.mean() * 0 from the torch forward is identically zero -> dropped)
    tf_m_ref[...] = jnp.dot(node_s_ref[...], w_post_ref[...],
                            preferred_element_type=jnp.float32) + b_post_ref[...]


# -------------------------------- wrapper ------------------------------------
def gvp_embedder_forward(tf, ri, pair_rbf, node_s, node_v, params):
    """Pallas implementation of GVPEmbedder.forward (use_gvp=True), with the
    GVPEncoder outputs (node_s, node_v) supplied externally."""
    del tf       # only used for dtype in the torch module; everything is f32
    del node_v   # node_v.mean() * 0 == 0 (see NaN-propagation note above)

    n = ri.shape[0]
    ri_f = ri.astype(jnp.float32)

    # layout plumbing done by XLA outside the kernel (free):
    d_flat = (ri_f[:, None] - ri_f[None, :]).reshape(n * n, 1)
    rbf_flat = pair_rbf.astype(jnp.float32).reshape(n * n, I_Z)
    b_pair = params["b_relpos"] + params["b_contact"]            # (1, C_Z)

    flops = 2 * n * n * I_Z * C_Z + 2 * n * C_S * C_M + n * n * NO_BINS * 2
    bytes_accessed = 4 * (n * n * I_Z + n * n + NO_BINS * C_Z + I_Z * C_Z
                          + C_Z + n * C_S + C_S * C_M + C_M
                          + n * n * C_Z + n * C_M)

    vmem = pl.BlockSpec(memory_space=pltpu.MemorySpace.VMEM)     # whole array
    kernel = functools.partial(gvp_embedder_kernel,
                               relpos_k=RELPOS_K, no_bins=NO_BINS)

    tf_m, pair_flat = pl.pallas_call(
        kernel,
        out_shape=(jax.ShapeDtypeStruct((n, C_M), jnp.float32),
                   jax.ShapeDtypeStruct((n * n, C_Z), jnp.float32)),
        in_specs=[vmem] * 8,
        out_specs=(vmem, vmem),
        cost_estimate=pl.CostEstimate(flops=int(flops), transcendentals=0,
                                      bytes_accessed=int(bytes_accessed)),
    )(d_flat, rbf_flat,
      params["w_relpos"], params["w_contact"], b_pair,
      node_s, params["w_post"], params["b_post"])

    return tf_m, pair_flat.reshape(n, n, C_Z)


# ----------------------------- pure-JAX reference ----------------------------
def reference_forward(tf, ri, pair_rbf, node_s, node_v, params):
    del tf
    d = ri[:, None].astype(jnp.float32) - ri[None, :].astype(jnp.float32)
    boundaries = jnp.arange(-RELPOS_K, RELPOS_K + 1, dtype=jnp.float32)
    am = jnp.argmin(jnp.abs(d[..., None] - boundaries), axis=-1)
    oh = jax.nn.one_hot(am, NO_BINS, dtype=jnp.float32)
    relpos = oh @ params["w_relpos"] + params["b_relpos"][0]
    contact = pair_rbf @ params["w_contact"] + params["b_contact"][0]
    pair_emb = contact + relpos
    tf_m = node_s @ params["w_post"] + params["b_post"][0] + jnp.mean(node_v) * 0.0
    return tf_m, pair_emb


# ---------------------------------- main -------------------------------------
if __name__ == "__main__":
    key = jax.random.PRNGKey(0)
    ks = jax.random.split(key, 10)

    # deterministic synthetic parameters (Linear weights stored as [in, out])
    params = {
        "w_relpos": jax.random.normal(ks[0], (NO_BINS, C_Z), jnp.float32) * 0.1,
        "b_relpos": jax.random.normal(ks[1], (1, C_Z), jnp.float32) * 0.01,
        "w_contact": jax.random.normal(ks[2], (I_Z, C_Z), jnp.float32) * 0.1,
        "b_contact": jax.random.normal(ks[3], (1, C_Z), jnp.float32) * 0.01,
        "w_post": jax.random.normal(ks[4], (C_S, C_M), jnp.float32) * 0.1,
        "b_post": jax.random.normal(ks[5], (1, C_M), jnp.float32) * 0.01,
    }

    # deterministic synthetic inputs
    tf = jax.random.normal(ks[6], (N, TF_DIM), jnp.float32)
    ri = jnp.arange(N, dtype=jnp.float32)                          # residue_index
    pair_rbf = jax.random.normal(ks[7], (N, N, I_Z), jnp.float32)
    node_s = jax.random.normal(ks[8], (N, C_S), jnp.float32)       # GVPEncoder scalar out
    node_v = jax.random.normal(ks[9], (N, V_DIM, 3), jnp.float32)  # GVPEncoder vector out

    fwd = jax.jit(gvp_embedder_forward)
    tf_m, pair_emb = fwd(tf, ri, pair_rbf, node_s, node_v, params)
    tf_m = jax.block_until_ready(tf_m)
    pair_emb = jax.block_until_ready(pair_emb)

    tf_m_ref, pair_emb_ref = reference_forward(tf, ri, pair_rbf, node_s, node_v, params)

    assert tf_m.shape == (N, C_M) and pair_emb.shape == (N, N, C_Z)
    assert jnp.allclose(tf_m, tf_m_ref, atol=1e-4, rtol=1e-4)
    assert jnp.allclose(pair_emb, pair_emb_ref, atol=1e-4, rtol=1e-4)

    print("KERNEL_OK")
</pallas_src>

<mosaic_0001>
module attributes {stable_mosaic.version = 11 : i64} {
  func.func @gvp_embedder_kernel(%arg0: memref<256x1xf32, #tpu.memory_space<vmem>>, %arg1: memref<256x64xf32, #tpu.memory_space<vmem>>, %arg2: memref<9x32xf32, #tpu.memory_space<vmem>>, %arg3: memref<64x32xf32, #tpu.memory_space<vmem>>, %arg4: memref<1x32xf32, #tpu.memory_space<vmem>>, %arg5: memref<16x100xf32, #tpu.memory_space<vmem>>, %arg6: memref<100x32xf32, #tpu.memory_space<vmem>>, %arg7: memref<1x32xf32, #tpu.memory_space<vmem>>, %arg8: memref<16x32xf32, #tpu.memory_space<vmem>>, %arg9: memref<256x32xf32, #tpu.memory_space<vmem>>) attributes {dimension_semantics = [], scalar_prefetch = 0 : i64, scratch_operands = 0 : i64, tpu.core_type = #tpu.core_type<tc>} {
    %c0 = arith.constant 0 : index
    %c0_0 = arith.constant 0 : index
    %0 = vector.load %arg1[%c0, %c0_0] : memref<256x64xf32, #tpu.memory_space<vmem>>, vector<256x64xf32>
    %c0_1 = arith.constant 0 : index
    %c0_2 = arith.constant 0 : index
    %1 = vector.load %arg3[%c0_1, %c0_2] : memref<64x32xf32, #tpu.memory_space<vmem>>, vector<64x32xf32>
    %cst = arith.constant dense<0.000000e+00> : vector<256x32xf32>
    %2 = tpu.matmul %0, %1, %cst {dimension_numbers = #tpu.dot_dimension_numbers<[1], [0], [0], [1], [0, 0, 1, 1], [], []>} : vector<256x64xf32>, vector<64x32xf32>, vector<256x32xf32> -> vector<256x32xf32>
    %c0_3 = arith.constant 0 : index
    %c0_4 = arith.constant 0 : index
    %3 = vector.load %arg0[%c0_3, %c0_4] : memref<256x1xf32, #tpu.memory_space<vmem>>, vector<256x1xf32>
    %4 = math.roundeven %3 : vector<256x1xf32>
    %cst_5 = arith.constant -4.000000e+00 : f32
    %cst_6 = arith.constant 4.000000e+00 : f32
    %5 = vector.broadcast %cst_5 : f32 to vector<256x1xf32>
    %6 = arith.maximumf %5, %4 : vector<256x1xf32>
    %7 = vector.broadcast %cst_6 : f32 to vector<256x1xf32>
    %8 = arith.minimumf %7, %6 : vector<256x1xf32>
    %cst_7 = arith.constant 4.000000e+00 : f32
    %9 = vector.broadcast %cst_7 : f32 to vector<256x1xf32>
    %10 = arith.addf %8, %9 : vector<256x1xf32>
    %c0_8 = arith.constant 0 : index
    %c0_9 = arith.constant 0 : index
    %11 = vector.load %arg4[%c0_8, %c0_9] : memref<1x32xf32, #tpu.memory_space<vmem>>, vector<1x32xf32>
    %12 = vector.broadcast %11 : vector<1x32xf32> to vector<256x32xf32>
    %13 = arith.addf %2, %12 : vector<256x32xf32>
    %cst_10 = arith.constant 0.000000e+00 : f32
    %14 = vector.broadcast %cst_10 : f32 to vector<256x1xf32>
    %15 = arith.cmpf oeq, %10, %14 : vector<256x1xf32>
    %16 = arith.extui %15 : vector<256x1xi1> to vector<256x1xi32>
    %17 = arith.sitofp %16 : vector<256x1xi32> to vector<256x1xf32>
    %c0_11 = arith.constant 0 : index
    %c0_12 = arith.constant 0 : index
    %18 = vector.load %arg2[%c0_11, %c0_12] : memref<9x32xf32, #tpu.memory_space<vmem>>, vector<1x32xf32>
    %19 = vector.broadcast %17 : vector<256x1xf32> to vector<256x32xf32>
    %20 = vector.broadcast %18 : vector<1x32xf32> to vector<256x32xf32>
    %21 = arith.mulf %19, %20 : vector<256x32xf32>
    %22 = arith.addf %13, %21 : vector<256x32xf32>
    %cst_13 = arith.constant 1.000000e+00 : f32
    %23 = vector.broadcast %cst_13 : f32 to vector<256x1xf32>
    %24 = arith.cmpf oeq, %10, %23 : vector<256x1xf32>
    %25 = arith.extui %24 : vector<256x1xi1> to vector<256x1xi32>
    %26 = arith.sitofp %25 : vector<256x1xi32> to vector<256x1xf32>
    %c1 = arith.constant 1 : index
    %c0_14 = arith.constant 0 : index
    %27 = vector.load %arg2[%c1, %c0_14] : memref<9x32xf32, #tpu.memory_space<vmem>>, vector<1x32xf32>
    %28 = vector.broadcast %26 : vector<256x1xf32> to vector<256x32xf32>
    %29 = vector.broadcast %27 : vector<1x32xf32> to vector<256x32xf32>
    %30 = arith.mulf %28, %29 : vector<256x32xf32>
    %31 = arith.addf %22, %30 : vector<256x32xf32>
    %cst_15 = arith.constant 2.000000e+00 : f32
    %32 = vector.broadcast %cst_15 : f32 to vector<256x1xf32>
    %33 = arith.cmpf oeq, %10, %32 : vector<256x1xf32>
    %34 = arith.extui %33 : vector<256x1xi1> to vector<256x1xi32>
    %35 = arith.sitofp %34 : vector<256x1xi32> to vector<256x1xf32>
    %c2 = arith.constant 2 : index
    %c0_16 = arith.constant 0 : index
    %36 = vector.load %arg2[%c2, %c0_16] : memref<9x32xf32, #tpu.memory_space<vmem>>, vector<1x32xf32>
    %37 = vector.broadcast %35 : vector<256x1xf32> to vector<256x32xf32>
    %38 = vector.broadcast %36 : vector<1x32xf32> to vector<256x32xf32>
    %39 = arith.mulf %37, %38 : vector<256x32xf32>
    %40 = arith.addf %31, %39 : vector<256x32xf32>
    %cst_17 = arith.constant 3.000000e+00 : f32
    %41 = vector.broadcast %cst_17 : f32 to vector<256x1xf32>
    %42 = arith.cmpf oeq, %10, %41 : vector<256x1xf32>
    %43 = arith.extui %42 : vector<256x1xi1> to vector<256x1xi32>
    %44 = arith.sitofp %43 : vector<256x1xi32> to vector<256x1xf32>
    %c3 = arith.constant 3 : index
    %c0_18 = arith.constant 0 : index
    %45 = vector.load %arg2[%c3, %c0_18] : memref<9x32xf32, #tpu.memory_space<vmem>>, vector<1x32xf32>
    %46 = vector.broadcast %44 : vector<256x1xf32> to vector<256x32xf32>
    %47 = vector.broadcast %45 : vector<1x32xf32> to vector<256x32xf32>
    %48 = arith.mulf %46, %47 : vector<256x32xf32>
    %49 = arith.addf %40, %48 : vector<256x32xf32>
    %cst_19 = arith.constant 4.000000e+00 : f32
    %50 = vector.broadcast %cst_19 : f32 to vector<256x1xf32>
    %51 = arith.cmpf oeq, %10, %50 : vector<256x1xf32>
    %52 = arith.extui %51 : vector<256x1xi1> to vector<256x1xi32>
    %53 = arith.sitofp %52 : vector<256x1xi32> to vector<256x1xf32>
    %c4 = arith.constant 4 : index
    %c0_20 = arith.constant 0 : index
    %54 = vector.load %arg2[%c4, %c0_20] : memref<9x32xf32, #tpu.memory_space<vmem>>, vector<1x32xf32>
    %55 = vector.broadcast %53 : vector<256x1xf32> to vector<256x32xf32>
    %56 = vector.broadcast %54 : vector<1x32xf32> to vector<256x32xf32>
    %57 = arith.mulf %55, %56 : vector<256x32xf32>
    %58 = arith.addf %49, %57 : vector<256x32xf32>
    %cst_21 = arith.constant 5.000000e+00 : f32
    %59 = vector.broadcast %cst_21 : f32 to vector<256x1xf32>
    %60 = arith.cmpf oeq, %10, %59 : vector<256x1xf32>
    %61 = arith.extui %60 : vector<256x1xi1> to vector<256x1xi32>
    %62 = arith.sitofp %61 : vector<256x1xi32> to vector<256x1xf32>
    %c5 = arith.constant 5 : index
    %c0_22 = arith.constant 0 : index
    %63 = vector.load %arg2[%c5, %c0_22] : memref<9x32xf32, #tpu.memory_space<vmem>>, vector<1x32xf32>
    %64 = vector.broadcast %62 : vector<256x1xf32> to vector<256x32xf32>
    %65 = vector.broadcast %63 : vector<1x32xf32> to vector<256x32xf32>
    %66 = arith.mulf %64, %65 : vector<256x32xf32>
    %67 = arith.addf %58, %66 : vector<256x32xf32>
    %cst_23 = arith.constant 6.000000e+00 : f32
    %68 = vector.broadcast %cst_23 : f32 to vector<256x1xf32>
    %69 = arith.cmpf oeq, %10, %68 : vector<256x1xf32>
    %70 = arith.extui %69 : vector<256x1xi1> to vector<256x1xi32>
    %71 = arith.sitofp %70 : vector<256x1xi32> to vector<256x1xf32>
    %c6 = arith.constant 6 : index
    %c0_24 = arith.constant 0 : index
    %72 = vector.load %arg2[%c6, %c0_24] : memref<9x32xf32, #tpu.memory_space<vmem>>, vector<1x32xf32>
    %73 = vector.broadcast %71 : vector<256x1xf32> to vector<256x32xf32>
    %74 = vector.broadcast %72 : vector<1x32xf32> to vector<256x32xf32>
    %75 = arith.mulf %73, %74 : vector<256x32xf32>
    %76 = arith.addf %67, %75 : vector<256x32xf32>
    %cst_25 = arith.constant 7.000000e+00 : f32
    %77 = vector.broadcast %cst_25 : f32 to vector<256x1xf32>
    %78 = arith.cmpf oeq, %10, %77 : vector<256x1xf32>
    %79 = arith.extui %78 : vector<256x1xi1> to vector<256x1xi32>
    %80 = arith.sitofp %79 : vector<256x1xi32> to vector<256x1xf32>
    %c7 = arith.constant 7 : index
    %c0_26 = arith.constant 0 : index
    %81 = vector.load %arg2[%c7, %c0_26] : memref<9x32xf32, #tpu.memory_space<vmem>>, vector<1x32xf32>
    %82 = vector.broadcast %80 : vector<256x1xf32> to vector<256x32xf32>
    %83 = vector.broadcast %81 : vector<1x32xf32> to vector<256x32xf32>
    %84 = arith.mulf %82, %83 : vector<256x32xf32>
    %85 = arith.addf %76, %84 : vector<256x32xf32>
    %cst_27 = arith.constant 8.000000e+00 : f32
    %86 = vector.broadcast %cst_27 : f32 to vector<256x1xf32>
    %87 = arith.cmpf oeq, %10, %86 : vector<256x1xf32>
    %88 = arith.extui %87 : vector<256x1xi1> to vector<256x1xi32>
    %89 = arith.sitofp %88 : vector<256x1xi32> to vector<256x1xf32>
    %c8 = arith.constant 8 : index
    %c0_28 = arith.constant 0 : index
    %90 = vector.load %arg2[%c8, %c0_28] : memref<9x32xf32, #tpu.memory_space<vmem>>, vector<1x32xf32>
    %91 = vector.broadcast %89 : vector<256x1xf32> to vector<256x32xf32>
    %92 = vector.broadcast %90 : vector<1x32xf32> to vector<256x32xf32>
    %93 = arith.mulf %91, %92 : vector<256x32xf32>
    %94 = arith.addf %85, %93 : vector<256x32xf32>
    %c0_29 = arith.constant 0 : index
    %c0_30 = arith.constant 0 : index
    %95 = vector.load %arg9[%c0_29, %c0_30] : memref<256x32xf32, #tpu.memory_space<vmem>>, vector<256x32xf32>
    tpu.vector_store %arg9[%c0_29, %c0_30], %94 {strides = array<i32>} : memref<256x32xf32, #tpu.memory_space<vmem>>, vector<256x32xf32>,
    %c0_31 = arith.constant 0 : index
    %c0_32 = arith.constant 0 : index
    %96 = vector.load %arg5[%c0_31, %c0_32] : memref<16x100xf32, #tpu.memory_space<vmem>>, vector<16x100xf32>
    %c0_33 = arith.constant 0 : index
    %c0_34 = arith.constant 0 : index
    %97 = vector.load %arg6[%c0_33, %c0_34] : memref<100x32xf32, #tpu.memory_space<vmem>>, vector<100x32xf32>
    %cst_35 = arith.constant dense<0.000000e+00> : vector<16x32xf32>
    %98 = tpu.matmul %96, %97, %cst_35 {dimension_numbers = #tpu.dot_dimension_numbers<[1], [0], [0], [1], [0, 0, 1, 1], [], []>} : vector<16x100xf32>, vector<100x32xf32>, vector<16x32xf32> -> vector<16x32xf32>
    %c0_36 = arith.constant 0 : index
    %c0_37 = arith.constant 0 : index
    %99 = vector.load %arg7[%c0_36, %c0_37] : memref<1x32xf32, #tpu.memory_space<vmem>>, vector<1x32xf32>
    %100 = vector.broadcast %99 : vector<1x32xf32> to vector<16x32xf32>
    %101 = arith.addf %98, %100 : vector<16x32xf32>
    %c0_38 = arith.constant 0 : index
    %c0_39 = arith.constant 0 : index
    %102 = vector.load %arg8[%c0_38, %c0_39] : memref<16x32xf32, #tpu.memory_space<vmem>>, vector<16x32xf32>
    tpu.vector_store %arg8[%c0_38, %c0_39], %101 {strides = array<i32>} : memref<16x32xf32, #tpu.memory_space<vmem>>, vector<16x32xf32>,
    return
  }
}

</mosaic_0001>

<llo_original>
// kernel: gvp_embedder_forward.1
$region0: #{gvp_embedder_forward.1}
  #allocation0 [shape = 'u32[]', space=smem, size = 0x4, offset = 0x4, fixed_abs, tag = 'smem constant byte address 0x4 - core index']
  #allocation1 [shape = 'u32[144,128]{1,0:T(1,128)}', space=vmem, size = 0x12000, scoped, tag = 'internal scratch']
  %s0 = inlined_call_operand.vmem [shape: f32[256,1], index: 0, kind: input, shape index: {}]
  %s1 = inlined_call_operand.vmem [shape: f32[256,64], index: 1, kind: input, shape index: {}]
  %s2 = inlined_call_operand.vmem [shape: f32[9,32], index: 2, kind: input, shape index: {}]
  %s3 = inlined_call_operand.vmem [shape: f32[64,32], index: 3, kind: input, shape index: {}]
  %s4 = inlined_call_operand.vmem [shape: f32[1,32], index: 4, kind: input, shape index: {}]
  %s5 = inlined_call_operand.vmem [shape: f32[16,100], index: 5, kind: input, shape index: {}]
  %s6 = inlined_call_operand.vmem [shape: f32[100,32], index: 6, kind: input, shape index: {}]
  %s7 = inlined_call_operand.vmem [shape: f32[1,32], index: 7, kind: input, shape index: {}]
  %s8 = inlined_call_operand.hbm [shape: f32[16,32], index: 8, kind: output, shape index: {0}]
  %s9 = inlined_call_operand.hbm [shape: f32[256,32], index: 9, kind: output, shape index: {1}]
  %10 = xla_tuple %s8, %s9
  %s11 = sld [smem:[#allocation0]]
  $region50: #{gvp_embedder_forward.1} parent=0
    _
  %s13 = ssub.s32 1, %s11
  %s14 = scalar_select 0, %s13, %s11
  $region1: #{gvp_embedder_forward.1} parent=0
    #allocation2 [shape = 'u8[8192]{0}', space=vmem, size = 0x2000, scoped, tag = 'output window, operand 0, single buffered']
    #allocation3 [shape = 's32[1]{0}', space=sflag, size = 0x4, scoped, tag = 'scoped memory for gvp_embedder_forward.1']
    #allocation4 [shape = 'u8[131072]{0}', space=vmem, size = 0x20000, scoped, tag = 'output window, operand 1, single buffered']
    #allocation5 [shape = 's32[1]{0}', space=sflag, size = 0x4, scoped, tag = 'scoped memory for gvp_embedder_forward.1']
    %15 = vsyncpa [#allocation3], 0
    %16 = vsyncpa [#allocation5], 0
    // Predicated region
    $region2: #{gvp_embedder_forward.1} parent=1 // pred_check
      _
    $region3: #{gvp_embedder_forward.1} parent=1 // pred_check_branch
      %18 = sbr.rel (0) target = $region5
    $region4: #{gvp_embedder_forward.1} parent=1 // pred_region
      _
    $region5: #{gvp_embedder_forward.1} parent=1 // pred_fallthru
      _
    // Predicated region
    $region6: #{gvp_embedder_forward.1} parent=1 // pred_check
      _
    $region7: #{gvp_embedder_forward.1} parent=1 // pred_check_branch
      %20 = sbr.rel (0) target = $region9
    $region8: #{gvp_embedder_forward.1} parent=1 // pred_region
      _
    $region9: #{gvp_embedder_forward.1} parent=1 // pred_fallthru
      _
    // Predicated region
    $region10: #{gvp_embedder_forward.1} parent=1 // pred_check
      _
    $region11: #{gvp_embedder_forward.1} parent=1 // pred_check_branch
      %22 = sbr.rel (0) target = $region13
    $region12: #{gvp_embedder_forward.1} parent=1 // pred_region
      _
    $region13: #{gvp_embedder_forward.1} parent=1 // pred_fallthru
      _
    // Predicated region
    $region14: #{gvp_embedder_forward.1} parent=1 // pred_check
      _
    $region15: #{gvp_embedder_forward.1} parent=1 // pred_check_branch
      %24 = sbr.rel (0) target = $region17
    $region16: #{gvp_embedder_forward.1} parent=1 // pred_region
      _
    $region17: #{gvp_embedder_forward.1} parent=1 // pred_fallthru
      _
    // Predicated region
    $region18: #{gvp_embedder_forward.1} parent=1 // pred_check
      _
    $region19: #{gvp_embedder_forward.1} parent=1 // pred_check_branch
      %26 = sbr.rel (0) target = $region21
    $region20: #{gvp_embedder_forward.1} parent=1 // pred_region
      _
    $region21: #{gvp_embedder_forward.1} parent=1 // pred_fallthru
      _
    // Predicated region
    $region22: #{gvp_embedder_forward.1} parent=1 // pred_check
      _
    $region23: #{gvp_embedder_forward.1} parent=1 // pred_check_branch
      %28 = sbr.rel (0) target = $region25
    $region24: #{gvp_embedder_forward.1} parent=1 // pred_region
      _
    $region25: #{gvp_embedder_forward.1} parent=1 // pred_fallthru
      _
    // Predicated region
    $region26: #{gvp_embedder_forward.1} parent=1 // pred_check
      _
    $region27: #{gvp_embedder_forward.1} parent=1 // pred_check_branch
      %30 = sbr.rel (0) target = $region29
    $region28: #{gvp_embedder_forward.1} parent=1 // pred_region
      _
    $region29: #{gvp_embedder_forward.1} parent=1 // pred_fallthru
      _
    // Predicated region
    $region30: #{gvp_embedder_forward.1} parent=1 // pred_check
      _
    $region31: #{gvp_embedder_forward.1} parent=1 // pred_check_branch
      %32 = sbr.rel (0) target = $region33
    $region32: #{gvp_embedder_forward.1} parent=1 // pred_region
      _
    $region33: #{gvp_embedder_forward.1} parent=1 // pred_fallthru
      _
    %v33 = vld [vmem:[%s1] sm:$0xff]
    %v34 = vld [vmem:[%s1 + $0x8] sm:$0xff]
    %v35 = vld [vmem:[%s1 + $0x10] sm:$0xff]
    %v36 = vld [vmem:[%s1 + $0x18] sm:$0xff]
    %v37 = vld [vmem:[%s1 + $0x20] sm:$0xff]
    %v38 = vld [vmem:[%s1 + $0x28] sm:$0xff]
    %v39 = vld [vmem:[%s1 + $0x30] sm:$0xff]
    %v40 = vld [vmem:[%s1 + $0x38] sm:$0xff]
    %v41 = vld [vmem:[%s1 + $0x40] sm:$0xff]
    %v42 = vld [vmem:[%s1 + $0x48] sm:$0xff]
    %v43 = vld [vmem:[%s1 + $0x50] sm:$0xff]
    %v44 = vld [vmem:[%s1 + $0x58] sm:$0xff]
    %v45 = vld [vmem:[%s1 + $0x60] sm:$0xff]
    %v46 = vld [vmem:[%s1 + $0x68] sm:$0xff]
    %v47 = vld [vmem:[%s1 + $0x70] sm:$0xff]
    %v48 = vld [vmem:[%s1 + $0x78] sm:$0xff]
    %v49 = vld [vmem:[%s1 + $0x80] sm:$0xff]
    %v50 = vld [vmem:[%s1 + $0x88] sm:$0xff]
    %v51 = vld [vmem:[%s1 + $0x90] sm:$0xff]
    %v52 = vld [vmem:[%s1 + $0x98] sm:$0xff]
    %v53 = vld [vmem:[%s1 + $0xa0] sm:$0xff]
    %v54 = vld [vmem:[%s1 + $0xa8] sm:$0xff]
    %v55 = vld [vmem:[%s1 + $0xb0] sm:$0xff]
    %v56 = vld [vmem:[%s1 + $0xb8] sm:$0xff]
    %v57 = vld [vmem:[%s1 + $0xc0] sm:$0xff]
    %v58 = vld [vmem:[%s1 + $0xc8] sm:$0xff]
    %v59 = vld [vmem:[%s1 + $0xd0] sm:$0xff]
    %v60 = vld [vmem:[%s1 + $0xd8] sm:$0xff]
    %v61 = vld [vmem:[%s1 + $0xe0] sm:$0xff]
    %v62 = vld [vmem:[%s1 + $0xe8] sm:$0xff]
    %v63 = vld [vmem:[%s1 + $0xf0] sm:$0xff]
    %v64 = vld [vmem:[%s1 + $0xf8] sm:$0xff]
    %v65 = vld [vmem:[%s3] sm:$0xff]
    %v66 = vld [vmem:[%s3 + $0x8] sm:$0xff]
    %v67 = vld [vmem:[%s3 + $0x10] sm:$0xff]
    %v68 = vld [vmem:[%s3 + $0x18] sm:$0xff]
    %v69 = vld [vmem:[%s3 + $0x20] sm:$0xff]
    %v70 = vld [vmem:[%s3 + $0x28] sm:$0xff]
    %v71 = vld [vmem:[%s3 + $0x30] sm:$0xff]
    %v72 = vld [vmem:[%s3 + $0x38] sm:$0xff]
    %v73 = vld [vmem:[%s0] sm:$0xff]
    %v74 = vld [vmem:[%s0 + $0x8] sm:$0xff]
    %v75 = vld [vmem:[%s0 + $0x10] sm:$0xff]
    %v76 = vld [vmem:[%s0 + $0x18] sm:$0xff]
    %v77 = vld [vmem:[%s0 + $0x20] sm:$0xff]
    %v78 = vld [vmem:[%s0 + $0x28] sm:$0xff]
    %v79 = vld [vmem:[%s0 + $0x30] sm:$0xff]
    %v80 = vld [vmem:[%s0 + $0x38] sm:$0xff]
    %v81 = vld [vmem:[%s0 + $0x40] sm:$0xff]
    %v82 = vld [vmem:[%s0 + $0x48] sm:$0xff]
    %v83 = vld [vmem:[%s0 + $0x50] sm:$0xff]
    %v84 = vld [vmem:[%s0 + $0x58] sm:$0xff]
    %v85 = vld [vmem:[%s0 + $0x60] sm:$0xff]
    %v86 = vld [vmem:[%s0 + $0x68] sm:$0xff]
    %v87 = vld [vmem:[%s0 + $0x70] sm:$0xff]
    %v88 = vld [vmem:[%s0 + $0x78] sm:$0xff]
    %v89 = vld [vmem:[%s0 + $0x80] sm:$0xff]
    %v90 = vld [vmem:[%s0 + $0x88] sm:$0xff]
    %v91 = vld [vmem:[%s0 + $0x90] sm:$0xff]
    %v92 = vld [vmem:[%s0 + $0x98] sm:$0xff]
    %v93 = vld [vmem:[%s0 + $0xa0] sm:$0xff]
    %v94 = vld [vmem:[%s0 + $0xa8] sm:$0xff]
    %v95 = vld [vmem:[%s0 + $0xb0] sm:$0xff]
    %v96 = vld [vmem:[%s0 + $0xb8] sm:$0xff]
    %v97 = vld [vmem:[%s0 + $0xc0] sm:$0xff]
    %v98 = vld [vmem:[%s0 + $0xc8] sm:$0xff]
    %v99 = vld [vmem:[%s0 + $0xd0] sm:$0xff]
    %v100 = vld [vmem:[%s0 + $0xd8] sm:$0xff]
    %v101 = vld [vmem:[%s0 + $0xe0] sm:$0xff]
    %v102 = vld [vmem:[%s0 + $0xe8] sm:$0xff]
    %v103 = vld [vmem:[%s0 + $0xf0] sm:$0xff]
    %v104 = vld [vmem:[%s0 + $0xf8] sm:$0xff]
    %v105 = vround.ne.pseudo %v73
    %v106 = vround.ne.pseudo %v74
    %v107 = vround.ne.pseudo %v75
    %v108 = vround.ne.pseudo %v76
    %v109 = vround.ne.pseudo %v77
    %v110 = vround.ne.pseudo %v78
    %v111 = vround.ne.pseudo %v79
    %v112 = vround.ne.pseudo %v80
    %v113 = vround.ne.pseudo %v81
    %v114 = vround.ne.pseudo %v82
    %v115 = vround.ne.pseudo %v83
    %v116 = vround.ne.pseudo %v84
    %v117 = vround.ne.pseudo %v85
    %v118 = vround.ne.pseudo %v86
    %v119 = vround.ne.pseudo %v87
    %v120 = vround.ne.pseudo %v88
    %v121 = vround.ne.pseudo %v89
    %v122 = vround.ne.pseudo %v90
    %v123 = vround.ne.pseudo %v91
    %v124 = vround.ne.pseudo %v92
    %v125 = vround.ne.pseudo %v93
    %v126 = vround.ne.pseudo %v94
    %v127 = vround.ne.pseudo %v95
    %v128 = vround.ne.pseudo %v96
    %v129 = vround.ne.pseudo %v97
    %v130 = vround.ne.pseudo %v98
    %v131 = vround.ne.pseudo %v99
    %v132 = vround.ne.pseudo %v100
    %v133 = vround.ne.pseudo %v101
    %v134 = vround.ne.pseudo %v102
    %v135 = vround.ne.pseudo %v103
    %v136 = vround.ne.pseudo %v104
    %v137 = vmax.f32 %v105, -4.0
    %v138 = vmax.f32 %v106, -4.0
    %v139 = vmax.f32 %v107, -4.0
    %v140 = vmax.f32 %v108, -4.0
    %v141 = vmax.f32 %v109, -4.0
    %v142 = vmax.f32 %v110, -4.0
    %v143 = vmax.f32 %v111, -4.0
    %v144 = vmax.f32 %v112, -4.0
    %v145 = vmax.f32 %v113, -4.0
    %v146 = vmax.f32 %v114, -4.0
    %v147 = vmax.f32 %v115, -4.0
    %v148 = vmax.f32 %v116, -4.0
    %v149 = vmax.f32 %v117, -4.0
    %v150 = vmax.f32 %v118, -4.0
    %v151 = vmax.f32 %v119, -4.0
    %v152 = vmax.f32 %v120, -4.0
    %v153 = vmax.f32 %v121, -4.0
    %v154 = vmax.f32 %v122, -4.0
    %v155 = vmax.f32 %v123, -4.0
    %v156 = vmax.f32 %v124, -4.0
    %v157 = vmax.f32 %v125, -4.0
    %v158 = vmax.f32 %v126, -4.0
    %v159 = vmax.f32 %v127, -4.0
    %v160 = vmax.f32 %v128, -4.0
    %v161 = vmax.f32 %v129, -4.0
    %v162 = vmax.f32 %v130, -4.0
    %v163 = vmax.f32 %v131, -4.0
    %v164 = vmax.f32 %v132, -4.0
    %v165 = vmax.f32 %v133, -4.0
    %v166 = vmax.f32 %v134, -4.0
    %v167 = vmax.f32 %v135, -4.0
    %v168 = vmax.f32 %v136, -4.0
    %v169 = vmin.f32 %v137, 4.0
    %v170 = vmin.f32 %v138, 4.0
    %v171 = vmin.f32 %v139, 4.0
    %v172 = vmin.f32 %v140, 4.0
    %v173 = vmin.f32 %v141, 4.0
    %v174 = vmin.f32 %v142, 4.0
    %v175 = vmin.f32 %v143, 4.0
    %v176 = vmin.f32 %v144, 4.0
    %v177 = vmin.f32 %v145, 4.0
    %v178 = vmin.f32 %v146, 4.0
    %v179 = vmin.f32 %v147, 4.0
    %v180 = vmin.f32 %v148, 4.0
    %v181 = vmin.f32 %v149, 4.0
    %v182 = vmin.f32 %v150, 4.0
    %v183 = vmin.f32 %v151, 4.0
    %v184 = vmin.f32 %v152, 4.0
    %v185 = vmin.f32 %v153, 4.0
    %v186 = vmin.f32 %v154, 4.0
    %v187 = vmin.f32 %v155, 4.0
    %v188 = vmin.f32 %v156, 4.0
    %v189 = vmin.f32 %v157, 4.0
    %v190 = vmin.f32 %v158, 4.0
    %v191 = vmin.f32 %v159, 4.0
    %v192 = vmin.f32 %v160, 4.0
    %v193 = vmin.f32 %v161, 4.0
    %v194 = vmin.f32 %v162, 4.0
    %v195 = vmin.f32 %v163, 4.0
    %v196 = vmin.f32 %v164, 4.0
    %v197 = vmin.f32 %v165, 4.0
    %v198 = vmin.f32 %v166, 4.0
    %v199 = vmin.f32 %v167, 4.0
    %v200 = vmin.f32 %v168, 4.0
    %v201 = vadd.f32 %v169, 4.0
    %v202 = vadd.f32 %v170, 4.0
    %v203 = vadd.f32 %v171, 4.0
    %v204 = vadd.f32 %v172, 4.0
    %v205 = vadd.f32 %v173, 4.0
    %v206 = vadd.f32 %v174, 4.0
    %v207 = vadd.f32 %v175, 4.0
    %v208 = vadd.f32 %v176, 4.0
    %v209 = vadd.f32 %v177, 4.0
    %v210 = vadd.f32 %v178, 4.0
    %v211 = vadd.f32 %v179, 4.0
    %v212 = vadd.f32 %v180, 4.0
    %v213 = vadd.f32 %v181, 4.0
    %v214 = vadd.f32 %v182, 4.0
    %v215 = vadd.f32 %v183, 4.0
    %v216 = vadd.f32 %v184, 4.0
    %v217 = vadd.f32 %v185, 4.0
    %v218 = vadd.f32 %v186, 4.0
    %v219 = vadd.f32 %v187, 4.0
    %v220 = vadd.f32 %v188, 4.0
    %v221 = vadd.f32 %v189, 4.0
    %v222 = vadd.f32 %v190, 4.0
    %v223 = vadd.f32 %v191, 4.0
    %v224 = vadd.f32 %v192, 4.0
    %v225 = vadd.f32 %v193, 4.0
    %v226 = vadd.f32 %v194, 4.0
    %v227 = vadd.f32 %v195, 4.0
    %v228 = vadd.f32 %v196, 4.0
    %v229 = vadd.f32 %v197, 4.0
    %v230 = vadd.f32 %v198, 4.0
    %v231 = vadd.f32 %v199, 4.0
    %v232 = vadd.f32 %v200, 4.0
    %v233 = vld [vmem:[%s4] sm:$0x1]
    %v235 = vlaneseq
    %v236 = vshrl.u32 %v235, 7
    %v237 = vsub.s32 0, %v236
    %v238 = vrot.slane %v233, %v237
    %vm240 = vcmask 523264
    %v242 = vsel %vm240, %v33, 0
    %v245 = vsel %vm240, %v34, 0
    %v248 = vsel %vm240, %v35, 0
    %v251 = vsel %vm240, %v36, 0
    %v254 = vsel %vm240, %v37, 0
    %v257 = vsel %vm240, %v38, 0
    %v260 = vsel %vm240, %v39, 0
    %v263 = vsel %vm240, %v40, 0
    %v266 = vsel %vm240, %v41, 0
    %v269 = vsel %vm240, %v42, 0
    %v272 = vsel %vm240, %v43, 0
    %v275 = vsel %vm240, %v44, 0
    %v278 = vsel %vm240, %v45, 0
    %v281 = vsel %vm240, %v46, 0
    %v284 = vsel %vm240, %v47, 0
    %v287 = vsel %vm240, %v48, 0
    %v290 = vsel %vm240, %v49, 0
    %v293 = vsel %vm240, %v50, 0
    %v296 = vsel %vm240, %v51, 0
    %v299 = vsel %vm240, %v52, 0
    %v302 = vsel %vm240, %v53, 0
    %v305 = vsel %vm240, %v54, 0
    %v308 = vsel %vm240, %v55, 0
    %v311 = vsel %vm240, %v56, 0
    %v314 = vsel %vm240, %v57, 0
    %v317 = vsel %vm240, %v58, 0
    %v320 = vsel %vm240, %v59, 0
    %v323 = vsel %vm240, %v60, 0
    %v326 = vsel %vm240, %v61, 0
    %v329 = vsel %vm240, %v62, 0
    %v332 = vsel %vm240, %v63, 0
    %v335 = vsel %vm240, %v64, 0
    %337 = vmatprep.subr.mxu0 0.0
    %338 = vmatpush1.msra.mxu0 %v65
    %339 = vmatprep.subr.mxu0 0.0
    %340 = vmatpush1.msra.mxu0 %v66
    %341 = vmatprep.subr.mxu0 0.0
    %342 = vmatpush1.msra.mxu0 %v67
    %343 = vmatprep.subr.mxu0 0.0
    %344 = vmatpush1.msra.mxu0 %v68
    %345 = vmatprep.subr.mxu0 0.0
    %346 = vmatpush1.msra.mxu0 %v69
    %347 = vmatprep.subr.mxu0 0.0
    %348 = vmatpush1.msra.mxu0 %v70
    %349 = vmatprep.subr.mxu0 0.0
    %350 = vmatpush1.msra.mxu0 %v71
    %351 = vmatprep.subr.mxu0 0.0
    %352 = vmatpush1.msra.mxu0 %v72
    %353 = vmatprep.subr.mxu0 0.0
    %354 = vmatpush1.msra.mxu0 0.0
    %355 = vmatprep.subr.mxu0 0.0
    %356 = vmatpush1.msra.mxu0 0.0
    %357 = vmatprep.subr.mxu0 0.0
    %358 = vmatpush1.msra.mxu0 0.0
    %359 = vmatprep.subr.mxu0 0.0
    %360 = vmatpush1.msra.mxu0 0.0
    %361 = vmatprep.subr.mxu0 0.0
    %362 = vmatpush1.msra.mxu0 0.0
    %363 = vmatprep.subr.mxu0 0.0
    %364 = vmatpush1.msra.mxu0 0.0
    %365 = vmatprep.subr.mxu0 0.0
    %366 = vmatpush1.msra.mxu0 0.0
    %367 = vmatprep.subr.mxu0 0.0
    %368 = vmatpush1.msra.mxu0 0.0
    %369 = vmatprep.subr.mxu0 0.0
    %370 = vmatpush1.msra.mxu0 0.0
    %371 = vmatprep.subr.mxu0 0.0
    %372 = vmatpush1.msra.mxu0 0.0
    %373 = vmatprep.subr.mxu0 0.0
    %374 = vmatpush1.msra.mxu0 0.0
    %375 = vmatprep.subr.mxu0 0.0
    %376 = vmatpush1.msra.mxu0 0.0
    %377 = vmatprep.subr.mxu0 0.0
    %378 = vmatpush1.msra.mxu0 0.0
    %379 = vmatprep.subr.mxu0 0.0
    %380 = vmatpush1.msra.mxu0 0.0
    %381 = vmatprep.subr.mxu0 0.0
    %382 = vmatpush1.msra.mxu0 0.0
    %383 = vmatprep.subr.mxu0 0.0
    %384 = vmatpush1.msra.mxu0 0.0
    %385 = vmatprep.subr.mxu0 0.0
    %386 = vmatpush1.msra.mxu0 0.0
    %387 = vmatprep.subr.mxu0 0.0
    %388 = vmatpush1.msra.mxu0 0.0
    %389 = vmatprep.subr.mxu0 0.0
    %390 = vmatpush1.msra.mxu0 0.0
    %391 = vmatprep.subr.mxu0 0.0
    %392 = vmatpush1.msra.mxu0 0.0
    %393 = vmatprep.subr.mxu0 0.0
    %394 = vmatpush1.msra.mxu0 0.0
    %395 = vmatprep.subr.mxu0 0.0
    %396 = vmatpush1.msra.mxu0 0.0
    %397 = vmatprep.subr.mxu0 0.0
    %398 = vmatpush1.msra.mxu0 0.0
    %399 = vmatprep.subr.mxu0 0.0
    %400 = vmatpush1.msra.mxu0 0.0
    %401 = vmatprep.mubr.f32.mxu0 0.0
    %402 = vmatmul.mubr.f32.gmra.mrb[0].mxu0 %v242
    %v403 = vpop.f32.mrb[0].mxu0
    %v404 = vadd.f32 %v238, %v403
    %v405 = vpop.f32.mrb[0].mxu0
    %406 = vmatprep.mubr.f32.mxu0 0.0
    %407 = vmatmul.mubr.f32.gmra.mrb[0].mxu0 %v245
    %v408 = vpop.f32.mrb[0].mxu0
    %v409 = vadd.f32 %v238, %v408
    %v410 = vpop.f32.mrb[0].mxu0
    %411 = vmatprep.mubr.f32.mxu0 0.0
    %412 = vmatmul.mubr.f32.gmra.mrb[0].mxu0 %v248
    %v413 = vpop.f32.mrb[0].mxu0
    %v414 = vadd.f32 %v238, %v413
    %v415 = vpop.f32.mrb[0].mxu0
    %416 = vmatprep.mubr.f32.mxu0 0.0
    %417 = vmatmul.mubr.f32.gmra.mrb[0].mxu0 %v251
    %v418 = vpop.f32.mrb[0].mxu0
    %v419 = vadd.f32 %v238, %v418
    %v420 = vpop.f32.mrb[0].mxu0
    %421 = vmatprep.mubr.f32.mxu0 0.0
    %422 = vmatmul.mubr.f32.gmra.mrb[0].mxu0 %v254
    %v423 = vpop.f32.mrb[0].mxu0
    %v424 = vadd.f32 %v238, %v423
    %v425 = vpop.f32.mrb[0].mxu0
    %426 = vmatprep.mubr.f32.mxu0 0.0
    %427 = vmatmul.mubr.f32.gmra.mrb[0].mxu0 %v257
    %v428 = vpop.f32.mrb[0].mxu0
    %v429 = vadd.f32 %v238, %v428
    %v430 = vpop.f32.mrb[0].mxu0
    %431 = vmatprep.mubr.f32.mxu0 0.0
    %432 = vmatmul.mubr.f32.gmra.mrb[0].mxu0 %v260
    %v433 = vpop.f32.mrb[0].mxu0
    %v434 = vadd.f32 %v238, %v433
    %v435 = vpop.f32.mrb[0].mxu0
    %436 = vmatprep.mubr.f32.mxu0 0.0
    %437 = vmatmul.mubr.f32.gmra.mrb[0].mxu0 %v263
    %v438 = vpop.f32.mrb[0].mxu0
    %v439 = vadd.f32 %v238, %v438
    %v440 = vpop.f32.mrb[0].mxu0
    %441 = vmatprep.mubr.f32.mxu0 0.0
    %442 = vmatmul.mubr.f32.gmra.mrb[0].mxu0 %v266
    %v443 = vpop.f32.mrb[0].mxu0
    %v444 = vadd.f32 %v238, %v443
    %v445 = vpop.f32.mrb[0].mxu0
    %446 = vmatprep.mubr.f32.mxu0 0.0
    %447 = vmatmul.mubr.f32.gmra.mrb[0].mxu0 %v269
    %v448 = vpop.f32.mrb[0].mxu0
    %v449 = vadd.f32 %v238, %v448
    %v450 = vpop.f32.mrb[0].mxu0
    %451 = vmatprep.mubr.f32.mxu0 0.0
    %452 = vmatmul.mubr.f32.gmra.mrb[0].mxu0 %v272
    %v453 = vpop.f32.mrb[0].mxu0
    %v454 = vadd.f32 %v238, %v453
    %v455 = vpop.f32.mrb[0].mxu0
    %456 = vmatprep.mubr.f32.mxu0 0.0
    %457 = vmatmul.mubr.f32.gmra.mrb[0].mxu0 %v275
    %v458 = vpop.f32.mrb[0].mxu0
    %v459 = vadd.f32 %v238, %v458
    %v460 = vpop.f32.mrb[0].mxu0
    %461 = vmatprep.mubr.f32.mxu0 0.0
    %462 = vmatmul.mubr.f32.gmra.mrb[0].mxu0 %v278
    %v463 = vpop.f32.mrb[0].mxu0
    %v464 = vadd.f32 %v238, %v463
    %v465 = vpop.f32.mrb[0].mxu0
    %466 = vmatprep.mubr.f32.mxu0 0.0
    %467 = vmatmul.mubr.f32.gmra.mrb[0].mxu0 %v281
    %v468 = vpop.f32.mrb[0].mxu0
    %v469 = vadd.f32 %v238, %v468
    %v470 = vpop.f32.mrb[0].mxu0
    %471 = vmatprep.mubr.f32.mxu0 0.0
    %472 = vmatmul.mubr.f32.gmra.mrb[0].mxu0 %v284
    %v473 = vpop.f32.mrb[0].mxu0
    %v474 = vadd.f32 %v238, %v473
    %v475 = vpop.f32.mrb[0].mxu0
    %476 = vmatprep.mubr.f32.mxu0 0.0
    %477 = vmatmul.mubr.f32.gmra.mrb[0].mxu0 %v287
    %v478 = vpop.f32.mrb[0].mxu0
    %v479 = vadd.f32 %v238, %v478
    %v480 = vpop.f32.mrb[0].mxu0
    %481 = vmatprep.mubr.f32.mxu0 0.0
    %482 = vmatmul.mubr.f32.gmra.mrb[0].mxu0 %v290
    %v483 = vpop.f32.mrb[0].mxu0
    %v484 = vadd.f32 %v238, %v483
    %v485 = vpop.f32.mrb[0].mxu0
    %486 = vmatprep.mubr.f32.mxu0 0.0
    %487 = vmatmul.mubr.f32.gmra.mrb[0].mxu0 %v293
    %v488 = vpop.f32.mrb[0].mxu0
    %v489 = vadd.f32 %v238, %v488
    %v490 = vpop.f32.mrb[0].mxu0
    %491 = vmatprep.mubr.f32.mxu0 0.0
    %492 = vmatmul.mubr.f32.gmra.mrb[0].mxu0 %v296
    %v493 = vpop.f32.mrb[0].mxu0
    %v494 = vadd.f32 %v238, %v493
    %v495 = vpop.f32.mrb[0].mxu0
    %496 = vmatprep.mubr.f32.mxu0 0.0
    %497 = vmatmul.mubr.f32.gmra.mrb[0].mxu0 %v299
    %v498 = vpop.f32.mrb[0].mxu0
    %v499 = vadd.f32 %v238, %v498
    %v500 = vpop.f32.mrb[0].mxu0
    %501 = vmatprep.mubr.f32.mxu0 0.0
    %502 = vmatmul.mubr.f32.gmra.mrb[0].mxu0 %v302
    %v503 = vpop.f32.mrb[0].mxu0
    %v504 = vadd.f32 %v238, %v503
    %v505 = vpop.f32.mrb[0].mxu0
    %506 = vmatprep.mubr.f32.mxu0 0.0
    %507 = vmatmul.mubr.f32.gmra.mrb[0].mxu0 %v305
    %v508 = vpop.f32.mrb[0].mxu0
    %v509 = vadd.f32 %v238, %v508
    %v510 = vpop.f32.mrb[0].mxu0
    %511 = vmatprep.mubr.f32.mxu0 0.0
    %512 = vmatmul.mubr.f32.gmra.mrb[0].mxu0 %v308
    %v513 = vpop.f32.mrb[0].mxu0
    %v514 = vadd.f32 %v238, %v513
    %v515 = vpop.f32.mrb[0].mxu0
    %516 = vmatprep.mubr.f32.mxu0 0.0
    %517 = vmatmul.mubr.f32.gmra.mrb[0].mxu0 %v311
    %v518 = vpop.f32.mrb[0].mxu0
    %v519 = vadd.f32 %v238, %v518
    %v520 = vpop.f32.mrb[0].mxu0
    %521 = vmatprep.mubr.f32.mxu0 0.0
    %522 = vmatmul.mubr.f32.gmra.mrb[0].mxu0 %v314
    %v523 = vpop.f32.mrb[0].mxu0
    %v524 = vadd.f32 %v238, %v523
    %v525 = vpop.f32.mrb[0].mxu0
    %526 = vmatprep.mubr.f32.mxu0 0.0
    %527 = vmatmul.mubr.f32.gmra.mrb[0].mxu0 %v317
    %v528 = vpop.f32.mrb[0].mxu0
    %v529 = vadd.f32 %v238, %v528
    %v530 = vpop.f32.mrb[0].mxu0
    %531 = vmatprep.mubr.f32.mxu0 0.0
    %532 = vmatmul.mubr.f32.gmra.mrb[0].mxu0 %v320
    %v533 = vpop.f32.mrb[0].mxu0
    %v534 = vadd.f32 %v238, %v533
    %v535 = vpop.f32.mrb[0].mxu0
    %536 = vmatprep.mubr.f32.mxu0 0.0
    %537 = vmatmul.mubr.f32.gmra.mrb[0].mxu0 %v323
    %v538 = vpop.f32.mrb[0].mxu0
    %v539 = vadd.f32 %v238, %v538
    %v540 = vpop.f32.mrb[0].mxu0
    %541 = vmatprep.mubr.f32.mxu0 0.0
    %542 = vmatmul.mubr.f32.gmra.mrb[0].mxu0 %v326
    %v543 = vpop.f32.mrb[0].mxu0
    %v544 = vadd.f32 %v238, %v543
    %v545 = vpop.f32.mrb[0].mxu0
    %546 = vmatprep.mubr.f32.mxu0 0.0
    %547 = vmatmul.mubr.f32.gmra.mrb[0].mxu0 %v329
    %v548 = vpop.f32.mrb[0].mxu0
    %v549 = vadd.f32 %v238, %v548
    %v550 = vpop.f32.mrb[0].mxu0
    %551 = vmatprep.mubr.f32.mxu0 0.0
    %552 = vmatmul.mubr.f32.gmra.mrb[0].mxu0 %v332
    %v553 = vpop.f32.mrb[0].mxu0
    %v554 = vadd.f32 %v238, %v553
    %v555 = vpop.f32.mrb[0].mxu0
    %556 = vmatprep.mubr.f32.mxu0 0.0
    %557 = vmatmul.mubr.f32.gmra.mrb[0].mxu0 %v335
    %v558 = vpop.f32.mrb[0].mxu0
    %v559 = vadd.f32 %v238, %v558
    %v560 = vpop.f32.mrb[0].mxu0
    %561 = vdwg.mxu0
    %vm562 = vcmp.eq.f32.partialorder %v201, 0.0
    %vm563 = vcmp.eq.f32.partialorder %v202, 0.0
    %vm564 = vcmp.eq.f32.partialorder %v203, 0.0
    %vm565 = vcmp.eq.f32.partialorder %v204, 0.0
    %vm566 = vcmp.eq.f32.partialorder %v205, 0.0
    %vm567 = vcmp.eq.f32.partialorder %v206, 0.0
    %vm568 = vcmp.eq.f32.partialorder %v207, 0.0
    %vm569 = vcmp.eq.f32.partialorder %v208, 0.0
    %vm570 = vcmp.eq.f32.partialorder %v209, 0.0
    %vm571 = vcmp.eq.f32.partialorder %v210, 0.0
    %vm572 = vcmp.eq.f32.partialorder %v211, 0.0
    %vm573 = vcmp.eq.f32.partialorder %v212, 0.0
    %vm574 = vcmp.eq.f32.partialorder %v213, 0.0
    %vm575 = vcmp.eq.f32.partialorder %v214, 0.0
    %vm576 = vcmp.eq.f32.partialorder %v215, 0.0
    %vm577 = vcmp.eq.f32.partialorder %v216, 0.0
    %vm578 = vcmp.eq.f32.partialorder %v217, 0.0
    %vm579 = vcmp.eq.f32.partialorder %v218, 0.0
    %vm580 = vcmp.eq.f32.partialorder %v219, 0.0
    %vm581 = vcmp.eq.f32.partialorder %v220, 0.0
    %vm582 = vcmp.eq.f32.partialorder %v221, 0.0
    %vm583 = vcmp.eq.f32.partialorder %v222, 0.0
    %vm584 = vcmp.eq.f32.partialorder %v223, 0.0
    %vm585 = vcmp.eq.f32.partialorder %v224, 0.0
    %vm586 = vcmp.eq.f32.partialorder %v225, 0.0
    %vm587 = vcmp.eq.f32.partialorder %v226, 0.0
    %vm588 = vcmp.eq.f32.partialorder %v227, 0.0
    %vm589 = vcmp.eq.f32.partialorder %v228, 0.0
    %vm590 = vcmp.eq.f32.partialorder %v229, 0.0
    %vm591 = vcmp.eq.f32.partialorder %v230, 0.0
    %vm592 = vcmp.eq.f32.partialorder %v231, 0.0
    %vm593 = vcmp.eq.f32.partialorder %v232, 0.0
    %v594 = vsel %vm562, 1, 0
    %v595 = vsel %vm563, 1, 0
    %v596 = vsel %vm564, 1, 0
    %v597 = vsel %vm565, 1, 0
    %v598 = vsel %vm566, 1, 0
    %v599 = vsel %vm567, 1, 0
    %v600 = vsel %vm568, 1, 0
    %v601 = vsel %vm569, 1, 0
    %v602 = vsel %vm570, 1, 0
    %v603 = vsel %vm571, 1, 0
    %v604 = vsel %vm572, 1, 0
    %v605 = vsel %vm573, 1, 0
    %v606 = vsel %vm574, 1, 0
    %v607 = vsel %vm575, 1, 0
    %v608 = vsel %vm576, 1, 0
    %v609 = vsel %vm577, 1, 0
    %v610 = vsel %vm578, 1, 0
    %v611 = vsel %vm579, 1, 0
    %v612 = vsel %vm580, 1, 0
    %v613 = vsel %vm581, 1, 0
    %v614 = vsel %vm582, 1, 0
    %v615 = vsel %vm583, 1, 0
    %v616 = vsel %vm584, 1, 0
    %v617 = vsel %vm585, 1, 0
    %v618 = vsel %vm586, 1, 0
    %v619 = vsel %vm587, 1, 0
    %v620 = vsel %vm588, 1, 0
    %v621 = vsel %vm589, 1, 0
    %v622 = vsel %vm590, 1, 0
    %v623 = vsel %vm591, 1, 0
    %v624 = vsel %vm592, 1, 0
    %v625 = vsel %vm593, 1, 0
    %v626 = vcvt.s32.f32 %v594
    %v627 = vcvt.s32.f32 %v595
    %v628 = vcvt.s32.f32 %v596
    %v629 = vcvt.s32.f32 %v597
    %v630 = vcvt.s32.f32 %v598
    %v631 = vcvt.s32.f32 %v599
    %v632 = vcvt.s32.f32 %v600
    %v633 = vcvt.s32.f32 %v601
    %v634 = vcvt.s32.f32 %v602
    %v635 = vcvt.s32.f32 %v603
    %v636 = vcvt.s32.f32 %v604
    %v637 = vcvt.s32.f32 %v605
    %v638 = vcvt.s32.f32 %v606
    %v639 = vcvt.s32.f32 %v607
    %v640 = vcvt.s32.f32 %v608
    %v641 = vcvt.s32.f32 %v609
    %v642 = vcvt.s32.f32 %v610
    %v643 = vcvt.s32.f32 %v611
    %v644 = vcvt.s32.f32 %v612
    %v645 = vcvt.s32.f32 %v613
    %v646 = vcvt.s32.f32 %v614
    %v647 = vcvt.s32.f32 %v615
    %v648 = vcvt.s32.f32 %v616
    %v649 = vcvt.s32.f32 %v617
    %v650 = vcvt.s32.f32 %v618
    %v651 = vcvt.s32.f32 %v619
    %v652 = vcvt.s32.f32 %v620
    %v653 = vcvt.s32.f32 %v621
    %v654 = vcvt.s32.f32 %v622
    %v655 = vcvt.s32.f32 %v623
    %v656 = vcvt.s32.f32 %v624
    %v657 = vcvt.s32.f32 %v625
    %v658 = vld [vmem:[%s2] sm:$0x1]
    %660 = vset.pattern.permute.xlu0 0
    %661 = vperm.xlu0 %660, %v626
    %v662 = vpop.permute.xlu0 %661
    %665 = vset.pattern.permute.xlu0 0
    %666 = vperm.xlu0 %665, %v627
    %v667 = vpop.permute.xlu0 %666
    %670 = vset.pattern.permute.xlu0 0
    %671 = vperm.xlu0 %670, %v628
    %v672 = vpop.permute.xlu0 %671
    %675 = vset.pattern.permute.xlu0 0
    %676 = vperm.xlu0 %675, %v629
    %v677 = vpop.permute.xlu0 %676
    %680 = vset.pattern.permute.xlu0 0
    %681 = vperm.xlu0 %680, %v630
    %v682 = vpop.permute.xlu0 %681
    %685 = vset.pattern.permute.xlu0 0
    %686 = vperm.xlu0 %685, %v631
    %v687 = vpop.permute.xlu0 %686
    %690 = vset.pattern.permute.xlu0 0
    %691 = vperm.xlu0 %690, %v632
    %v692 = vpop.permute.xlu0 %691
    %695 = vset.pattern.permute.xlu0 0
    %696 = vperm.xlu0 %695, %v633
    %v697 = vpop.permute.xlu0 %696
    %700 = vset.pattern.permute.xlu0 0
    %701 = vperm.xlu0 %700, %v634
    %v702 = vpop.permute.xlu0 %701
    %705 = vset.pattern.permute.xlu0 0
    %706 = vperm.xlu0 %705, %v635
    %v707 = vpop.permute.xlu0 %706
    %710 = vset.pattern.permute.xlu0 0
    %711 = vperm.xlu0 %710, %v636
    %v712 = vpop.permute.xlu0 %711
    %715 = vset.pattern.permute.xlu0 0
    %716 = vperm.xlu0 %715, %v637
    %v717 = vpop.permute.xlu0 %716
    %720 = vset.pattern.permute.xlu0 0
    %721 = vperm.xlu0 %720, %v638
    %v722 = vpop.permute.xlu0 %721
    %725 = vset.pattern.permute.xlu0 0
    %726 = vperm.xlu0 %725, %v639
    %v727 = vpop.permute.xlu0 %726
    %730 = vset.pattern.permute.xlu0 0
    %731 = vperm.xlu0 %730, %v640
    %v732 = vpop.permute.xlu0 %731
    %735 = vset.pattern.permute.xlu0 0
    %736 = vperm.xlu0 %735, %v641
    %v737 = vpop.permute.xlu0 %736
    %740 = vset.pattern.permute.xlu0 0
    %741 = vperm.xlu0 %740, %v642
    %v742 = vpop.permute.xlu0 %741
    %745 = vset.pattern.permute.xlu0 0
    %746 = vperm.xlu0 %745, %v643
    %v747 = vpop.permute.xlu0 %746
    %750 = vset.pattern.permute.xlu0 0
    %751 = vperm.xlu0 %750, %v644
    %v752 = vpop.permute.xlu0 %751
    %755 = vset.pattern.permute.xlu0 0
    %756 = vperm.xlu0 %755, %v645
    %v757 = vpop.permute.xlu0 %756
    %760 = vset.pattern.permute.xlu0 0
    %761 = vperm.xlu0 %760, %v646
    %v762 = vpop.permute.xlu0 %761
    %765 = vset.pattern.permute.xlu0 0
    %766 = vperm.xlu0 %765, %v647
    %v767 = vpop.permute.xlu0 %766
    %770 = vset.pattern.permute.xlu0 0
    %771 = vperm.xlu0 %770, %v648
    %v772 = vpop.permute.xlu0 %771
    %775 = vset.pattern.permute.xlu0 0
    %776 = vperm.xlu0 %775, %v649
    %v777 = vpop.permute.xlu0 %776
    %780 = vset.pattern.permute.xlu0 0
    %781 = vperm.xlu0 %780, %v650
    %v782 = vpop.permute.xlu0 %781
    %785 = vset.pattern.permute.xlu0 0
    %786 = vperm.xlu0 %785, %v651
    %v787 = vpop.permute.xlu0 %786
    %790 = vset.pattern.permute.xlu0 0
    %791 = vperm.xlu0 %790, %v652
    %v792 = vpop.permute.xlu0 %791
    %795 = vset.pattern.permute.xlu0 0
    %796 = vperm.xlu0 %795, %v653
    %v797 = vpop.permute.xlu0 %796
    %800 = vset.pattern.permute.xlu0 0
    %801 = vperm.xlu0 %800, %v654
    %v802 = vpop.permute.xlu0 %801
    %805 = vset.pattern.permute.xlu0 0
    %806 = vperm.xlu0 %805, %v655
    %v807 = vpop.permute.xlu0 %806
    %810 = vset.pattern.permute.xlu0 0
    %811 = vperm.xlu0 %810, %v656
    %v812 = vpop.permute.xlu0 %811
    %815 = vset.pattern.permute.xlu0 0
    %816 = vperm.xlu0 %815, %v657
    %v817 = vpop.permute.xlu0 %816
    %v819 = vlaneseq
    %v820 = vshrl.u32 %v819, 7
    %v821 = vsub.s32 0, %v820
    %v822 = vrot.slane %v658, %v821
    %v823 = vmul.f32 %v662, %v822
    %v824 = vmul.f32 %v667, %v822
    %v825 = vmul.f32 %v672, %v822
    %v826 = vmul.f32 %v677, %v822
    %v827 = vmul.f32 %v682, %v822
    %v828 = vmul.f32 %v687, %v822
    %v829 = vmul.f32 %v692, %v822
    %v830 = vmul.f32 %v697, %v822
    %v831 = vmul.f32 %v702, %v822
    %v832 = vmul.f32 %v707, %v822
    %v833 = vmul.f32 %v712, %v822
    %v834 = vmul.f32 %v717, %v822
    %v835 = vmul.f32 %v722, %v822
    %v836 = vmul.f32 %v727, %v822
    %v837 = vmul.f32 %v732, %v822
    %v838 = vmul.f32 %v737, %v822
    %v839 = vmul.f32 %v742, %v822
    %v840 = vmul.f32 %v747, %v822
    %v841 = vmul.f32 %v752, %v822
    %v842 = vmul.f32 %v757, %v822
    %v843 = vmul.f32 %v762, %v822
    %v844 = vmul.f32 %v767, %v822
    %v845 = vmul.f32 %v772, %v822
    %v846 = vmul.f32 %v777, %v822
    %v847 = vmul.f32 %v782, %v822
    %v848 = vmul.f32 %v787, %v822
    %v849 = vmul.f32 %v792, %v822
    %v850 = vmul.f32 %v797, %v822
    %v851 = vmul.f32 %v802, %v822
    %v852 = vmul.f32 %v807, %v822
    %v853 = vmul.f32 %v812, %v822
    %v854 = vmul.f32 %v817, %v822
    %v855 = vadd.f32 %v404, %v823
    %v856 = vadd.f32 %v409, %v824
    %v857 = vadd.f32 %v414, %v825
    %v858 = vadd.f32 %v419, %v826
    %v859 = vadd.f32 %v424, %v827
    %v860 = vadd.f32 %v429, %v828
    %v861 = vadd.f32 %v434, %v829
    %v862 = vadd.f32 %v439, %v830
    %v863 = vadd.f32 %v444, %v831
    %v864 = vadd.f32 %v449, %v832
    %v865 = vadd.f32 %v454, %v833
    %v866 = vadd.f32 %v459, %v834
    %v867 = vadd.f32 %v464, %v835
    %v868 = vadd.f32 %v469, %v836
    %v869 = vadd.f32 %v474, %v837
    %v870 = vadd.f32 %v479, %v838
    %v871 = vadd.f32 %v484, %v839
    %v872 = vadd.f32 %v489, %v840
    %v873 = vadd.f32 %v494, %v841
    %v874 = vadd.f32 %v499, %v842
    %v875 = vadd.f32 %v504, %v843
    %v876 = vadd.f32 %v509, %v844
    %v877 = vadd.f32 %v514, %v845
    %v878 = vadd.f32 %v519, %v846
    %v879 = vadd.f32 %v524, %v847
    %v880 = vadd.f32 %v529, %v848
    %v881 = vadd.f32 %v534, %v849
    %v882 = vadd.f32 %v539, %v850
    %v883 = vadd.f32 %v544, %v851
    %v884 = vadd.f32 %v549, %v852
    %v885 = vadd.f32 %v554, %v853
    %v886 = vadd.f32 %v559, %v854
    %vm887 = vcmp.eq.f32.partialorder %v201, 1.0
    %vm888 = vcmp.eq.f32.partialorder %v202, 1.0
    %vm889 = vcmp.eq.f32.partialorder %v203, 1.0
    %vm890 = vcmp.eq.f32.partialorder %v204, 1.0
    %vm891 = vcmp.eq.f32.partialorder %v205, 1.0
    %vm892 = vcmp.eq.f32.partialorder %v206, 1.0
    %vm893 = vcmp.eq.f32.partialorder %v207, 1.0
    %vm894 = vcmp.eq.f32.partialorder %v208, 1.0
    %vm895 = vcmp.eq.f32.partialorder %v209, 1.0
    %vm896 = vcmp.eq.f32.partialorder %v210, 1.0
    %vm897 = vcmp.eq.f32.partialorder %v211, 1.0
    %vm898 = vcmp.eq.f32.partialorder %v212, 1.0
    %vm899 = vcmp.eq.f32.partialorder %v213, 1.0
    %vm900 = vcmp.eq.f32.partialorder %v214, 1.0
    %vm901 = vcmp.eq.f32.partialorder %v215, 1.0
    %vm902 = vcmp.eq.f32.partialorder %v216, 1.0
    %vm903 = vcmp.eq.f32.partialorder %v217, 1.0
    %vm904 = vcmp.eq.f32.partialorder %v218, 1.0
    %vm905 = vcmp.eq.f32.partialorder %v219, 1.0
    %vm906 = vcmp.eq.f32.partialorder %v220, 1.0
    %vm907 = vcmp.eq.f32.partialorder %v221, 1.0
    %vm908 = vcmp.eq.f32.partialorder %v222, 1.0
    %vm909 = vcmp.eq.f32.partialorder %v223, 1.0
    %vm910 = vcmp.eq.f32.partialorder %v224, 1.0
    %vm911 = vcmp.eq.f32.partialorder %v225, 1.0
    %vm912 = vcmp.eq.f32.partialorder %v226, 1.0
    %vm913 = vcmp.eq.f32.partialorder %v227, 1.0
    %vm914 = vcmp.eq.f32.partialorder %v228, 1.0
    %vm915 = vcmp.eq.f32.partialorder %v229, 1.0
    %vm916 = vcmp.eq.f32.partialorder %v230, 1.0
    %vm917 = vcmp.eq.f32.partialorder %v231, 1.0
    %vm918 = vcmp.eq.f32.partialorder %v232, 1.0
    %v919 = vsel %vm887, 1, 0
    %v920 = vsel %vm888, 1, 0
    %v921 = vsel %vm889, 1, 0
    %v922 = vsel %vm890, 1, 0
    %v923 = vsel %vm891, 1, 0
    %v924 = vsel %vm892, 1, 0
    %v925 = vsel %vm893, 1, 0
    %v926 = vsel %vm894, 1, 0
    %v927 = vsel %vm895, 1, 0
    %v928 = vsel %vm896, 1, 0
    %v929 = vsel %vm897, 1, 0
    %v930 = vsel %vm898, 1, 0
    %v931 = vsel %vm899, 1, 0
    %v932 = vsel %vm900, 1, 0
    %v933 = vsel %vm901, 1, 0
    %v934 = vsel %vm902, 1, 0
    %v935 = vsel %vm903, 1, 0
    %v936 = vsel %vm904, 1, 0
    %v937 = vsel %vm905, 1, 0
    %v938 = vsel %vm906, 1, 0
    %v939 = vsel %vm907, 1, 0
    %v940 = vsel %vm908, 1, 0
    %v941 = vsel %vm909, 1, 0
    %v942 = vsel %vm910, 1, 0
    %v943 = vsel %vm911, 1, 0
    %v944 = vsel %vm912, 1, 0
    %v945 = vsel %vm913, 1, 0
    %v946 = vsel %vm914, 1, 0
    %v947 = vsel %vm915, 1, 0
    %v948 = vsel %vm916, 1, 0
    %v949 = vsel %vm917, 1, 0
    %v950 = vsel %vm918, 1, 0
    %v951 = vcvt.s32.f32 %v919
    %v952 = vcvt.s32.f32 %v920
    %v953 = vcvt.s32.f32 %v921
    %v954 = vcvt.s32.f32 %v922
    %v955 = vcvt.s32.f32 %v923
    %v956 = vcvt.s32.f32 %v924
    %v957 = vcvt.s32.f32 %v925
    %v958 = vcvt.s32.f32 %v926
    %v959 = vcvt.s32.f32 %v927
    %v960 = vcvt.s32.f32 %v928
    %v961 = vcvt.s32.f32 %v929
    %v962 = vcvt.s32.f32 %v930
    %v963 = vcvt.s32.f32 %v931
    %v964 = vcvt.s32.f32 %v932
    %v965 = vcvt.s32.f32 %v933
    %v966 = vcvt.s32.f32 %v934
    %v967 = vcvt.s32.f32 %v935
    %v968 = vcvt.s32.f32 %v936
    %v969 = vcvt.s32.f32 %v937
    %v970 = vcvt.s32.f32 %v938
    %v971 = vcvt.s32.f32 %v939
    %v972 = vcvt.s32.f32 %v940
    %v973 = vcvt.s32.f32 %v941
    %v974 = vcvt.s32.f32 %v942
    %v975 = vcvt.s32.f32 %v943
    %v976 = vcvt.s32.f32 %v944
    %v977 = vcvt.s32.f32 %v945
    %v978 = vcvt.s32.f32 %v946
    %v979 = vcvt.s32.f32 %v947
    %v980 = vcvt.s32.f32 %v948
    %v981 = vcvt.s32.f32 %v949
    %v982 = vcvt.s32.f32 %v950
    %v983 = vld [vmem:[%s2 + $0x1] sm:$0x1]
    %985 = vset.pattern.permute.xlu0 0
    %986 = vperm.xlu0 %985, %v951
    %v987 = vpop.permute.xlu0 %986
    %990 = vset.pattern.permute.xlu0 0
    %991 = vperm.xlu0 %990, %v952
    %v992 = vpop.permute.xlu0 %991
    %995 = vset.pattern.permute.xlu0 0
    %996 = vperm.xlu0 %995, %v953
    %v997 = vpop.permute.xlu0 %996
    %1000 = vset.pattern.permute.xlu0 0
    %1001 = vperm.xlu0 %1000, %v954
    %v1002 = vpop.permute.xlu0 %1001
    %1005 = vset.pattern.permute.xlu0 0
    %1006 = vperm.xlu0 %1005, %v955
    %v1007 = vpop.permute.xlu0 %1006
    %1010 = vset.pattern.permute.xlu0 0
    %1011 = vperm.xlu0 %1010, %v956
    %v1012 = vpop.permute.xlu0 %1011
    %1015 = vset.pattern.permute.xlu0 0
    %1016 = vperm.xlu0 %1015, %v957
    %v1017 = vpop.permute.xlu0 %1016
    %1020 = vset.pattern.permute.xlu0 0
    %1021 = vperm.xlu0 %1020, %v958
    %v1022 = vpop.permute.xlu0 %1021
    %1025 = vset.pattern.permute.xlu0 0
    %1026 = vperm.xlu0 %1025, %v959
    %v1027 = vpop.permute.xlu0 %1026
    %1030 = vset.pattern.permute.xlu0 0
    %1031 = vperm.xlu0 %1030, %v960
    %v1032 = vpop.permute.xlu0 %1031
    %1035 = vset.pattern.permute.xlu0 0
    %1036 = vperm.xlu0 %1035, %v961
    %v1037 = vpop.permute.xlu0 %1036
    %1040 = vset.pattern.permute.xlu0 0
    %1041 = vperm.xlu0 %1040, %v962
    %v1042 = vpop.permute.xlu0 %1041
    %1045 = vset.pattern.permute.xlu0 0
    %1046 = vperm.xlu0 %1045, %v963
    %v1047 = vpop.permute.xlu0 %1046
    %1050 = vset.pattern.permute.xlu0 0
    %1051 = vperm.xlu0 %1050, %v964
    %v1052 = vpop.permute.xlu0 %1051
    %1055 = vset.pattern.permute.xlu0 0
    %1056 = vperm.xlu0 %1055, %v965
    %v1057 = vpop.permute.xlu0 %1056
    %1060 = vset.pattern.permute.xlu0 0
    %1061 = vperm.xlu0 %1060, %v966
    %v1062 = vpop.permute.xlu0 %1061
    %1065 = vset.pattern.permute.xlu0 0
    %1066 = vperm.xlu0 %1065, %v967
    %v1067 = vpop.permute.xlu0 %1066
    %1070 = vset.pattern.permute.xlu0 0
    %1071 = vperm.xlu0 %1070, %v968
    %v1072 = vpop.permute.xlu0 %1071
    %1075 = vset.pattern.permute.xlu0 0
    %1076 = vperm.xlu0 %1075, %v969
    %v1077 = vpop.permute.xlu0 %1076
    %1080 = vset.pattern.permute.xlu0 0
    %1081 = vperm.xlu0 %1080, %v970
    %v1082 = vpop.permute.xlu0 %1081
    %1085 = vset.pattern.permute.xlu0 0
    %1086 = vperm.xlu0 %1085, %v971
    %v1087 = vpop.permute.xlu0 %1086
    %1090 = vset.pattern.permute.xlu0 0
    %1091 = vperm.xlu0 %1090, %v972
    %v1092 = vpop.permute.xlu0 %1091
    %1095 = vset.pattern.permute.xlu0 0
    %1096 = vperm.xlu0 %1095, %v973
    %v1097 = vpop.permute.xlu0 %1096
    %1100 = vset.pattern.permute.xlu0 0
    %1101 = vperm.xlu0 %1100, %v974
    %v1102 = vpop.permute.xlu0 %1101
    %1105 = vset.pattern.permute.xlu0 0
    %1106 = vperm.xlu0 %1105, %v975
    %v1107 = vpop.permute.xlu0 %1106
    %1110 = vset.pattern.permute.xlu0 0
    %1111 = vperm.xlu0 %1110, %v976
    %v1112 = vpop.permute.xlu0 %1111
    %1115 = vset.pattern.permute.xlu0 0
    %1116 = vperm.xlu0 %1115, %v977
    %v1117 = vpop.permute.xlu0 %1116
    %1120 = vset.pattern.permute.xlu0 0
    %1121 = vperm.xlu0 %1120, %v978
    %v1122 = vpop.permute.xlu0 %1121
    %1125 = vset.pattern.permute.xlu0 0
    %1126 = vperm.xlu0 %1125, %v979
    %v1127 = vpop.permute.xlu0 %1126
    %1130 = vset.pattern.permute.xlu0 0
    %1131 = vperm.xlu0 %1130, %v980
    %v1132 = vpop.permute.xlu0 %1131
    %1135 = vset.pattern.permute.xlu0 0
    %1136 = vperm.xlu0 %1135, %v981
    %v1137 = vpop.permute.xlu0 %1136
    %1140 = vset.pattern.permute.xlu0 0
    %1141 = vperm.xlu0 %1140, %v982
    %v1142 = vpop.permute.xlu0 %1141
    %v1144 = vlaneseq
    %v1145 = vshrl.u32 %v1144, 7
    %v1146 = vsub.s32 0, %v1145
    %v1147 = vrot.slane %v983, %v1146
    %v1148 = vmul.f32 %v987, %v1147
    %v1149 = vmul.f32 %v992, %v1147
    %v1150 = vmul.f32 %v997, %v1147
    %v1151 = vmul.f32 %v1002, %v1147
    %v1152 = vmul.f32 %v1007, %v1147
    %v1153 = vmul.f32 %v1012, %v1147
    %v1154 = vmul.f32 %v1017, %v1147
    %v1155 = vmul.f32 %v1022, %v1147
    %v1156 = vmul.f32 %v1027, %v1147
    %v1157 = vmul.f32 %v1032, %v1147
    %v1158 = vmul.f32 %v1037, %v1147
    %v1159 = vmul.f32 %v1042, %v1147
    %v1160 = vmul.f32 %v1047, %v1147
    %v1161 = vmul.f32 %v1052, %v1147
    %v1162 = vmul.f32 %v1057, %v1147
    %v1163 = vmul.f32 %v1062, %v1147
    %v1164 = vmul.f32 %v1067, %v1147
    %v1165 = vmul.f32 %v1072, %v1147
    %v1166 = vmul.f32 %v1077, %v1147
    %v1167 = vmul.f32 %v1082, %v1147
    %v1168 = vmul.f32 %v1087, %v1147
    %v1169 = vmul.f32 %v1092, %v1147
    %v1170 = vmul.f32 %v1097, %v1147
    %v1171 = vmul.f32 %v1102, %v1147
    %v1172 = vmul.f32 %v1107, %v1147
    %v1173 = vmul.f32 %v1112, %v1147
    %v1174 = vmul.f32 %v1117, %v1147
    %v1175 = vmul.f32 %v1122, %v1147
    %v1176 = vmul.f32 %v1127, %v1147
    %v1177 = vmul.f32 %v1132, %v1147
    %v1178 = vmul.f32 %v1137, %v1147
    %v1179 = vmul.f32 %v1142, %v1147
    %v1180 = vadd.f32 %v855, %v1148
    %v1181 = vadd.f32 %v856, %v1149
    %v1182 = vadd.f32 %v857, %v1150
    %v1183 = vadd.f32 %v858, %v1151
    %v1184 = vadd.f32 %v859, %v1152
    %v1185 = vadd.f32 %v860, %v1153
    %v1186 = vadd.f32 %v861, %v1154
    %v1187 = vadd.f32 %v862, %v1155
    %v1188 = vadd.f32 %v863, %v1156
    %v1189 = vadd.f32 %v864, %v1157
    %v1190 = vadd.f32 %v865, %v1158
    %v1191 = vadd.f32 %v866, %v1159
    %v1192 = vadd.f32 %v867, %v1160
    %v1193 = vadd.f32 %v868, %v1161
    %v1194 = vadd.f32 %v869, %v1162
    %v1195 = vadd.f32 %v870, %v1163
    %v1196 = vadd.f32 %v871, %v1164
    %v1197 = vadd.f32 %v872, %v1165
    %v1198 = vadd.f32 %v873, %v1166
    %v1199 = vadd.f32 %v874, %v1167
    %v1200 = vadd.f32 %v875, %v1168
    %v1201 = vadd.f32 %v876, %v1169
    %v1202 = vadd.f32 %v877, %v1170
    %v1203 = vadd.f32 %v878, %v1171
    %v1204 = vadd.f32 %v879, %v1172
    %v1205 = vadd.f32 %v880, %v1173
    %v1206 = vadd.f32 %v881, %v1174
    %v1207 = vadd.f32 %v882, %v1175
    %v1208 = vadd.f32 %v883, %v1176
    %v1209 = vadd.f32 %v884, %v1177
    %v1210 = vadd.f32 %v885, %v1178
    %v1211 = vadd.f32 %v886, %v1179
    %vm1212 = vcmp.eq.f32.partialorder %v201, 2.0
    %vm1213 = vcmp.eq.f32.partialorder %v202, 2.0
    %vm1214 = vcmp.eq.f32.partialorder %v203, 2.0
    %vm1215 = vcmp.eq.f32.partialorder %v204, 2.0
    %vm1216 = vcmp.eq.f32.partialorder %v205, 2.0
    %vm1217 = vcmp.eq.f32.partialorder %v206, 2.0
    %vm1218 = vcmp.eq.f32.partialorder %v207, 2.0
    %vm1219 = vcmp.eq.f32.partialorder %v208, 2.0
    %vm1220 = vcmp.eq.f32.partialorder %v209, 2.0
    %vm1221 = vcmp.eq.f32.partialorder %v210, 2.0
    %vm1222 = vcmp.eq.f32.partialorder %v211, 2.0
    %vm1223 = vcmp.eq.f32.partialorder %v212, 2.0
    %vm1224 = vcmp.eq.f32.partialorder %v213, 2.0
    %vm1225 = vcmp.eq.f32.partialorder %v214, 2.0
    %vm1226 = vcmp.eq.f32.partialorder %v215, 2.0
    %vm1227 = vcmp.eq.f32.partialorder %v216, 2.0
    %vm1228 = vcmp.eq.f32.partialorder %v217, 2.0
    %vm1229 = vcmp.eq.f32.partialorder %v218, 2.0
    %vm1230 = vcmp.eq.f32.partialorder %v219, 2.0
    %vm1231 = vcmp.eq.f32.partialorder %v220, 2.0
    %vm1232 = vcmp.eq.f32.partialorder %v221, 2.0
    %vm1233 = vcmp.eq.f32.partialorder %v222, 2.0
    %vm1234 = vcmp.eq.f32.partialorder %v223, 2.0
    %vm1235 = vcmp.eq.f32.partialorder %v224, 2.0
    %vm1236 = vcmp.eq.f32.partialorder %v225, 2.0
    %vm1237 = vcmp.eq.f32.partialorder %v226, 2.0
    %vm1238 = vcmp.eq.f32.partialorder %v227, 2.0
    %vm1239 = vcmp.eq.f32.partialorder %v228, 2.0
    %vm1240 = vcmp.eq.f32.partialorder %v229, 2.0
    %vm1241 = vcmp.eq.f32.partialorder %v230, 2.0
    %vm1242 = vcmp.eq.f32.partialorder %v231, 2.0
    %vm1243 = vcmp.eq.f32.partialorder %v232, 2.0
    %v1244 = vsel %vm1212, 1, 0
    %v1245 = vsel %vm1213, 1, 0
    %v1246 = vsel %vm1214, 1, 0
    %v1247 = vsel %vm1215, 1, 0
    %v1248 = vsel %vm1216, 1, 0
    %v1249 = vsel %vm1217, 1, 0
    %v1250 = vsel %vm1218, 1, 0
    %v1251 = vsel %vm1219, 1, 0
    %v1252 = vsel %vm1220, 1, 0
    %v1253 = vsel %vm1221, 1, 0
    %v1254 = vsel %vm1222, 1, 0
    %v1255 = vsel %vm1223, 1, 0
    %v1256 = vsel %vm1224, 1, 0
    %v1257 = vsel %vm1225, 1, 0
    %v1258 = vsel %vm1226, 1, 0
    %v1259 = vsel %vm1227, 1, 0
    %v1260 = vsel %vm1228, 1, 0
    %v1261 = vsel %vm1229, 1, 0
    %v1262 = vsel %vm1230, 1, 0
    %v1263 = vsel %vm1231, 1, 0
    %v1264 = vsel %vm1232, 1, 0
    %v1265 = vsel %vm1233, 1, 0
    %v1266 = vsel %vm1234, 1, 0
    %v1267 = vsel %vm1235, 1, 0
    %v1268 = vsel %vm1236, 1, 0
    %v1269 = vsel %vm1237, 1, 0
    %v1270 = vsel %vm1238, 1, 0
    %v1271 = vsel %vm1239, 1, 0
    %v1272 = vsel %vm1240, 1, 0
    %v1273 = vsel %vm1241, 1, 0
    %v1274 = vsel %vm1242, 1, 0
    %v1275 = vsel %vm1243, 1, 0
    %v1276 = vcvt.s32.f32 %v1244
    %v1277 = vcvt.s32.f32 %v1245
    %v1278 = vcvt.s32.f32 %v1246
    %v1279 = vcvt.s32.f32 %v1247
    %v1280 = vcvt.s32.f32 %v1248
    %v1281 = vcvt.s32.f32 %v1249
    %v1282 = vcvt.s32.f32 %v1250
    %v1283 = vcvt.s32.f32 %v1251
    %v1284 = vcvt.s32.f32 %v1252
    %v1285 = vcvt.s32.f32 %v1253
    %v1286 = vcvt.s32.f32 %v1254
    %v1287 = vcvt.s32.f32 %v1255
    %v1288 = vcvt.s32.f32 %v1256
    %v1289 = vcvt.s32.f32 %v1257
    %v1290 = vcvt.s32.f32 %v1258
    %v1291 = vcvt.s32.f32 %v1259
    %v1292 = vcvt.s32.f32 %v1260
    %v1293 = vcvt.s32.f32 %v1261
    %v1294 = vcvt.s32.f32 %v1262
    %v1295 = vcvt.s32.f32 %v1263
    %v1296 = vcvt.s32.f32 %v1264
    %v1297 = vcvt.s32.f32 %v1265
    %v1298 = vcvt.s32.f32 %v1266
    %v1299 = vcvt.s32.f32 %v1267
    %v1300 = vcvt.s32.f32 %v1268
    %v1301 = vcvt.s32.f32 %v1269
    %v1302 = vcvt.s32.f32 %v1270
    %v1303 = vcvt.s32.f32 %v1271
    %v1304 = vcvt.s32.f32 %v1272
    %v1305 = vcvt.s32.f32 %v1273
    %v1306 = vcvt.s32.f32 %v1274
    %v1307 = vcvt.s32.f32 %v1275
    %v1308 = vld [vmem:[%s2 + $0x2] sm:$0x1]
    %1310 = vset.pattern.permute.xlu0 0
    %1311 = vperm.xlu0 %1310, %v1276
    %v1312 = vpop.permute.xlu0 %1311
    %1315 = vset.pattern.permute.xlu0 0
    %1316 = vperm.xlu0 %1315, %v1277
    %v1317 = vpop.permute.xlu0 %1316
    %1320 = vset.pattern.permute.xlu0 0
    %1321 = vperm.xlu0 %1320, %v1278
    %v1322 = vpop.permute.xlu0 %1321
    %1325 = vset.pattern.permute.xlu0 0
    %1326 = vperm.xlu0 %1325, %v1279
    %v1327 = vpop.permute.xlu0 %1326
    %1330 = vset.pattern.permute.xlu0 0
    %1331 = vperm.xlu0 %1330, %v1280
    %v1332 = vpop.permute.xlu0 %1331
    %1335 = vset.pattern.permute.xlu0 0
    %1336 = vperm.xlu0 %1335, %v1281
    %v1337 = vpop.permute.xlu0 %1336
    %1340 = vset.pattern.permute.xlu0 0
    %1341 = vperm.xlu0 %1340, %v1282
    %v1342 = vpop.permute.xlu0 %1341
    %1345 = vset.pattern.permute.xlu0 0
    %1346 = vperm.xlu0 %1345, %v1283
    %v1347 = vpop.permute.xlu0 %1346
    %1350 = vset.pattern.permute.xlu0 0
    %1351 = vperm.xlu0 %1350, %v1284
    %v1352 = vpop.permute.xlu0 %1351
    %1355 = vset.pattern.permute.xlu0 0
    %1356 = vperm.xlu0 %1355, %v1285
    %v1357 = vpop.permute.xlu0 %1356
    %1360 = vset.pattern.permute.xlu0 0
    %1361 = vperm.xlu0 %1360, %v1286
    %v1362 = vpop.permute.xlu0 %1361
    %1365 = vset.pattern.permute.xlu0 0
    %1366 = vperm.xlu0 %1365, %v1287
    %v1367 = vpop.permute.xlu0 %1366
    %1370 = vset.pattern.permute.xlu0 0
    %1371 = vperm.xlu0 %1370, %v1288
    %v1372 = vpop.permute.xlu0 %1371
    %1375 = vset.pattern.permute.xlu0 0
    %1376 = vperm.xlu0 %1375, %v1289
    %v1377 = vpop.permute.xlu0 %1376
    %1380 = vset.pattern.permute.xlu0 0
    %1381 = vperm.xlu0 %1380, %v1290
    %v1382 = vpop.permute.xlu0 %1381
    %1385 = vset.pattern.permute.xlu0 0
    %1386 = vperm.xlu0 %1385, %v1291
    %v1387 = vpop.permute.xlu0 %1386
    %1390 = vset.pattern.permute.xlu0 0
    %1391 = vperm.xlu0 %1390, %v1292
    %v1392 = vpop.permute.xlu0 %1391
    %1395 = vset.pattern.permute.xlu0 0
    %1396 = vperm.xlu0 %1395, %v1293
    %v1397 = vpop.permute.xlu0 %1396
    %1400 = vset.pattern.permute.xlu0 0
    %1401 = vperm.xlu0 %1400, %v1294
    %v1402 = vpop.permute.xlu0 %1401
    %1405 = vset.pattern.permute.xlu0 0
    %1406 = vperm.xlu0 %1405, %v1295
    %v1407 = vpop.permute.xlu0 %1406
    %1410 = vset.pattern.permute.xlu0 0
    %1411 = vperm.xlu0 %1410, %v1296
    %v1412 = vpop.permute.xlu0 %1411
    %1415 = vset.pattern.permute.xlu0 0
    %1416 = vperm.xlu0 %1415, %v1297
    %v1417 = vpop.permute.xlu0 %1416
    %1420 = vset.pattern.permute.xlu0 0
    %1421 = vperm.xlu0 %1420, %v1298
    %v1422 = vpop.permute.xlu0 %1421
    %1425 = vset.pattern.permute.xlu0 0
    %1426 = vperm.xlu0 %1425, %v1299
    %v1427 = vpop.permute.xlu0 %1426
    %1430 = vset.pattern.permute.xlu0 0
    %1431 = vperm.xlu0 %1430, %v1300
    %v1432 = vpop.permute.xlu0 %1431
    %1435 = vset.pattern.permute.xlu0 0
    %1436 = vperm.xlu0 %1435, %v1301
    %v1437 = vpop.permute.xlu0 %1436
    %1440 = vset.pattern.permute.xlu0 0
    %1441 = vperm.xlu0 %1440, %v1302
    %v1442 = vpop.permute.xlu0 %1441
    %1445 = vset.pattern.permute.xlu0 0
    %1446 = vperm.xlu0 %1445, %v1303
    %v1447 = vpop.permute.xlu0 %1446
    %1450 = vset.pattern.permute.xlu0 0
    %1451 = vperm.xlu0 %1450, %v1304
    %v1452 = vpop.permute.xlu0 %1451
    %1455 = vset.pattern.permute.xlu0 0
    %1456 = vperm.xlu0 %1455, %v1305
    %v1457 = vpop.permute.xlu0 %1456
    %1460 = vset.pattern.permute.xlu0 0
    %1461 = vperm.xlu0 %1460, %v1306
    %v1462 = vpop.permute.xlu0 %1461
    %1465 = vset.pattern.permute.xlu0 0
    %1466 = vperm.xlu0 %1465, %v1307
    %v1467 = vpop.permute.xlu0 %1466
    %v1469 = vlaneseq
    %v1470 = vshrl.u32 %v1469, 7
    %v1471 = vsub.s32 0, %v1470
    %v1472 = vrot.slane %v1308, %v1471
    %v1473 = vmul.f32 %v1312, %v1472
    %v1474 = vmul.f32 %v1317, %v1472
    %v1475 = vmul.f32 %v1322, %v1472
    %v1476 = vmul.f32 %v1327, %v1472
    %v1477 = vmul.f32 %v1332, %v1472
    %v1478 = vmul.f32 %v1337, %v1472
    %v1479 = vmul.f32 %v1342, %v1472
    %v1480 = vmul.f32 %v1347, %v1472
    %v1481 = vmul.f32 %v1352, %v1472
    %v1482 = vmul.f32 %v1357, %v1472
    %v1483 = vmul.f32 %v1362, %v1472
    %v1484 = vmul.f32 %v1367, %v1472
    %v1485 = vmul.f32 %v1372, %v1472
    %v1486 = vmul.f32 %v1377, %v1472
    %v1487 = vmul.f32 %v1382, %v1472
    %v1488 = vmul.f32 %v1387, %v1472
    %v1489 = vmul.f32 %v1392, %v1472
    %v1490 = vmul.f32 %v1397, %v1472
    %v1491 = vmul.f32 %v1402, %v1472
    %v1492 = vmul.f32 %v1407, %v1472
    %v1493 = vmul.f32 %v1412, %v1472
    %v1494 = vmul.f32 %v1417, %v1472
    %v1495 = vmul.f32 %v1422, %v1472
    %v1496 = vmul.f32 %v1427, %v1472
    %v1497 = vmul.f32 %v1432, %v1472
    %v1498 = vmul.f32 %v1437, %v1472
    %v1499 = vmul.f32 %v1442, %v1472
    %v1500 = vmul.f32 %v1447, %v1472
    %v1501 = vmul.f32 %v1452, %v1472
    %v1502 = vmul.f32 %v1457, %v1472
    %v1503 = vmul.f32 %v1462, %v1472
    %v1504 = vmul.f32 %v1467, %v1472
    %v1505 = vadd.f32 %v1180, %v1473
    %v1506 = vadd.f32 %v1181, %v1474
    %v1507 = vadd.f32 %v1182, %v1475
    %v1508 = vadd.f32 %v1183, %v1476
    %v1509 = vadd.f32 %v1184, %v1477
    %v1510 = vadd.f32 %v1185, %v1478
    %v1511 = vadd.f32 %v1186, %v1479
    %v1512 = vadd.f32 %v1187, %v1480
    %v1513 = vadd.f32 %v1188, %v1481
    %v1514 = vadd.f32 %v1189, %v1482
    %v1515 = vadd.f32 %v1190, %v1483
    %v1516 = vadd.f32 %v1191, %v1484
    %v1517 = vadd.f32 %v1192, %v1485
    %v1518 = vadd.f32 %v1193, %v1486
    %v1519 = vadd.f32 %v1194, %v1487
    %v1520 = vadd.f32 %v1195, %v1488
    %v1521 = vadd.f32 %v1196, %v1489
    %v1522 = vadd.f32 %v1197, %v1490
    %v1523 = vadd.f32 %v1198, %v1491
    %v1524 = vadd.f32 %v1199, %v1492
    %v1525 = vadd.f32 %v1200, %v1493
    %v1526 = vadd.f32 %v1201, %v1494
    %v1527 = vadd.f32 %v1202, %v1495
    %v1528 = vadd.f32 %v1203, %v1496
    %v1529 = vadd.f32 %v1204, %v1497
    %v1530 = vadd.f32 %v1205, %v1498
    %v1531 = vadd.f32 %v1206, %v1499
    %v1532 = vadd.f32 %v1207, %v1500
    %v1533 = vadd.f32 %v1208, %v1501
    %v1534 = vadd.f32 %v1209, %v1502
    %v1535 = vadd.f32 %v1210, %v1503
    %v1536 = vadd.f32 %v1211, %v1504
    %vm1537 = vcmp.eq.f32.partialorder %v201, 3.0
    %vm1538 = vcmp.eq.f32.partialorder %v202, 3.0
    %vm1539 = vcmp.eq.f32.partialorder %v203, 3.0
    %vm1540 = vcmp.eq.f32.partialorder %v204, 3.0
    %vm1541 = vcmp.eq.f32.partialorder %v205, 3.0
    %vm1542 = vcmp.eq.f32.partialorder %v206, 3.0
    %vm1543 = vcmp.eq.f32.partialorder %v207, 3.0
    %vm1544 = vcmp.eq.f32.partialorder %v208, 3.0
    %vm1545 = vcmp.eq.f32.partialorder %v209, 3.0
    %vm1546 = vcmp.eq.f32.partialorder %v210, 3.0
    %vm1547 = vcmp.eq.f32.partialorder %v211, 3.0
    %vm1548 = vcmp.eq.f32.partialorder %v212, 3.0
    %vm1549 = vcmp.eq.f32.partialorder %v213, 3.0
    %vm1550 = vcmp.eq.f32.partialorder %v214, 3.0
    %vm1551 = vcmp.eq.f32.partialorder %v215, 3.0
    %vm1552 = vcmp.eq.f32.partialorder %v216, 3.0
    %vm1553 = vcmp.eq.f32.partialorder %v217, 3.0
    %vm1554 = vcmp.eq.f32.partialorder %v218, 3.0
    %vm1555 = vcmp.eq.f32.partialorder %v219, 3.0
    %vm1556 = vcmp.eq.f32.partialorder %v220, 3.0
    %vm1557 = vcmp.eq.f32.partialorder %v221, 3.0
    %vm1558 = vcmp.eq.f32.partialorder %v222, 3.0
    %vm1559 = vcmp.eq.f32.partialorder %v223, 3.0
    %vm1560 = vcmp.eq.f32.partialorder %v224, 3.0
    %vm1561 = vcmp.eq.f32.partialorder %v225, 3.0
    %vm1562 = vcmp.eq.f32.partialorder %v226, 3.0
    %vm1563 = vcmp.eq.f32.partialorder %v227, 3.0
    %vm1564 = vcmp.eq.f32.partialorder %v228, 3.0
    %vm1565 = vcmp.eq.f32.partialorder %v229, 3.0
    %vm1566 = vcmp.eq.f32.partialorder %v230, 3.0
    %vm1567 = vcmp.eq.f32.partialorder %v231, 3.0
    %vm1568 = vcmp.eq.f32.partialorder %v232, 3.0
    %v1569 = vsel %vm1537, 1, 0
    %v1570 = vsel %vm1538, 1, 0
    %v1571 = vsel %vm1539, 1, 0
    %v1572 = vsel %vm1540, 1, 0
    %v1573 = vsel %vm1541, 1, 0
    %v1574 = vsel %vm1542, 1, 0
    %v1575 = vsel %vm1543, 1, 0
    %v1576 = vsel %vm1544, 1, 0
    %v1577 = vsel %vm1545, 1, 0
    %v1578 = vsel %vm1546, 1, 0
    %v1579 = vsel %vm1547, 1, 0
    %v1580 = vsel %vm1548, 1, 0
    %v1581 = vsel %vm1549, 1, 0
    %v1582 = vsel %vm1550, 1, 0
    %v1583 = vsel %vm1551, 1, 0
    %v1584 = vsel %vm1552, 1, 0
    %v1585 = vsel %vm1553, 1, 0
    %v1586 = vsel %vm1554, 1, 0
    %v1587 = vsel %vm1555, 1, 0
    %v1588 = vsel %vm1556, 1, 0
    %v1589 = vsel %vm1557, 1, 0
    %v1590 = vsel %vm1558, 1, 0
    %v1591 = vsel %vm1559, 1, 0
    %v1592 = vsel %vm1560, 1, 0
    %v1593 = vsel %vm1561, 1, 0
    %v1594 = vsel %vm1562, 1, 0
    %v1595 = vsel %vm1563, 1, 0
    %v1596 = vsel %vm1564, 1, 0
    %v1597 = vsel %vm1565, 1, 0
    %v1598 = vsel %vm1566, 1, 0
    %v1599 = vsel %vm1567, 1, 0
    %v1600 = vsel %vm1568, 1, 0
    %v1601 = vcvt.s32.f32 %v1569
    %v1602 = vcvt.s32.f32 %v1570
    %v1603 = vcvt.s32.f32 %v1571
    %v1604 = vcvt.s32.f32 %v1572
    %v1605 = vcvt.s32.f32 %v1573
    %v1606 = vcvt.s32.f32 %v1574
    %v1607 = vcvt.s32.f32 %v1575
    %v1608 = vcvt.s32.f32 %v1576
    %v1609 = vcvt.s32.f32 %v1577
    %v1610 = vcvt.s32.f32 %v1578
    %v1611 = vcvt.s32.f32 %v1579
    %v1612 = vcvt.s32.f32 %v1580
    %v1613 = vcvt.s32.f32 %v1581
    %v1614 = vcvt.s32.f32 %v1582
    %v1615 = vcvt.s32.f32 %v1583
    %v1616 = vcvt.s32.f32 %v1584
    %v1617 = vcvt.s32.f32 %v1585
    %v1618 = vcvt.s32.f32 %v1586
    %v1619 = vcvt.s32.f32 %v1587
    %v1620 = vcvt.s32.f32 %v1588
    %v1621 = vcvt.s32.f32 %v1589
    %v1622 = vcvt.s32.f32 %v1590
    %v1623 = vcvt.s32.f32 %v1591
    %v1624 = vcvt.s32.f32 %v1592
    %v1625 = vcvt.s32.f32 %v1593
    %v1626 = vcvt.s32.f32 %v1594
    %v1627 = vcvt.s32.f32 %v1595
    %v1628 = vcvt.s32.f32 %v1596
    %v1629 = vcvt.s32.f32 %v1597
    %v1630 = vcvt.s32.f32 %v1598
    %v1631 = vcvt.s32.f32 %v1599
    %v1632 = vcvt.s32.f32 %v1600
    %v1633 = vld [vmem:[%s2 + $0x3] sm:$0x1]
    %1635 = vset.pattern.permute.xlu0 0
    %1636 = vperm.xlu0 %1635, %v1601
    %v1637 = vpop.permute.xlu0 %1636
    %1640 = vset.pattern.permute.xlu0 0
    %1641 = vperm.xlu0 %1640, %v1602
    %v1642 = vpop.permute.xlu0 %1641
    %1645 = vset.pattern.permute.xlu0 0
    %1646 = vperm.xlu0 %1645, %v1603
    %v1647 = vpop.permute.xlu0 %1646
    %1650 = vset.pattern.permute.xlu0 0
    %1651 = vperm.xlu0 %1650, %v1604
    %v1652 = vpop.permute.xlu0 %1651
    %1655 = vset.pattern.permute.xlu0 0
    %1656 = vperm.xlu0 %1655, %v1605
    %v1657 = vpop.permute.xlu0 %1656
    %1660 = vset.pattern.permute.xlu0 0
    %1661 = vperm.xlu0 %1660, %v1606
    %v1662 = vpop.permute.xlu0 %1661
    %1665 = vset.pattern.permute.xlu0 0
    %1666 = vperm.xlu0 %1665, %v1607
    %v1667 = vpop.permute.xlu0 %1666
    %1670 = vset.pattern.permute.xlu0 0
    %1671 = vperm.xlu0 %1670, %v1608
    %v1672 = vpop.permute.xlu0 %1671
    %1675 = vset.pattern.permute.xlu0 0
    %1676 = vperm.xlu0 %1675, %v1609
    %v1677 = vpop.permute.xlu0 %1676
    %1680 = vset.pattern.permute.xlu0 0
    %1681 = vperm.xlu0 %1680, %v1610
    %v1682 = vpop.permute.xlu0 %1681
    %1685 = vset.pattern.permute.xlu0 0
    %1686 = vperm.xlu0 %1685, %v1611
    %v1687 = vpop.permute.xlu0 %1686
    %1690 = vset.pattern.permute.xlu0 0
    %1691 = vperm.xlu0 %1690, %v1612
    %v1692 = vpop.permute.xlu0 %1691
    %1695 = vset.pattern.permute.xlu0 0
    %1696 = vperm.xlu0 %1695, %v1613
    %v1697 = vpop.permute.xlu0 %1696
    %1700 = vset.pattern.permute.xlu0 0
    %1701 = vperm.xlu0 %1700, %v1614
    %v1702 = vpop.permute.xlu0 %1701
    %1705 = vset.pattern.permute.xlu0 0
    %1706 = vperm.xlu0 %1705, %v1615
    %v1707 = vpop.permute.xlu0 %1706
    %1710 = vset.pattern.permute.xlu0 0
    %1711 = vperm.xlu0 %1710, %v1616
    %v1712 = vpop.permute.xlu0 %1711
    %1715 = vset.pattern.permute.xlu0 0
    %1716 = vperm.xlu0 %1715, %v1617
    %v1717 = vpop.permute.xlu0 %1716
    %1720 = vset.pattern.permute.xlu0 0
    %1721 = vperm.xlu0 %1720, %v1618
    %v1722 = vpop.permute.xlu0 %1721
    %1725 = vset.pattern.permute.xlu0 0
    %1726 = vperm.xlu0 %1725, %v1619
    %v1727 = vpop.permute.xlu0 %1726
    %1730 = vset.pattern.permute.xlu0 0
    %1731 = vperm.xlu0 %1730, %v1620
    %v1732 = vpop.permute.xlu0 %1731
    %1735 = vset.pattern.permute.xlu0 0
    %1736 = vperm.xlu0 %1735, %v1621
    %v1737 = vpop.permute.xlu0 %1736
    %1740 = vset.pattern.permute.xlu0 0
    %1741 = vperm.xlu0 %1740, %v1622
    %v1742 = vpop.permute.xlu0 %1741
    %1745 = vset.pattern.permute.xlu0 0
    %1746 = vperm.xlu0 %1745, %v1623
    %v1747 = vpop.permute.xlu0 %1746
    %1750 = vset.pattern.permute.xlu0 0
    %1751 = vperm.xlu0 %1750, %v1624
    %v1752 = vpop.permute.xlu0 %1751
    %1755 = vset.pattern.permute.xlu0 0
    %1756 = vperm.xlu0 %1755, %v1625
    %v1757 = vpop.permute.xlu0 %1756
    %1760 = vset.pattern.permute.xlu0 0
    %1761 = vperm.xlu0 %1760, %v1626
    %v1762 = vpop.permute.xlu0 %1761
    %1765 = vset.pattern.permute.xlu0 0
    %1766 = vperm.xlu0 %1765, %v1627
    %v1767 = vpop.permute.xlu0 %1766
    %1770 = vset.pattern.permute.xlu0 0
    %1771 = vperm.xlu0 %1770, %v1628
    %v1772 = vpop.permute.xlu0 %1771
    %1775 = vset.pattern.permute.xlu0 0
    %1776 = vperm.xlu0 %1775, %v1629
    %v1777 = vpop.permute.xlu0 %1776
    %1780 = vset.pattern.permute.xlu0 0
    %1781 = vperm.xlu0 %1780, %v1630
    %v1782 = vpop.permute.xlu0 %1781
    %1785 = vset.pattern.permute.xlu0 0
    %1786 = vperm.xlu0 %1785, %v1631
    %v1787 = vpop.permute.xlu0 %1786
    %1790 = vset.pattern.permute.xlu0 0
    %1791 = vperm.xlu0 %1790, %v1632
    %v1792 = vpop.permute.xlu0 %1791
    %v1794 = vlaneseq
    %v1795 = vshrl.u32 %v1794, 7
    %v1796 = vsub.s32 0, %v1795
    %v1797 = vrot.slane %v1633, %v1796
    %v1798 = vmul.f32 %v1637, %v1797
    %v1799 = vmul.f32 %v1642, %v1797
    %v1800 = vmul.f32 %v1647, %v1797
    %v1801 = vmul.f32 %v1652, %v1797
    %v1802 = vmul.f32 %v1657, %v1797
    %v1803 = vmul.f32 %v1662, %v1797
    %v1804 = vmul.f32 %v1667, %v1797
    %v1805 = vmul.f32 %v1672, %v1797
    %v1806 = vmul.f32 %v1677, %v1797
    %v1807 = vmul.f32 %v1682, %v1797
    %v1808 = vmul.f32 %v1687, %v1797
    %v1809 = vmul.f32 %v1692, %v1797
    %v1810 = vmul.f32 %v1697, %v1797
    %v1811 = vmul.f32 %v1702, %v1797
    %v1812 = vmul.f32 %v1707, %v1797
    %v1813 = vmul.f32 %v1712, %v1797
    %v1814 = vmul.f32 %v1717, %v1797
    %v1815 = vmul.f32 %v1722, %v1797
    %v1816 = vmul.f32 %v1727, %v1797
    %v1817 = vmul.f32 %v1732, %v1797
    %v1818 = vmul.f32 %v1737, %v1797
    %v1819 = vmul.f32 %v1742, %v1797
    %v1820 = vmul.f32 %v1747, %v1797
    %v1821 = vmul.f32 %v1752, %v1797
    %v1822 = vmul.f32 %v1757, %v1797
    %v1823 = vmul.f32 %v1762, %v1797
    %v1824 = vmul.f32 %v1767, %v1797
    %v1825 = vmul.f32 %v1772, %v1797
    %v1826 = vmul.f32 %v1777, %v1797
    %v1827 = vmul.f32 %v1782, %v1797
    %v1828 = vmul.f32 %v1787, %v1797
    %v1829 = vmul.f32 %v1792, %v1797
    %v1830 = vadd.f32 %v1505, %v1798
    %v1831 = vadd.f32 %v1506, %v1799
    %v1832 = vadd.f32 %v1507, %v1800
    %v1833 = vadd.f32 %v1508, %v1801
    %v1834 = vadd.f32 %v1509, %v1802
    %v1835 = vadd.f32 %v1510, %v1803
    %v1836 = vadd.f32 %v1511, %v1804
    %v1837 = vadd.f32 %v1512, %v1805
    %v1838 = vadd.f32 %v1513, %v1806
    %v1839 = vadd.f32 %v1514, %v1807
    %v1840 = vadd.f32 %v1515, %v1808
    %v1841 = vadd.f32 %v1516, %v1809
    %v1842 = vadd.f32 %v1517, %v1810
    %v1843 = vadd.f32 %v1518, %v1811
    %v1844 = vadd.f32 %v1519, %v1812
    %v1845 = vadd.f32 %v1520, %v1813
    %v1846 = vadd.f32 %v1521, %v1814
    %v1847 = vadd.f32 %v1522, %v1815
    %v1848 = vadd.f32 %v1523, %v1816
    %v1849 = vadd.f32 %v1524, %v1817
    %v1850 = vadd.f32 %v1525, %v1818
    %v1851 = vadd.f32 %v1526, %v1819
    %v1852 = vadd.f32 %v1527, %v1820
    %v1853 = vadd.f32 %v1528, %v1821
    %v1854 = vadd.f32 %v1529, %v1822
    %v1855 = vadd.f32 %v1530, %v1823
    %v1856 = vadd.f32 %v1531, %v1824
    %v1857 = vadd.f32 %v1532, %v1825
    %v1858 = vadd.f32 %v1533, %v1826
    %v1859 = vadd.f32 %v1534, %v1827
    %v1860 = vadd.f32 %v1535, %v1828
    %v1861 = vadd.f32 %v1536, %v1829
    %vm1862 = vcmp.eq.f32.partialorder %v201, 4.0
    %vm1863 = vcmp.eq.f32.partialorder %v202, 4.0
    %vm1864 = vcmp.eq.f32.partialorder %v203, 4.0
    %vm1865 = vcmp.eq.f32.partialorder %v204, 4.0
    %vm1866 = vcmp.eq.f32.partialorder %v205, 4.0
    %vm1867 = vcmp.eq.f32.partialorder %v206, 4.0
    %vm1868 = vcmp.eq.f32.partialorder %v207, 4.0
    %vm1869 = vcmp.eq.f32.partialorder %v208, 4.0
    %vm1870 = vcmp.eq.f32.partialorder %v209, 4.0
    %vm1871 = vcmp.eq.f32.partialorder %v210, 4.0
    %vm1872 = vcmp.eq.f32.partialorder %v211, 4.0
    %vm1873 = vcmp.eq.f32.partialorder %v212, 4.0
    %vm1874 = vcmp.eq.f32.partialorder %v213, 4.0
    %vm1875 = vcmp.eq.f32.partialorder %v214, 4.0
    %vm1876 = vcmp.eq.f32.partialorder %v215, 4.0
    %vm1877 = vcmp.eq.f32.partialorder %v216, 4.0
    %vm1878 = vcmp.eq.f32.partialorder %v217, 4.0
    %vm1879 = vcmp.eq.f32.partialorder %v218, 4.0
    %vm1880 = vcmp.eq.f32.partialorder %v219, 4.0
    %vm1881 = vcmp.eq.f32.partialorder %v220, 4.0
    %vm1882 = vcmp.eq.f32.partialorder %v221, 4.0
    %vm1883 = vcmp.eq.f32.partialorder %v222, 4.0
    %vm1884 = vcmp.eq.f32.partialorder %v223, 4.0
    %vm1885 = vcmp.eq.f32.partialorder %v224, 4.0
    %vm1886 = vcmp.eq.f32.partialorder %v225, 4.0
    %vm1887 = vcmp.eq.f32.partialorder %v226, 4.0
    %vm1888 = vcmp.eq.f32.partialorder %v227, 4.0
    %vm1889 = vcmp.eq.f32.partialorder %v228, 4.0
    %vm1890 = vcmp.eq.f32.partialorder %v229, 4.0
    %vm1891 = vcmp.eq.f32.partialorder %v230, 4.0
    %vm1892 = vcmp.eq.f32.partialorder %v231, 4.0
    %vm1893 = vcmp.eq.f32.partialorder %v232, 4.0
    %v1894 = vsel %vm1862, 1, 0
    %v1895 = vsel %vm1863, 1, 0
    %v1896 = vsel %vm1864, 1, 0
    %v1897 = vsel %vm1865, 1, 0
    %v1898 = vsel %vm1866, 1, 0
    %v1899 = vsel %vm1867, 1, 0
    %v1900 = vsel %vm1868, 1, 0
    %v1901 = vsel %vm1869, 1, 0
    %v1902 = vsel %vm1870, 1, 0
    %v1903 = vsel %vm1871, 1, 0
    %v1904 = vsel %vm1872, 1, 0
    %v1905 = vsel %vm1873, 1, 0
    %v1906 = vsel %vm1874, 1, 0
    %v1907 = vsel %vm1875, 1, 0
    %v1908 = vsel %vm1876, 1, 0
    %v1909 = vsel %vm1877, 1, 0
    %v1910 = vsel %vm1878, 1, 0
    %v1911 = vsel %vm1879, 1, 0
    %v1912 = vsel %vm1880, 1, 0
    %v1913 = vsel %vm1881, 1, 0
    %v1914 = vsel %vm1882, 1, 0
    %v1915 = vsel %vm1883, 1, 0
    %v1916 = vsel %vm1884, 1, 0
    %v1917 = vsel %vm1885, 1, 0
    %v1918 = vsel %vm1886, 1, 0
    %v1919 = vsel %vm1887, 1, 0
    %v1920 = vsel %vm1888, 1, 0
    %v1921 = vsel %vm1889, 1, 0
    %v1922 = vsel %vm1890, 1, 0
    %v1923 = vsel %vm1891, 1, 0
    %v1924 = vsel %vm1892, 1, 0
    %v1925 = vsel %vm1893, 1, 0
    %v1926 = vcvt.s32.f32 %v1894
    %v1927 = vcvt.s32.f32 %v1895
    %v1928 = vcvt.s32.f32 %v1896
    %v1929 = vcvt.s32.f32 %v1897
    %v1930 = vcvt.s32.f32 %v1898
    %v1931 = vcvt.s32.f32 %v1899
    %v1932 = vcvt.s32.f32 %v1900
    %v1933 = vcvt.s32.f32 %v1901
    %v1934 = vcvt.s32.f32 %v1902
    %v1935 = vcvt.s32.f32 %v1903
    %v1936 = vcvt.s32.f32 %v1904
    %v1937 = vcvt.s32.f32 %v1905
    %v1938 = vcvt.s32.f32 %v1906
    %v1939 = vcvt.s32.f32 %v1907
    %v1940 = vcvt.s32.f32 %v1908
    %v1941 = vcvt.s32.f32 %v1909
    %v1942 = vcvt.s32.f32 %v1910
    %v1943 = vcvt.s32.f32 %v1911
    %v1944 = vcvt.s32.f32 %v1912
    %v1945 = vcvt.s32.f32 %v1913
    %v1946 = vcvt.s32.f32 %v1914
    %v1947 = vcvt.s32.f32 %v1915
    %v1948 = vcvt.s32.f32 %v1916
    %v1949 = vcvt.s32.f32 %v1917
    %v1950 = vcvt.s32.f32 %v1918
    %v1951 = vcvt.s32.f32 %v1919
    %v1952 = vcvt.s32.f32 %v1920
    %v1953 = vcvt.s32.f32 %v1921
    %v1954 = vcvt.s32.f32 %v1922
    %v1955 = vcvt.s32.f32 %v1923
    %v1956 = vcvt.s32.f32 %v1924
    %v1957 = vcvt.s32.f32 %v1925
    %v1958 = vld [vmem:[%s2 + $0x4] sm:$0x1]
    %1960 = vset.pattern.permute.xlu0 0
    %1961 = vperm.xlu0 %1960, %v1926
    %v1962 = vpop.permute.xlu0 %1961
    %1965 = vset.pattern.permute.xlu0 0
    %1966 = vperm.xlu0 %1965, %v1927
    %v1967 = vpop.permute.xlu0 %1966
    %1970 = vset.pattern.permute.xlu0 0
    %1971 = vperm.xlu0 %1970, %v1928
    %v1972 = vpop.permute.xlu0 %1971
    %1975 = vset.pattern.permute.xlu0 0
    %1976 = vperm.xlu0 %1975, %v1929
    %v1977 = vpop.permute.xlu0 %1976
    %1980 = vset.pattern.permute.xlu0 0
    %1981 = vperm.xlu0 %1980, %v1930
    %v1982 = vpop.permute.xlu0 %1981
    %1985 = vset.pattern.permute.xlu0 0
    %1986 = vperm.xlu0 %1985, %v1931
    %v1987 = vpop.permute.xlu0 %1986
    %1990 = vset.pattern.permute.xlu0 0
    %1991 = vperm.xlu0 %1990, %v1932
    %v1992 = vpop.permute.xlu0 %1991
    %1995 = vset.pattern.permute.xlu0 0
    %1996 = vperm.xlu0 %1995, %v1933
    %v1997 = vpop.permute.xlu0 %1996
    %2000 = vset.pattern.permute.xlu0 0
    %2001 = vperm.xlu0 %2000, %v1934
    %v2002 = vpop.permute.xlu0 %2001
    %2005 = vset.pattern.permute.xlu0 0
    %2006 = vperm.xlu0 %2005, %v1935
    %v2007 = vpop.permute.xlu0 %2006
    %2010 = vset.pattern.permute.xlu0 0
    %2011 = vperm.xlu0 %2010, %v1936
    %v2012 = vpop.permute.xlu0 %2011
    %2015 = vset.pattern.permute.xlu0 0
    %2016 = vperm.xlu0 %2015, %v1937
    %v2017 = vpop.permute.xlu0 %2016
    %2020 = vset.pattern.permute.xlu0 0
    %2021 = vperm.xlu0 %2020, %v1938
    %v2022 = vpop.permute.xlu0 %2021
    %2025 = vset.pattern.permute.xlu0 0
    %2026 = vperm.xlu0 %2025, %v1939
    %v2027 = vpop.permute.xlu0 %2026
    %2030 = vset.pattern.permute.xlu0 0
    %2031 = vperm.xlu0 %2030, %v1940
    %v2032 = vpop.permute.xlu0 %2031
    %2035 = vset.pattern.permute.xlu0 0
    %2036 = vperm.xlu0 %2035, %v1941
    %v2037 = vpop.permute.xlu0 %2036
    %2040 = vset.pattern.permute.xlu0 0
    %2041 = vperm.xlu0 %2040, %v1942
    %v2042 = vpop.permute.xlu0 %2041
    %2045 = vset.pattern.permute.xlu0 0
    %2046 = vperm.xlu0 %2045, %v1943
    %v2047 = vpop.permute.xlu0 %2046
    %2050 = vset.pattern.permute.xlu0 0
    %2051 = vperm.xlu0 %2050, %v1944
    %v2052 = vpop.permute.xlu0 %2051
    %2055 = vset.pattern.permute.xlu0 0
    %2056 = vperm.xlu0 %2055, %v1945
    %v2057 = vpop.permute.xlu0 %2056
    %2060 = vset.pattern.permute.xlu0 0
    %2061 = vperm.xlu0 %2060, %v1946
    %v2062 = vpop.permute.xlu0 %2061
    %2065 = vset.pattern.permute.xlu0 0
    %2066 = vperm.xlu0 %2065, %v1947
    %v2067 = vpop.permute.xlu0 %2066
    %2070 = vset.pattern.permute.xlu0 0
    %2071 = vperm.xlu0 %2070, %v1948
    %v2072 = vpop.permute.xlu0 %2071
    %2075 = vset.pattern.permute.xlu0 0
    %2076 = vperm.xlu0 %2075, %v1949
    %v2077 = vpop.permute.xlu0 %2076
    %2080 = vset.pattern.permute.xlu0 0
    %2081 = vperm.xlu0 %2080, %v1950
    %v2082 = vpop.permute.xlu0 %2081
    %2085 = vset.pattern.permute.xlu0 0
    %2086 = vperm.xlu0 %2085, %v1951
    %v2087 = vpop.permute.xlu0 %2086
    %2090 = vset.pattern.permute.xlu0 0
    %2091 = vperm.xlu0 %2090, %v1952
    %v2092 = vpop.permute.xlu0 %2091
    %2095 = vset.pattern.permute.xlu0 0
    %2096 = vperm.xlu0 %2095, %v1953
    %v2097 = vpop.permute.xlu0 %2096
    %2100 = vset.pattern.permute.xlu0 0
    %2101 = vperm.xlu0 %2100, %v1954
    %v2102 = vpop.permute.xlu0 %2101
    %2105 = vset.pattern.permute.xlu0 0
    %2106 = vperm.xlu0 %2105, %v1955
    %v2107 = vpop.permute.xlu0 %2106
    %2110 = vset.pattern.permute.xlu0 0
    %2111 = vperm.xlu0 %2110, %v1956
    %v2112 = vpop.permute.xlu0 %2111
    %2115 = vset.pattern.permute.xlu0 0
    %2116 = vperm.xlu0 %2115, %v1957
    %v2117 = vpop.permute.xlu0 %2116
    %v2119 = vlaneseq
    %v2120 = vshrl.u32 %v2119, 7
    %v2121 = vsub.s32 0, %v2120
    %v2122 = vrot.slane %v1958, %v2121
    %v2123 = vmul.f32 %v1962, %v2122
    %v2124 = vmul.f32 %v1967, %v2122
    %v2125 = vmul.f32 %v1972, %v2122
    %v2126 = vmul.f32 %v1977, %v2122
    %v2127 = vmul.f32 %v1982, %v2122
    %v2128 = vmul.f32 %v1987, %v2122
    %v2129 = vmul.f32 %v1992, %v2122
    %v2130 = vmul.f32 %v1997, %v2122
    %v2131 = vmul.f32 %v2002, %v2122
    %v2132 = vmul.f32 %v2007, %v2122
    %v2133 = vmul.f32 %v2012, %v2122
    %v2134 = vmul.f32 %v2017, %v2122
    %v2135 = vmul.f32 %v2022, %v2122
    %v2136 = vmul.f32 %v2027, %v2122
    %v2137 = vmul.f32 %v2032, %v2122
    %v2138 = vmul.f32 %v2037, %v2122
    %v2139 = vmul.f32 %v2042, %v2122
    %v2140 = vmul.f32 %v2047, %v2122
    %v2141 = vmul.f32 %v2052, %v2122
    %v2142 = vmul.f32 %v2057, %v2122
    %v2143 = vmul.f32 %v2062, %v2122
    %v2144 = vmul.f32 %v2067, %v2122
    %v2145 = vmul.f32 %v2072, %v2122
    %v2146 = vmul.f32 %v2077, %v2122
    %v2147 = vmul.f32 %v2082, %v2122
    %v2148 = vmul.f32 %v2087, %v2122
    %v2149 = vmul.f32 %v2092, %v2122
    %v2150 = vmul.f32 %v2097, %v2122
    %v2151 = vmul.f32 %v2102, %v2122
    %v2152 = vmul.f32 %v2107, %v2122
    %v2153 = vmul.f32 %v2112, %v2122
    %v2154 = vmul.f32 %v2117, %v2122
    %v2155 = vadd.f32 %v1830, %v2123
    %v2156 = vadd.f32 %v1831, %v2124
    %v2157 = vadd.f32 %v1832, %v2125
    %v2158 = vadd.f32 %v1833, %v2126
    %v2159 = vadd.f32 %v1834, %v2127
    %v2160 = vadd.f32 %v1835, %v2128
    %v2161 = vadd.f32 %v1836, %v2129
    %v2162 = vadd.f32 %v1837, %v2130
    %v2163 = vadd.f32 %v1838, %v2131
    %v2164 = vadd.f32 %v1839, %v2132
    %v2165 = vadd.f32 %v1840, %v2133
    %v2166 = vadd.f32 %v1841, %v2134
    %v2167 = vadd.f32 %v1842, %v2135
    %v2168 = vadd.f32 %v1843, %v2136
    %v2169 = vadd.f32 %v1844, %v2137
    %v2170 = vadd.f32 %v1845, %v2138
    %v2171 = vadd.f32 %v1846, %v2139
    %v2172 = vadd.f32 %v1847, %v2140
    %v2173 = vadd.f32 %v1848, %v2141
    %v2174 = vadd.f32 %v1849, %v2142
    %v2175 = vadd.f32 %v1850, %v2143
    %v2176 = vadd.f32 %v1851, %v2144
    %v2177 = vadd.f32 %v1852, %v2145
    %v2178 = vadd.f32 %v1853, %v2146
    %v2179 = vadd.f32 %v1854, %v2147
    %v2180 = vadd.f32 %v1855, %v2148
    %v2181 = vadd.f32 %v1856, %v2149
    %v2182 = vadd.f32 %v1857, %v2150
    %v2183 = vadd.f32 %v1858, %v2151
    %v2184 = vadd.f32 %v1859, %v2152
    %v2185 = vadd.f32 %v1860, %v2153
    %v2186 = vadd.f32 %v1861, %v2154
    %vm2187 = vcmp.eq.f32.partialorder %v201, 5.0
    %vm2188 = vcmp.eq.f32.partialorder %v202, 5.0
    %vm2189 = vcmp.eq.f32.partialorder %v203, 5.0
    %vm2190 = vcmp.eq.f32.partialorder %v204, 5.0
    %vm2191 = vcmp.eq.f32.partialorder %v205, 5.0
    %vm2192 = vcmp.eq.f32.partialorder %v206, 5.0
    %vm2193 = vcmp.eq.f32.partialorder %v207, 5.0
    %vm2194 = vcmp.eq.f32.partialorder %v208, 5.0
    %vm2195 = vcmp.eq.f32.partialorder %v209, 5.0
    %vm2196 = vcmp.eq.f32.partialorder %v210, 5.0
    %vm2197 = vcmp.eq.f32.partialorder %v211, 5.0
    %vm2198 = vcmp.eq.f32.partialorder %v212, 5.0
    %vm2199 = vcmp.eq.f32.partialorder %v213, 5.0
    %vm2200 = vcmp.eq.f32.partialorder %v214, 5.0
    %vm2201 = vcmp.eq.f32.partialorder %v215, 5.0
    %vm2202 = vcmp.eq.f32.partialorder %v216, 5.0
    %vm2203 = vcmp.eq.f32.partialorder %v217, 5.0
    %vm2204 = vcmp.eq.f32.partialorder %v218, 5.0
    %vm2205 = vcmp.eq.f32.partialorder %v219, 5.0
    %vm2206 = vcmp.eq.f32.partialorder %v220, 5.0
    %vm2207 = vcmp.eq.f32.partialorder %v221, 5.0
    %vm2208 = vcmp.eq.f32.partialorder %v222, 5.0
    %vm2209 = vcmp.eq.f32.partialorder %v223, 5.0
    %vm2210 = vcmp.eq.f32.partialorder %v224, 5.0
    %vm2211 = vcmp.eq.f32.partialorder %v225, 5.0
    %vm2212 = vcmp.eq.f32.partialorder %v226, 5.0
    %vm2213 = vcmp.eq.f32.partialorder %v227, 5.0
    %vm2214 = vcmp.eq.f32.partialorder %v228, 5.0
    %vm2215 = vcmp.eq.f32.partialorder %v229, 5.0
    %vm2216 = vcmp.eq.f32.partialorder %v230, 5.0
    %vm2217 = vcmp.eq.f32.partialorder %v231, 5.0
    %vm2218 = vcmp.eq.f32.partialorder %v232, 5.0
    %v2219 = vsel %vm2187, 1, 0
    %v2220 = vsel %vm2188, 1, 0
    %v2221 = vsel %vm2189, 1, 0
    %v2222 = vsel %vm2190, 1, 0
    %v2223 = vsel %vm2191, 1, 0
    %v2224 = vsel %vm2192, 1, 0
    %v2225 = vsel %vm2193, 1, 0
    %v2226 = vsel %vm2194, 1, 0
    %v2227 = vsel %vm2195, 1, 0
    %v2228 = vsel %vm2196, 1, 0
    %v2229 = vsel %vm2197, 1, 0
    %v2230 = vsel %vm2198, 1, 0
    %v2231 = vsel %vm2199, 1, 0
    %v2232 = vsel %vm2200, 1, 0
    %v2233 = vsel %vm2201, 1, 0
    %v2234 = vsel %vm2202, 1, 0
    %v2235 = vsel %vm2203, 1, 0
    %v2236 = vsel %vm2204, 1, 0
    %v2237 = vsel %vm2205, 1, 0
    %v2238 = vsel %vm2206, 1, 0
    %v2239 = vsel %vm2207, 1, 0
    %v2240 = vsel %vm2208, 1, 0
    %v2241 = vsel %vm2209, 1, 0
    %v2242 = vsel %vm2210, 1, 0
    %v2243 = vsel %vm2211, 1, 0
    %v2244 = vsel %vm2212, 1, 0
    %v2245 = vsel %vm2213, 1, 0
    %v2246 = vsel %vm2214, 1, 0
    %v2247 = vsel %vm2215, 1, 0
    %v2248 = vsel %vm2216, 1, 0
    %v2249 = vsel %vm2217, 1, 0
    %v2250 = vsel %vm2218, 1, 0
    %v2251 = vcvt.s32.f32 %v2219
    %v2252 = vcvt.s32.f32 %v2220
    %v2253 = vcvt.s32.f32 %v2221
    %v2254 = vcvt.s32.f32 %v2222
    %v2255 = vcvt.s32.f32 %v2223
    %v2256 = vcvt.s32.f32 %v2224
    %v2257 = vcvt.s32.f32 %v2225
    %v2258 = vcvt.s32.f32 %v2226
    %v2259 = vcvt.s32.f32 %v2227
    %v2260 = vcvt.s32.f32 %v2228
    %v2261 = vcvt.s32.f32 %v2229
    %v2262 = vcvt.s32.f32 %v2230
    %v2263 = vcvt.s32.f32 %v2231
    %v2264 = vcvt.s32.f32 %v2232
    %v2265 = vcvt.s32.f32 %v2233
    %v2266 = vcvt.s32.f32 %v2234
    %v2267 = vcvt.s32.f32 %v2235
    %v2268 = vcvt.s32.f32 %v2236
    %v2269 = vcvt.s32.f32 %v2237
    %v2270 = vcvt.s32.f32 %v2238
    %v2271 = vcvt.s32.f32 %v2239
    %v2272 = vcvt.s32.f32 %v2240
    %v2273 = vcvt.s32.f32 %v2241
    %v2274 = vcvt.s32.f32 %v2242
    %v2275 = vcvt.s32.f32 %v2243
    %v2276 = vcvt.s32.f32 %v2244
    %v2277 = vcvt.s32.f32 %v2245
    %v2278 = vcvt.s32.f32 %v2246
    %v2279 = vcvt.s32.f32 %v2247
    %v2280 = vcvt.s32.f32 %v2248
    %v2281 = vcvt.s32.f32 %v2249
    %v2282 = vcvt.s32.f32 %v2250
    %v2283 = vld [vmem:[%s2 + $0x5] sm:$0x1]
    %2285 = vset.pattern.permute.xlu0 0
    %2286 = vperm.xlu0 %2285, %v2251
    %v2287 = vpop.permute.xlu0 %2286
    %2290 = vset.pattern.permute.xlu0 0
    %2291 = vperm.xlu0 %2290, %v2252
    %v2292 = vpop.permute.xlu0 %2291
    %2295 = vset.pattern.permute.xlu0 0
    %2296 = vperm.xlu0 %2295, %v2253
    %v2297 = vpop.permute.xlu0 %2296
    %2300 = vset.pattern.permute.xlu0 0
    %2301 = vperm.xlu0 %2300, %v2254
    %v2302 = vpop.permute.xlu0 %2301
    %2305 = vset.pattern.permute.xlu0 0
    %2306 = vperm.xlu0 %2305, %v2255
    %v2307 = vpop.permute.xlu0 %2306
    %2310 = vset.pattern.permute.xlu0 0
    %2311 = vperm.xlu0 %2310, %v2256
    %v2312 = vpop.permute.xlu0 %2311
    %2315 = vset.pattern.permute.xlu0 0
    %2316 = vperm.xlu0 %2315, %v2257
    %v2317 = vpop.permute.xlu0 %2316
    %2320 = vset.pattern.permute.xlu0 0
    %2321 = vperm.xlu0 %2320, %v2258
    %v2322 = vpop.permute.xlu0 %2321
    %2325 = vset.pattern.permute.xlu0 0
    %2326 = vperm.xlu0 %2325, %v2259
    %v2327 = vpop.permute.xlu0 %2326
    %2330 = vset.pattern.permute.xlu0 0
    %2331 = vperm.xlu0 %2330, %v2260
    %v2332 = vpop.permute.xlu0 %2331
    %2335 = vset.pattern.permute.xlu0 0
    %2336 = vperm.xlu0 %2335, %v2261
    %v2337 = vpop.permute.xlu0 %2336
    %2340 = vset.pattern.permute.xlu0 0
    %2341 = vperm.xlu0 %2340, %v2262
    %v2342 = vpop.permute.xlu0 %2341
    %2345 = vset.pattern.permute.xlu0 0
    %2346 = vperm.xlu0 %2345, %v2263
    %v2347 = vpop.permute.xlu0 %2346
    %2350 = vset.pattern.permute.xlu0 0
    %2351 = vperm.xlu0 %2350, %v2264
    %v2352 = vpop.permute.xlu0 %2351
    %2355 = vset.pattern.permute.xlu0 0
    %2356 = vperm.xlu0 %2355, %v2265
    %v2357 = vpop.permute.xlu0 %2356
    %2360 = vset.pattern.permute.xlu0 0
    %2361 = vperm.xlu0 %2360, %v2266
    %v2362 = vpop.permute.xlu0 %2361
    %2365 = vset.pattern.permute.xlu0 0
    %2366 = vperm.xlu0 %2365, %v2267
    %v2367 = vpop.permute.xlu0 %2366
    %2370 = vset.pattern.permute.xlu0 0
    %2371 = vperm.xlu0 %2370, %v2268
    %v2372 = vpop.permute.xlu0 %2371
    %2375 = vset.pattern.permute.xlu0 0
    %2376 = vperm.xlu0 %2375, %v2269
    %v2377 = vpop.permute.xlu0 %2376
    %2380 = vset.pattern.permute.xlu0 0
    %2381 = vperm.xlu0 %2380, %v2270
    %v2382 = vpop.permute.xlu0 %2381
    %2385 = vset.pattern.permute.xlu0 0
    %2386 = vperm.xlu0 %2385, %v2271
    %v2387 = vpop.permute.xlu0 %2386
    %2390 = vset.pattern.permute.xlu0 0
    %2391 = vperm.xlu0 %2390, %v2272
    %v2392 = vpop.permute.xlu0 %2391
    %2395 = vset.pattern.permute.xlu0 0
    %2396 = vperm.xlu0 %2395, %v2273
    %v2397 = vpop.permute.xlu0 %2396
    %2400 = vset.pattern.permute.xlu0 0
    %2401 = vperm.xlu0 %2400, %v2274
    %v2402 = vpop.permute.xlu0 %2401
    %2405 = vset.pattern.permute.xlu0 0
    %2406 = vperm.xlu0 %2405, %v2275
    %v2407 = vpop.permute.xlu0 %2406
    %2410 = vset.pattern.permute.xlu0 0
    %2411 = vperm.xlu0 %2410, %v2276
    %v2412 = vpop.permute.xlu0 %2411
    %2415 = vset.pattern.permute.xlu0 0
    %2416 = vperm.xlu0 %2415, %v2277
    %v2417 = vpop.permute.xlu0 %2416
    %2420 = vset.pattern.permute.xlu0 0
    %2421 = vperm.xlu0 %2420, %v2278
    %v2422 = vpop.permute.xlu0 %2421
    %2425 = vset.pattern.permute.xlu0 0
    %2426 = vperm.xlu0 %2425, %v2279
    %v2427 = vpop.permute.xlu0 %2426
    %2430 = vset.pattern.permute.xlu0 0
    %2431 = vperm.xlu0 %2430, %v2280
    %v2432 = vpop.permute.xlu0 %2431
    %2435 = vset.pattern.permute.xlu0 0
    %2436 = vperm.xlu0 %2435, %v2281
    %v2437 = vpop.permute.xlu0 %2436
    %2440 = vset.pattern.permute.xlu0 0
    %2441 = vperm.xlu0 %2440, %v2282
    %v2442 = vpop.permute.xlu0 %2441
    %v2444 = vlaneseq
    %v2445 = vshrl.u32 %v2444, 7
    %v2446 = vsub.s32 0, %v2445
    %v2447 = vrot.slane %v2283, %v2446
    %v2448 = vmul.f32 %v2287, %v2447
    %v2449 = vmul.f32 %v2292, %v2447
    %v2450 = vmul.f32 %v2297, %v2447
    %v2451 = vmul.f32 %v2302, %v2447
    %v2452 = vmul.f32 %v2307, %v2447
    %v2453 = vmul.f32 %v2312, %v2447
    %v2454 = vmul.f32 %v2317, %v2447
    %v2455 = vmul.f32 %v2322, %v2447
    %v2456 = vmul.f32 %v2327, %v2447
    %v2457 = vmul.f32 %v2332, %v2447
    %v2458 = vmul.f32 %v2337, %v2447
    %v2459 = vmul.f32 %v2342, %v2447
    %v2460 = vmul.f32 %v2347, %v2447
    %v2461 = vmul.f32 %v2352, %v2447
    %v2462 = vmul.f32 %v2357, %v2447
    %v2463 = vmul.f32 %v2362, %v2447
    %v2464 = vmul.f32 %v2367, %v2447
    %v2465 = vmul.f32 %v2372, %v2447
    %v2466 = vmul.f32 %v2377, %v2447
    %v2467 = vmul.f32 %v2382, %v2447
    %v2468 = vmul.f32 %v2387, %v2447
    %v2469 = vmul.f32 %v2392, %v2447
    %v2470 = vmul.f32 %v2397, %v2447
    %v2471 = vmul.f32 %v2402, %v2447
    %v2472 = vmul.f32 %v2407, %v2447
    %v2473 = vmul.f32 %v2412, %v2447
    %v2474 = vmul.f32 %v2417, %v2447
    %v2475 = vmul.f32 %v2422, %v2447
    %v2476 = vmul.f32 %v2427, %v2447
    %v2477 = vmul.f32 %v2432, %v2447
    %v2478 = vmul.f32 %v2437, %v2447
    %v2479 = vmul.f32 %v2442, %v2447
    %v2480 = vadd.f32 %v2155, %v2448
    %v2481 = vadd.f32 %v2156, %v2449
    %v2482 = vadd.f32 %v2157, %v2450
    %v2483 = vadd.f32 %v2158, %v2451
    %v2484 = vadd.f32 %v2159, %v2452
    %v2485 = vadd.f32 %v2160, %v2453
    %v2486 = vadd.f32 %v2161, %v2454
    %v2487 = vadd.f32 %v2162, %v2455
    %v2488 = vadd.f32 %v2163, %v2456
    %v2489 = vadd.f32 %v2164, %v2457
    %v2490 = vadd.f32 %v2165, %v2458
    %v2491 = vadd.f32 %v2166, %v2459
    %v2492 = vadd.f32 %v2167, %v2460
    %v2493 = vadd.f32 %v2168, %v2461
    %v2494 = vadd.f32 %v2169, %v2462
    %v2495 = vadd.f32 %v2170, %v2463
    %v2496 = vadd.f32 %v2171, %v2464
    %v2497 = vadd.f32 %v2172, %v2465
    %v2498 = vadd.f32 %v2173, %v2466
    %v2499 = vadd.f32 %v2174, %v2467
    %v2500 = vadd.f32 %v2175, %v2468
    %v2501 = vadd.f32 %v2176, %v2469
    %v2502 = vadd.f32 %v2177, %v2470
    %v2503 = vadd.f32 %v2178, %v2471
    %v2504 = vadd.f32 %v2179, %v2472
    %v2505 = vadd.f32 %v2180, %v2473
    %v2506 = vadd.f32 %v2181, %v2474
    %v2507 = vadd.f32 %v2182, %v2475
    %v2508 = vadd.f32 %v2183, %v2476
    %v2509 = vadd.f32 %v2184, %v2477
    %v2510 = vadd.f32 %v2185, %v2478
    %v2511 = vadd.f32 %v2186, %v2479
    %vm2512 = vcmp.eq.f32.partialorder %v201, 6.0
    %vm2513 = vcmp.eq.f32.partialorder %v202, 6.0
    %vm2514 = vcmp.eq.f32.partialorder %v203, 6.0
    %vm2515 = vcmp.eq.f32.partialorder %v204, 6.0
    %vm2516 = vcmp.eq.f32.partialorder %v205, 6.0
    %vm2517 = vcmp.eq.f32.partialorder %v206, 6.0
    %vm2518 = vcmp.eq.f32.partialorder %v207, 6.0
    %vm2519 = vcmp.eq.f32.partialorder %v208, 6.0
    %vm2520 = vcmp.eq.f32.partialorder %v209, 6.0
    %vm2521 = vcmp.eq.f32.partialorder %v210, 6.0
    %vm2522 = vcmp.eq.f32.partialorder %v211, 6.0
    %vm2523 = vcmp.eq.f32.partialorder %v212, 6.0
    %vm2524 = vcmp.eq.f32.partialorder %v213, 6.0
    %vm2525 = vcmp.eq.f32.partialorder %v214, 6.0
    %vm2526 = vcmp.eq.f32.partialorder %v215, 6.0
    %vm2527 = vcmp.eq.f32.partialorder %v216, 6.0
    %vm2528 = vcmp.eq.f32.partialorder %v217, 6.0
    %vm2529 = vcmp.eq.f32.partialorder %v218, 6.0
    %vm2530 = vcmp.eq.f32.partialorder %v219, 6.0
    %vm2531 = vcmp.eq.f32.partialorder %v220, 6.0
    %vm2532 = vcmp.eq.f32.partialorder %v221, 6.0
    %vm2533 = vcmp.eq.f32.partialorder %v222, 6.0
    %vm2534 = vcmp.eq.f32.partialorder %v223, 6.0
    %vm2535 = vcmp.eq.f32.partialorder %v224, 6.0
    %vm2536 = vcmp.eq.f32.partialorder %v225, 6.0
    %vm2537 = vcmp.eq.f32.partialorder %v226, 6.0
    %vm2538 = vcmp.eq.f32.partialorder %v227, 6.0
    %vm2539 = vcmp.eq.f32.partialorder %v228, 6.0
    %vm2540 = vcmp.eq.f32.partialorder %v229, 6.0
    %vm2541 = vcmp.eq.f32.partialorder %v230, 6.0
    %vm2542 = vcmp.eq.f32.partialorder %v231, 6.0
    %vm2543 = vcmp.eq.f32.partialorder %v232, 6.0
    %v2544 = vsel %vm2512, 1, 0
    %v2545 = vsel %vm2513, 1, 0
    %v2546 = vsel %vm2514, 1, 0
    %v2547 = vsel %vm2515, 1, 0
    %v2548 = vsel %vm2516, 1, 0
    %v2549 = vsel %vm2517, 1, 0
    %v2550 = vsel %vm2518, 1, 0
    %v2551 = vsel %vm2519, 1, 0
    %v2552 = vsel %vm2520, 1, 0
    %v2553 = vsel %vm2521, 1, 0
    %v2554 = vsel %vm2522, 1, 0
    %v2555 = vsel %vm2523, 1, 0
    %v2556 = vsel %vm2524, 1, 0
    %v2557 = vsel %vm2525, 1, 0
    %v2558 = vsel %vm2526, 1, 0
    %v2559 = vsel %vm2527, 1, 0
    %v2560 = vsel %vm2528, 1, 0
    %v2561 = vsel %vm2529, 1, 0
    %v2562 = vsel %vm2530, 1, 0
    %v2563 = vsel %vm2531, 1, 0
    %v2564 = vsel %vm2532, 1, 0
    %v2565 = vsel %vm2533, 1, 0
    %v2566 = vsel %vm2534, 1, 0
    %v2567 = vsel %vm2535, 1, 0
    %v2568 = vsel %vm2536, 1, 0
    %v2569 = vsel %vm2537, 1, 0
    %v2570 = vsel %vm2538, 1, 0
    %v2571 = vsel %vm2539, 1, 0
    %v2572 = vsel %vm2540, 1, 0
    %v2573 = vsel %vm2541, 1, 0
    %v2574 = vsel %vm2542, 1, 0
    %v2575 = vsel %vm2543, 1, 0
    %v2576 = vcvt.s32.f32 %v2544
    %v2577 = vcvt.s32.f32 %v2545
    %v2578 = vcvt.s32.f32 %v2546
    %v2579 = vcvt.s32.f32 %v2547
    %v2580 = vcvt.s32.f32 %v2548
    %v2581 = vcvt.s32.f32 %v2549
    %v2582 = vcvt.s32.f32 %v2550
    %v2583 = vcvt.s32.f32 %v2551
    %v2584 = vcvt.s32.f32 %v2552
    %v2585 = vcvt.s32.f32 %v2553
    %v2586 = vcvt.s32.f32 %v2554
    %v2587 = vcvt.s32.f32 %v2555
    %v2588 = vcvt.s32.f32 %v2556
    %v2589 = vcvt.s32.f32 %v2557
    %v2590 = vcvt.s32.f32 %v2558
    %v2591 = vcvt.s32.f32 %v2559
    %v2592 = vcvt.s32.f32 %v2560
    %v2593 = vcvt.s32.f32 %v2561
    %v2594 = vcvt.s32.f32 %v2562
    %v2595 = vcvt.s32.f32 %v2563
    %v2596 = vcvt.s32.f32 %v2564
    %v2597 = vcvt.s32.f32 %v2565
    %v2598 = vcvt.s32.f32 %v2566
    %v2599 = vcvt.s32.f32 %v2567
    %v2600 = vcvt.s32.f32 %v2568
    %v2601 = vcvt.s32.f32 %v2569
    %v2602 = vcvt.s32.f32 %v2570
    %v2603 = vcvt.s32.f32 %v2571
    %v2604 = vcvt.s32.f32 %v2572
    %v2605 = vcvt.s32.f32 %v2573
    %v2606 = vcvt.s32.f32 %v2574
    %v2607 = vcvt.s32.f32 %v2575
    %v2608 = vld [vmem:[%s2 + $0x6] sm:$0x1]
    %2610 = vset.pattern.permute.xlu0 0
    %2611 = vperm.xlu0 %2610, %v2576
    %v2612 = vpop.permute.xlu0 %2611
    %2615 = vset.pattern.permute.xlu0 0
    %2616 = vperm.xlu0 %2615, %v2577
    %v2617 = vpop.permute.xlu0 %2616
    %2620 = vset.pattern.permute.xlu0 0
    %2621 = vperm.xlu0 %2620, %v2578
    %v2622 = vpop.permute.xlu0 %2621
    %2625 = vset.pattern.permute.xlu0 0
    %2626 = vperm.xlu0 %2625, %v2579
    %v2627 = vpop.permute.xlu0 %2626
    %2630 = vset.pattern.permute.xlu0 0
    %2631 = vperm.xlu0 %2630, %v2580
    %v2632 = vpop.permute.xlu0 %2631
    %2635 = vset.pattern.permute.xlu0 0
    %2636 = vperm.xlu0 %2635, %v2581
    %v2637 = vpop.permute.xlu0 %2636
    %2640 = vset.pattern.permute.xlu0 0
    %2641 = vperm.xlu0 %2640, %v2582
    %v2642 = vpop.permute.xlu0 %2641
    %2645 = vset.pattern.permute.xlu0 0
    %2646 = vperm.xlu0 %2645, %v2583
    %v2647 = vpop.permute.xlu0 %2646
    %2650 = vset.pattern.permute.xlu0 0
    %2651 = vperm.xlu0 %2650, %v2584
    %v2652 = vpop.permute.xlu0 %2651
    %2655 = vset.pattern.permute.xlu0 0
    %2656 = vperm.xlu0 %2655, %v2585
    %v2657 = vpop.permute.xlu0 %2656
    %2660 = vset.pattern.permute.xlu0 0
    %2661 = vperm.xlu0 %2660, %v2586
    %v2662 = vpop.permute.xlu0 %2661
    %2665 = vset.pattern.permute.xlu0 0
    %2666 = vperm.xlu0 %2665, %v2587
    %v2667 = vpop.permute.xlu0 %2666
    %2670 = vset.pattern.permute.xlu0 0
    %2671 = vperm.xlu0 %2670, %v2588
    %v2672 = vpop.permute.xlu0 %2671
    %2675 = vset.pattern.permute.xlu0 0
    %2676 = vperm.xlu0 %2675, %v2589
    %v2677 = vpop.permute.xlu0 %2676
    %2680 = vset.pattern.permute.xlu0 0
    %2681 = vperm.xlu0 %2680, %v2590
    %v2682 = vpop.permute.xlu0 %2681
    %2685 = vset.pattern.permute.xlu0 0
    %2686 = vperm.xlu0 %2685, %v2591
    %v2687 = vpop.permute.xlu0 %2686
    %2690 = vset.pattern.permute.xlu0 0
    %2691 = vperm.xlu0 %2690, %v2592
    %v2692 = vpop.permute.xlu0 %2691
    %2695 = vset.pattern.permute.xlu0 0
    %2696 = vperm.xlu0 %2695, %v2593
    %v2697 = vpop.permute.xlu0 %2696
    %2700 = vset.pattern.permute.xlu0 0
    %2701 = vperm.xlu0 %2700, %v2594
    %v2702 = vpop.permute.xlu0 %2701
    %2705 = vset.pattern.permute.xlu0 0
    %2706 = vperm.xlu0 %2705, %v2595
    %v2707 = vpop.permute.xlu0 %2706
    %2710 = vset.pattern.permute.xlu0 0
    %2711 = vperm.xlu0 %2710, %v2596
    %v2712 = vpop.permute.xlu0 %2711
    %2715 = vset.pattern.permute.xlu0 0
    %2716 = vperm.xlu0 %2715, %v2597
    %v2717 = vpop.permute.xlu0 %2716
    %2720 = vset.pattern.permute.xlu0 0
    %2721 = vperm.xlu0 %2720, %v2598
    %v2722 = vpop.permute.xlu0 %2721
    %2725 = vset.pattern.permute.xlu0 0
    %2726 = vperm.xlu0 %2725, %v2599
    %v2727 = vpop.permute.xlu0 %2726
    %2730 = vset.pattern.permute.xlu0 0
    %2731 = vperm.xlu0 %2730, %v2600
    %v2732 = vpop.permute.xlu0 %2731
    %2735 = vset.pattern.permute.xlu0 0
    %2736 = vperm.xlu0 %2735, %v2601
    %v2737 = vpop.permute.xlu0 %2736
    %2740 = vset.pattern.permute.xlu0 0
    %2741 = vperm.xlu0 %2740, %v2602
    %v2742 = vpop.permute.xlu0 %2741
    %2745 = vset.pattern.permute.xlu0 0
    %2746 = vperm.xlu0 %2745, %v2603
    %v2747 = vpop.permute.xlu0 %2746
    %2750 = vset.pattern.permute.xlu0 0
    %2751 = vperm.xlu0 %2750, %v2604
    %v2752 = vpop.permute.xlu0 %2751
    %2755 = vset.pattern.permute.xlu0 0
    %2756 = vperm.xlu0 %2755, %v2605
    %v2757 = vpop.permute.xlu0 %2756
    %2760 = vset.pattern.permute.xlu0 0
    %2761 = vperm.xlu0 %2760, %v2606
    %v2762 = vpop.permute.xlu0 %2761
    %2765 = vset.pattern.permute.xlu0 0
    %2766 = vperm.xlu0 %2765, %v2607
    %v2767 = vpop.permute.xlu0 %2766
    %v2769 = vlaneseq
    %v2770 = vshrl.u32 %v2769, 7
    %v2771 = vsub.s32 0, %v2770
    %v2772 = vrot.slane %v2608, %v2771
    %v2773 = vmul.f32 %v2612, %v2772
    %v2774 = vmul.f32 %v2617, %v2772
    %v2775 = vmul.f32 %v2622, %v2772
    %v2776 = vmul.f32 %v2627, %v2772
    %v2777 = vmul.f32 %v2632, %v2772
    %v2778 = vmul.f32 %v2637, %v2772
    %v2779 = vmul.f32 %v2642, %v2772
    %v2780 = vmul.f32 %v2647, %v2772
    %v2781 = vmul.f32 %v2652, %v2772
    %v2782 = vmul.f32 %v2657, %v2772
    %v2783 = vmul.f32 %v2662, %v2772
    %v2784 = vmul.f32 %v2667, %v2772
    %v2785 = vmul.f32 %v2672, %v2772
    %v2786 = vmul.f32 %v2677, %v2772
    %v2787 = vmul.f32 %v2682, %v2772
    %v2788 = vmul.f32 %v2687, %v2772
    %v2789 = vmul.f32 %v2692, %v2772
    %v2790 = vmul.f32 %v2697, %v2772
    %v2791 = vmul.f32 %v2702, %v2772
    %v2792 = vmul.f32 %v2707, %v2772
    %v2793 = vmul.f32 %v2712, %v2772
    %v2794 = vmul.f32 %v2717, %v2772
    %v2795 = vmul.f32 %v2722, %v2772
    %v2796 = vmul.f32 %v2727, %v2772
    %v2797 = vmul.f32 %v2732, %v2772
    %v2798 = vmul.f32 %v2737, %v2772
    %v2799 = vmul.f32 %v2742, %v2772
    %v2800 = vmul.f32 %v2747, %v2772
    %v2801 = vmul.f32 %v2752, %v2772
    %v2802 = vmul.f32 %v2757, %v2772
    %v2803 = vmul.f32 %v2762, %v2772
    %v2804 = vmul.f32 %v2767, %v2772
    %v2805 = vadd.f32 %v2480, %v2773
    %v2806 = vadd.f32 %v2481, %v2774
    %v2807 = vadd.f32 %v2482, %v2775
    %v2808 = vadd.f32 %v2483, %v2776
    %v2809 = vadd.f32 %v2484, %v2777
    %v2810 = vadd.f32 %v2485, %v2778
    %v2811 = vadd.f32 %v2486, %v2779
    %v2812 = vadd.f32 %v2487, %v2780
    %v2813 = vadd.f32 %v2488, %v2781
    %v2814 = vadd.f32 %v2489, %v2782
    %v2815 = vadd.f32 %v2490, %v2783
    %v2816 = vadd.f32 %v2491, %v2784
    %v2817 = vadd.f32 %v2492, %v2785
    %v2818 = vadd.f32 %v2493, %v2786
    %v2819 = vadd.f32 %v2494, %v2787
    %v2820 = vadd.f32 %v2495, %v2788
    %v2821 = vadd.f32 %v2496, %v2789
    %v2822 = vadd.f32 %v2497, %v2790
    %v2823 = vadd.f32 %v2498, %v2791
    %v2824 = vadd.f32 %v2499, %v2792
    %v2825 = vadd.f32 %v2500, %v2793
    %v2826 = vadd.f32 %v2501, %v2794
    %v2827 = vadd.f32 %v2502, %v2795
    %v2828 = vadd.f32 %v2503, %v2796
    %v2829 = vadd.f32 %v2504, %v2797
    %v2830 = vadd.f32 %v2505, %v2798
    %v2831 = vadd.f32 %v2506, %v2799
    %v2832 = vadd.f32 %v2507, %v2800
    %v2833 = vadd.f32 %v2508, %v2801
    %v2834 = vadd.f32 %v2509, %v2802
    %v2835 = vadd.f32 %v2510, %v2803
    %v2836 = vadd.f32 %v2511, %v2804
    %vm2837 = vcmp.eq.f32.partialorder %v201, 7.0
    %vm2838 = vcmp.eq.f32.partialorder %v202, 7.0
    %vm2839 = vcmp.eq.f32.partialorder %v203, 7.0
    %vm2840 = vcmp.eq.f32.partialorder %v204, 7.0
    %vm2841 = vcmp.eq.f32.partialorder %v205, 7.0
    %vm2842 = vcmp.eq.f32.partialorder %v206, 7.0
    %vm2843 = vcmp.eq.f32.partialorder %v207, 7.0
    %vm2844 = vcmp.eq.f32.partialorder %v208, 7.0
    %vm2845 = vcmp.eq.f32.partialorder %v209, 7.0
    %vm2846 = vcmp.eq.f32.partialorder %v210, 7.0
    %vm2847 = vcmp.eq.f32.partialorder %v211, 7.0
    %vm2848 = vcmp.eq.f32.partialorder %v212, 7.0
    %vm2849 = vcmp.eq.f32.partialorder %v213, 7.0
    %vm2850 = vcmp.eq.f32.partialorder %v214, 7.0
    %vm2851 = vcmp.eq.f32.partialorder %v215, 7.0
    %vm2852 = vcmp.eq.f32.partialorder %v216, 7.0
    %vm2853 = vcmp.eq.f32.partialorder %v217, 7.0
    %vm2854 = vcmp.eq.f32.partialorder %v218, 7.0
    %vm2855 = vcmp.eq.f32.partialorder %v219, 7.0
    %vm2856 = vcmp.eq.f32.partialorder %v220, 7.0
    %vm2857 = vcmp.eq.f32.partialorder %v221, 7.0
    %vm2858 = vcmp.eq.f32.partialorder %v222, 7.0
    %vm2859 = vcmp.eq.f32.partialorder %v223, 7.0
    %vm2860 = vcmp.eq.f32.partialorder %v224, 7.0
    %vm2861 = vcmp.eq.f32.partialorder %v225, 7.0
    %vm2862 = vcmp.eq.f32.partialorder %v226, 7.0
    %vm2863 = vcmp.eq.f32.partialorder %v227, 7.0
    %vm2864 = vcmp.eq.f32.partialorder %v228, 7.0
    %vm2865 = vcmp.eq.f32.partialorder %v229, 7.0
    %vm2866 = vcmp.eq.f32.partialorder %v230, 7.0
    %vm2867 = vcmp.eq.f32.partialorder %v231, 7.0
    %vm2868 = vcmp.eq.f32.partialorder %v232, 7.0
    %v2869 = vsel %vm2837, 1, 0
    %v2870 = vsel %vm2838, 1, 0
    %v2871 = vsel %vm2839, 1, 0
    %v2872 = vsel %vm2840, 1, 0
    %v2873 = vsel %vm2841, 1, 0
    %v2874 = vsel %vm2842, 1, 0
    %v2875 = vsel %vm2843, 1, 0
    %v2876 = vsel %vm2844, 1, 0
    %v2877 = vsel %vm2845, 1, 0
    %v2878 = vsel %vm2846, 1, 0
    %v2879 = vsel %vm2847, 1, 0
    %v2880 = vsel %vm2848, 1, 0
    %v2881 = vsel %vm2849, 1, 0
    %v2882 = vsel %vm2850, 1, 0
    %v2883 = vsel %vm2851, 1, 0
    %v2884 = vsel %vm2852, 1, 0
    %v2885 = vsel %vm2853, 1, 0
    %v2886 = vsel %vm2854, 1, 0
    %v2887 = vsel %vm2855, 1, 0
    %v2888 = vsel %vm2856, 1, 0
    %v2889 = vsel %vm2857, 1, 0
    %v2890 = vsel %vm2858, 1, 0
    %v2891 = vsel %vm2859, 1, 0
    %v2892 = vsel %vm2860, 1, 0
    %v2893 = vsel %vm2861, 1, 0
    %v2894 = vsel %vm2862, 1, 0
    %v2895 = vsel %vm2863, 1, 0
    %v2896 = vsel %vm2864, 1, 0
    %v2897 = vsel %vm2865, 1, 0
    %v2898 = vsel %vm2866, 1, 0
    %v2899 = vsel %vm2867, 1, 0
    %v2900 = vsel %vm2868, 1, 0
    %v2901 = vcvt.s32.f32 %v2869
    %v2902 = vcvt.s32.f32 %v2870
    %v2903 = vcvt.s32.f32 %v2871
    %v2904 = vcvt.s32.f32 %v2872
    %v2905 = vcvt.s32.f32 %v2873
    %v2906 = vcvt.s32.f32 %v2874
    %v2907 = vcvt.s32.f32 %v2875
    %v2908 = vcvt.s32.f32 %v2876
    %v2909 = vcvt.s32.f32 %v2877
    %v2910 = vcvt.s32.f32 %v2878
    %v2911 = vcvt.s32.f32 %v2879
    %v2912 = vcvt.s32.f32 %v2880
    %v2913 = vcvt.s32.f32 %v2881
    %v2914 = vcvt.s32.f32 %v2882
    %v2915 = vcvt.s32.f32 %v2883
    %v2916 = vcvt.s32.f32 %v2884
    %v2917 = vcvt.s32.f32 %v2885
    %v2918 = vcvt.s32.f32 %v2886
    %v2919 = vcvt.s32.f32 %v2887
    %v2920 = vcvt.s32.f32 %v2888
    %v2921 = vcvt.s32.f32 %v2889
    %v2922 = vcvt.s32.f32 %v2890
    %v2923 = vcvt.s32.f32 %v2891
    %v2924 = vcvt.s32.f32 %v2892
    %v2925 = vcvt.s32.f32 %v2893
    %v2926 = vcvt.s32.f32 %v2894
    %v2927 = vcvt.s32.f32 %v2895
    %v2928 = vcvt.s32.f32 %v2896
    %v2929 = vcvt.s32.f32 %v2897
    %v2930 = vcvt.s32.f32 %v2898
    %v2931 = vcvt.s32.f32 %v2899
    %v2932 = vcvt.s32.f32 %v2900
    %v2933 = vld [vmem:[%s2 + $0x7] sm:$0x1]
    %2935 = vset.pattern.permute.xlu0 0
    %2936 = vperm.xlu0 %2935, %v2901
    %v2937 = vpop.permute.xlu0 %2936
    %2940 = vset.pattern.permute.xlu0 0
    %2941 = vperm.xlu0 %2940, %v2902
    %v2942 = vpop.permute.xlu0 %2941
    %2945 = vset.pattern.permute.xlu0 0
    %2946 = vperm.xlu0 %2945, %v2903
    %v2947 = vpop.permute.xlu0 %2946
    %2950 = vset.pattern.permute.xlu0 0
    %2951 = vperm.xlu0 %2950, %v2904
    %v2952 = vpop.permute.xlu0 %2951
    %2955 = vset.pattern.permute.xlu0 0
    %2956 = vperm.xlu0 %2955, %v2905
    %v2957 = vpop.permute.xlu0 %2956
    %2960 = vset.pattern.permute.xlu0 0
    %2961 = vperm.xlu0 %2960, %v2906
    %v2962 = vpop.permute.xlu0 %2961
    %2965 = vset.pattern.permute.xlu0 0
    %2966 = vperm.xlu0 %2965, %v2907
    %v2967 = vpop.permute.xlu0 %2966
    %2970 = vset.pattern.permute.xlu0 0
    %2971 = vperm.xlu0 %2970, %v2908
    %v2972 = vpop.permute.xlu0 %2971
    %2975 = vset.pattern.permute.xlu0 0
    %2976 = vperm.xlu0 %2975, %v2909
    %v2977 = vpop.permute.xlu0 %2976
    %2980 = vset.pattern.permute.xlu0 0
    %2981 = vperm.xlu0 %2980, %v2910
    %v2982 = vpop.permute.xlu0 %2981
    %2985 = vset.pattern.permute.xlu0 0
    %2986 = vperm.xlu0 %2985, %v2911
    %v2987 = vpop.permute.xlu0 %2986
    %2990 = vset.pattern.permute.xlu0 0
    %2991 = vperm.xlu0 %2990, %v2912
    %v2992 = vpop.permute.xlu0 %2991
    %2995 = vset.pattern.permute.xlu0 0
    %2996 = vperm.xlu0 %2995, %v2913
    %v2997 = vpop.permute.xlu0 %2996
    %3000 = vset.pattern.permute.xlu0 0
    %3001 = vperm.xlu0 %3000, %v2914
    %v3002 = vpop.permute.xlu0 %3001
    %3005 = vset.pattern.permute.xlu0 0
    %3006 = vperm.xlu0 %3005, %v2915
    %v3007 = vpop.permute.xlu0 %3006
    %3010 = vset.pattern.permute.xlu0 0
    %3011 = vperm.xlu0 %3010, %v2916
    %v3012 = vpop.permute.xlu0 %3011
    %3015 = vset.pattern.permute.xlu0 0
    %3016 = vperm.xlu0 %3015, %v2917
    %v3017 = vpop.permute.xlu0 %3016
    %3020 = vset.pattern.permute.xlu0 0
    %3021 = vperm.xlu0 %3020, %v2918
    %v3022 = vpop.permute.xlu0 %3021
    %3025 = vset.pattern.permute.xlu0 0
    %3026 = vperm.xlu0 %3025, %v2919
    %v3027 = vpop.permute.xlu0 %3026
    %3030 = vset.pattern.permute.xlu0 0
    %3031 = vperm.xlu0 %3030, %v2920
    %v3032 = vpop.permute.xlu0 %3031
    %3035 = vset.pattern.permute.xlu0 0
    %3036 = vperm.xlu0 %3035, %v2921
    %v3037 = vpop.permute.xlu0 %3036
    %3040 = vset.pattern.permute.xlu0 0
    %3041 = vperm.xlu0 %3040, %v2922
    %v3042 = vpop.permute.xlu0 %3041
    %3045 = vset.pattern.permute.xlu0 0
    %3046 = vperm.xlu0 %3045, %v2923
    %v3047 = vpop.permute.xlu0 %3046
    %3050 = vset.pattern.permute.xlu0 0
    %3051 = vperm.xlu0 %3050, %v2924
    %v3052 = vpop.permute.xlu0 %3051
    %3055 = vset.pattern.permute.xlu0 0
    %3056 = vperm.xlu0 %3055, %v2925
    %v3057 = vpop.permute.xlu0 %3056
    %3060 = vset.pattern.permute.xlu0 0
    %3061 = vperm.xlu0 %3060, %v2926
    %v3062 = vpop.permute.xlu0 %3061
    %3065 = vset.pattern.permute.xlu0 0
    %3066 = vperm.xlu0 %3065, %v2927
    %v3067 = vpop.permute.xlu0 %3066
    %3070 = vset.pattern.permute.xlu0 0
    %3071 = vperm.xlu0 %3070, %v2928
    %v3072 = vpop.permute.xlu0 %3071
    %3075 = vset.pattern.permute.xlu0 0
    %3076 = vperm.xlu0 %3075, %v2929
    %v3077 = vpop.permute.xlu0 %3076
    %3080 = vset.pattern.permute.xlu0 0
    %3081 = vperm.xlu0 %3080, %v2930
    %v3082 = vpop.permute.xlu0 %3081
    %3085 = vset.pattern.permute.xlu0 0
    %3086 = vperm.xlu0 %3085, %v2931
    %v3087 = vpop.permute.xlu0 %3086
    %3090 = vset.pattern.permute.xlu0 0
    %3091 = vperm.xlu0 %3090, %v2932
    %v3092 = vpop.permute.xlu0 %3091
    %v3094 = vlaneseq
    %v3095 = vshrl.u32 %v3094, 7
    %v3096 = vsub.s32 0, %v3095
    %v3097 = vrot.slane %v2933, %v3096
    %v3098 = vmul.f32 %v2937, %v3097
    %v3099 = vmul.f32 %v2942, %v3097
    %v3100 = vmul.f32 %v2947, %v3097
    %v3101 = vmul.f32 %v2952, %v3097
    %v3102 = vmul.f32 %v2957, %v3097
    %v3103 = vmul.f32 %v2962, %v3097
    %v3104 = vmul.f32 %v2967, %v3097
    %v3105 = vmul.f32 %v2972, %v3097
    %v3106 = vmul.f32 %v2977, %v3097
    %v3107 = vmul.f32 %v2982, %v3097
    %v3108 = vmul.f32 %v2987, %v3097
    %v3109 = vmul.f32 %v2992, %v3097
    %v3110 = vmul.f32 %v2997, %v3097
    %v3111 = vmul.f32 %v3002, %v3097
    %v3112 = vmul.f32 %v3007, %v3097
    %v3113 = vmul.f32 %v3012, %v3097
    %v3114 = vmul.f32 %v3017, %v3097
    %v3115 = vmul.f32 %v3022, %v3097
    %v3116 = vmul.f32 %v3027, %v3097
    %v3117 = vmul.f32 %v3032, %v3097
    %v3118 = vmul.f32 %v3037, %v3097
    %v3119 = vmul.f32 %v3042, %v3097
    %v3120 = vmul.f32 %v3047, %v3097
    %v3121 = vmul.f32 %v3052, %v3097
    %v3122 = vmul.f32 %v3057, %v3097
    %v3123 = vmul.f32 %v3062, %v3097
    %v3124 = vmul.f32 %v3067, %v3097
    %v3125 = vmul.f32 %v3072, %v3097
    %v3126 = vmul.f32 %v3077, %v3097
    %v3127 = vmul.f32 %v3082, %v3097
    %v3128 = vmul.f32 %v3087, %v3097
    %v3129 = vmul.f32 %v3092, %v3097
    %v3130 = vadd.f32 %v2805, %v3098
    %v3131 = vadd.f32 %v2806, %v3099
    %v3132 = vadd.f32 %v2807, %v3100
    %v3133 = vadd.f32 %v2808, %v3101
    %v3134 = vadd.f32 %v2809, %v3102
    %v3135 = vadd.f32 %v2810, %v3103
    %v3136 = vadd.f32 %v2811, %v3104
    %v3137 = vadd.f32 %v2812, %v3105
    %v3138 = vadd.f32 %v2813, %v3106
    %v3139 = vadd.f32 %v2814, %v3107
    %v3140 = vadd.f32 %v2815, %v3108
    %v3141 = vadd.f32 %v2816, %v3109
    %v3142 = vadd.f32 %v2817, %v3110
    %v3143 = vadd.f32 %v2818, %v3111
    %v3144 = vadd.f32 %v2819, %v3112
    %v3145 = vadd.f32 %v2820, %v3113
    %v3146 = vadd.f32 %v2821, %v3114
    %v3147 = vadd.f32 %v2822, %v3115
    %v3148 = vadd.f32 %v2823, %v3116
    %v3149 = vadd.f32 %v2824, %v3117
    %v3150 = vadd.f32 %v2825, %v3118
    %v3151 = vadd.f32 %v2826, %v3119
    %v3152 = vadd.f32 %v2827, %v3120
    %v3153 = vadd.f32 %v2828, %v3121
    %v3154 = vadd.f32 %v2829, %v3122
    %v3155 = vadd.f32 %v2830, %v3123
    %v3156 = vadd.f32 %v2831, %v3124
    %v3157 = vadd.f32 %v2832, %v3125
    %v3158 = vadd.f32 %v2833, %v3126
    %v3159 = vadd.f32 %v2834, %v3127
    %v3160 = vadd.f32 %v2835, %v3128
    %v3161 = vadd.f32 %v2836, %v3129
    %vm3162 = vcmp.eq.f32.partialorder %v201, 8.0
    %vm3163 = vcmp.eq.f32.partialorder %v202, 8.0
    %vm3164 = vcmp.eq.f32.partialorder %v203, 8.0
    %vm3165 = vcmp.eq.f32.partialorder %v204, 8.0
    %vm3166 = vcmp.eq.f32.partialorder %v205, 8.0
    %vm3167 = vcmp.eq.f32.partialorder %v206, 8.0
    %vm3168 = vcmp.eq.f32.partialorder %v207, 8.0
    %vm3169 = vcmp.eq.f32.partialorder %v208, 8.0
    %vm3170 = vcmp.eq.f32.partialorder %v209, 8.0
    %vm3171 = vcmp.eq.f32.partialorder %v210, 8.0
    %vm3172 = vcmp.eq.f32.partialorder %v211, 8.0
    %vm3173 = vcmp.eq.f32.partialorder %v212, 8.0
    %vm3174 = vcmp.eq.f32.partialorder %v213, 8.0
    %vm3175 = vcmp.eq.f32.partialorder %v214, 8.0
    %vm3176 = vcmp.eq.f32.partialorder %v215, 8.0
    %vm3177 = vcmp.eq.f32.partialorder %v216, 8.0
    %vm3178 = vcmp.eq.f32.partialorder %v217, 8.0
    %vm3179 = vcmp.eq.f32.partialorder %v218, 8.0
    %vm3180 = vcmp.eq.f32.partialorder %v219, 8.0
    %vm3181 = vcmp.eq.f32.partialorder %v220, 8.0
    %vm3182 = vcmp.eq.f32.partialorder %v221, 8.0
    %vm3183 = vcmp.eq.f32.partialorder %v222, 8.0
    %vm3184 = vcmp.eq.f32.partialorder %v223, 8.0
    %vm3185 = vcmp.eq.f32.partialorder %v224, 8.0
    %vm3186 = vcmp.eq.f32.partialorder %v225, 8.0
    %vm3187 = vcmp.eq.f32.partialorder %v226, 8.0
    %vm3188 = vcmp.eq.f32.partialorder %v227, 8.0
    %vm3189 = vcmp.eq.f32.partialorder %v228, 8.0
    %vm3190 = vcmp.eq.f32.partialorder %v229, 8.0
    %vm3191 = vcmp.eq.f32.partialorder %v230, 8.0
    %vm3192 = vcmp.eq.f32.partialorder %v231, 8.0
    %vm3193 = vcmp.eq.f32.partialorder %v232, 8.0
    %v3194 = vsel %vm3162, 1, 0
    %v3195 = vsel %vm3163, 1, 0
    %v3196 = vsel %vm3164, 1, 0
    %v3197 = vsel %vm3165, 1, 0
    %v3198 = vsel %vm3166, 1, 0
    %v3199 = vsel %vm3167, 1, 0
    %v3200 = vsel %vm3168, 1, 0
    %v3201 = vsel %vm3169, 1, 0
    %v3202 = vsel %vm3170, 1, 0
    %v3203 = vsel %vm3171, 1, 0
    %v3204 = vsel %vm3172, 1, 0
    %v3205 = vsel %vm3173, 1, 0
    %v3206 = vsel %vm3174, 1, 0
    %v3207 = vsel %vm3175, 1, 0
    %v3208 = vsel %vm3176, 1, 0
    %v3209 = vsel %vm3177, 1, 0
    %v3210 = vsel %vm3178, 1, 0
    %v3211 = vsel %vm3179, 1, 0
    %v3212 = vsel %vm3180, 1, 0
    %v3213 = vsel %vm3181, 1, 0
    %v3214 = vsel %vm3182, 1, 0
    %v3215 = vsel %vm3183, 1, 0
    %v3216 = vsel %vm3184, 1, 0
    %v3217 = vsel %vm3185, 1, 0
    %v3218 = vsel %vm3186, 1, 0
    %v3219 = vsel %vm3187, 1, 0
    %v3220 = vsel %vm3188, 1, 0
    %v3221 = vsel %vm3189, 1, 0
    %v3222 = vsel %vm3190, 1, 0
    %v3223 = vsel %vm3191, 1, 0
    %v3224 = vsel %vm3192, 1, 0
    %v3225 = vsel %vm3193, 1, 0
    %v3226 = vcvt.s32.f32 %v3194
    %v3227 = vcvt.s32.f32 %v3195
    %v3228 = vcvt.s32.f32 %v3196
    %v3229 = vcvt.s32.f32 %v3197
    %v3230 = vcvt.s32.f32 %v3198
    %v3231 = vcvt.s32.f32 %v3199
    %v3232 = vcvt.s32.f32 %v3200
    %v3233 = vcvt.s32.f32 %v3201
    %v3234 = vcvt.s32.f32 %v3202
    %v3235 = vcvt.s32.f32 %v3203
    %v3236 = vcvt.s32.f32 %v3204
    %v3237 = vcvt.s32.f32 %v3205
    %v3238 = vcvt.s32.f32 %v3206
    %v3239 = vcvt.s32.f32 %v3207
    %v3240 = vcvt.s32.f32 %v3208
    %v3241 = vcvt.s32.f32 %v3209
    %v3242 = vcvt.s32.f32 %v3210
    %v3243 = vcvt.s32.f32 %v3211
    %v3244 = vcvt.s32.f32 %v3212
    %v3245 = vcvt.s32.f32 %v3213
    %v3246 = vcvt.s32.f32 %v3214
    %v3247 = vcvt.s32.f32 %v3215
    %v3248 = vcvt.s32.f32 %v3216
    %v3249 = vcvt.s32.f32 %v3217
    %v3250 = vcvt.s32.f32 %v3218
    %v3251 = vcvt.s32.f32 %v3219
    %v3252 = vcvt.s32.f32 %v3220
    %v3253 = vcvt.s32.f32 %v3221
    %v3254 = vcvt.s32.f32 %v3222
    %v3255 = vcvt.s32.f32 %v3223
    %v3256 = vcvt.s32.f32 %v3224
    %v3257 = vcvt.s32.f32 %v3225
    %v3258 = vld [vmem:[%s2 + $0x8] sm:$0x1]
    %3260 = vset.pattern.permute.xlu0 0
    %3261 = vperm.xlu0 %3260, %v3226
    %v3262 = vpop.permute.xlu0 %3261
    %3265 = vset.pattern.permute.xlu0 0
    %3266 = vperm.xlu0 %3265, %v3227
    %v3267 = vpop.permute.xlu0 %3266
    %3270 = vset.pattern.permute.xlu0 0
    %3271 = vperm.xlu0 %3270, %v3228
    %v3272 = vpop.permute.xlu0 %3271
    %3275 = vset.pattern.permute.xlu0 0
    %3276 = vperm.xlu0 %3275, %v3229
    %v3277 = vpop.permute.xlu0 %3276
    %3280 = vset.pattern.permute.xlu0 0
    %3281 = vperm.xlu0 %3280, %v3230
    %v3282 = vpop.permute.xlu0 %3281
    %3285 = vset.pattern.permute.xlu0 0
    %3286 = vperm.xlu0 %3285, %v3231
    %v3287 = vpop.permute.xlu0 %3286
    %3290 = vset.pattern.permute.xlu0 0
    %3291 = vperm.xlu0 %3290, %v3232
    %v3292 = vpop.permute.xlu0 %3291
    %3295 = vset.pattern.permute.xlu0 0
    %3296 = vperm.xlu0 %3295, %v3233
    %v3297 = vpop.permute.xlu0 %3296
    %3300 = vset.pattern.permute.xlu0 0
    %3301 = vperm.xlu0 %3300, %v3234
    %v3302 = vpop.permute.xlu0 %3301
    %3305 = vset.pattern.permute.xlu0 0
    %3306 = vperm.xlu0 %3305, %v3235
    %v3307 = vpop.permute.xlu0 %3306
    %3310 = vset.pattern.permute.xlu0 0
    %3311 = vperm.xlu0 %3310, %v3236
    %v3312 = vpop.permute.xlu0 %3311
    %3315 = vset.pattern.permute.xlu0 0
    %3316 = vperm.xlu0 %3315, %v3237
    %v3317 = vpop.permute.xlu0 %3316
    %3320 = vset.pattern.permute.xlu0 0
    %3321 = vperm.xlu0 %3320, %v3238
    %v3322 = vpop.permute.xlu0 %3321
    %3325 = vset.pattern.permute.xlu0 0
    %3326 = vperm.xlu0 %3325, %v3239
    %v3327 = vpop.permute.xlu0 %3326
    %3330 = vset.pattern.permute.xlu0 0
    %3331 = vperm.xlu0 %3330, %v3240
    %v3332 = vpop.permute.xlu0 %3331
    %3335 = vset.pattern.permute.xlu0 0
    %3336 = vperm.xlu0 %3335, %v3241
    %v3337 = vpop.permute.xlu0 %3336
    %3340 = vset.pattern.permute.xlu0 0
    %3341 = vperm.xlu0 %3340, %v3242
    %v3342 = vpop.permute.xlu0 %3341
    %3345 = vset.pattern.permute.xlu0 0
    %3346 = vperm.xlu0 %3345, %v3243
    %v3347 = vpop.permute.xlu0 %3346
    %3350 = vset.pattern.permute.xlu0 0
    %3351 = vperm.xlu0 %3350, %v3244
    %v3352 = vpop.permute.xlu0 %3351
    %3355 = vset.pattern.permute.xlu0 0
    %3356 = vperm.xlu0 %3355, %v3245
    %v3357 = vpop.permute.xlu0 %3356
    %3360 = vset.pattern.permute.xlu0 0
    %3361 = vperm.xlu0 %3360, %v3246
    %v3362 = vpop.permute.xlu0 %3361
    %3365 = vset.pattern.permute.xlu0 0
    %3366 = vperm.xlu0 %3365, %v3247
    %v3367 = vpop.permute.xlu0 %3366
    %3370 = vset.pattern.permute.xlu0 0
    %3371 = vperm.xlu0 %3370, %v3248
    %v3372 = vpop.permute.xlu0 %3371
    %3375 = vset.pattern.permute.xlu0 0
    %3376 = vperm.xlu0 %3375, %v3249
    %v3377 = vpop.permute.xlu0 %3376
    %3380 = vset.pattern.permute.xlu0 0
    %3381 = vperm.xlu0 %3380, %v3250
    %v3382 = vpop.permute.xlu0 %3381
    %3385 = vset.pattern.permute.xlu0 0
    %3386 = vperm.xlu0 %3385, %v3251
    %v3387 = vpop.permute.xlu0 %3386
    %3390 = vset.pattern.permute.xlu0 0
    %3391 = vperm.xlu0 %3390, %v3252
    %v3392 = vpop.permute.xlu0 %3391
    %3395 = vset.pattern.permute.xlu0 0
    %3396 = vperm.xlu0 %3395, %v3253
    %v3397 = vpop.permute.xlu0 %3396
    %3400 = vset.pattern.permute.xlu0 0
    %3401 = vperm.xlu0 %3400, %v3254
    %v3402 = vpop.permute.xlu0 %3401
    %3405 = vset.pattern.permute.xlu0 0
    %3406 = vperm.xlu0 %3405, %v3255
    %v3407 = vpop.permute.xlu0 %3406
    %3410 = vset.pattern.permute.xlu0 0
    %3411 = vperm.xlu0 %3410, %v3256
    %v3412 = vpop.permute.xlu0 %3411
    %3415 = vset.pattern.permute.xlu0 0
    %3416 = vperm.xlu0 %3415, %v3257
    %v3417 = vpop.permute.xlu0 %3416
    %v3419 = vlaneseq
    %v3420 = vshrl.u32 %v3419, 7
    %v3421 = vsub.s32 0, %v3420
    %v3422 = vrot.slane %v3258, %v3421
    %v3423 = vmul.f32 %v3262, %v3422
    %v3424 = vmul.f32 %v3267, %v3422
    %v3425 = vmul.f32 %v3272, %v3422
    %v3426 = vmul.f32 %v3277, %v3422
    %v3427 = vmul.f32 %v3282, %v3422
    %v3428 = vmul.f32 %v3287, %v3422
    %v3429 = vmul.f32 %v3292, %v3422
    %v3430 = vmul.f32 %v3297, %v3422
    %v3431 = vmul.f32 %v3302, %v3422
    %v3432 = vmul.f32 %v3307, %v3422
    %v3433 = vmul.f32 %v3312, %v3422
    %v3434 = vmul.f32 %v3317, %v3422
    %v3435 = vmul.f32 %v3322, %v3422
    %v3436 = vmul.f32 %v3327, %v3422
    %v3437 = vmul.f32 %v3332, %v3422
    %v3438 = vmul.f32 %v3337, %v3422
    %v3439 = vmul.f32 %v3342, %v3422
    %v3440 = vmul.f32 %v3347, %v3422
    %v3441 = vmul.f32 %v3352, %v3422
    %v3442 = vmul.f32 %v3357, %v3422
    %v3443 = vmul.f32 %v3362, %v3422
    %v3444 = vmul.f32 %v3367, %v3422
    %v3445 = vmul.f32 %v3372, %v3422
    %v3446 = vmul.f32 %v3377, %v3422
    %v3447 = vmul.f32 %v3382, %v3422
    %v3448 = vmul.f32 %v3387, %v3422
    %v3449 = vmul.f32 %v3392, %v3422
    %v3450 = vmul.f32 %v3397, %v3422
    %v3451 = vmul.f32 %v3402, %v3422
    %v3452 = vmul.f32 %v3407, %v3422
    %v3453 = vmul.f32 %v3412, %v3422
    %v3454 = vmul.f32 %v3417, %v3422
    %v3455 = vadd.f32 %v3130, %v3423
    %v3456 = vadd.f32 %v3131, %v3424
    %v3457 = vadd.f32 %v3132, %v3425
    %v3458 = vadd.f32 %v3133, %v3426
    %v3459 = vadd.f32 %v3134, %v3427
    %v3460 = vadd.f32 %v3135, %v3428
    %v3461 = vadd.f32 %v3136, %v3429
    %v3462 = vadd.f32 %v3137, %v3430
    %v3463 = vadd.f32 %v3138, %v3431
    %v3464 = vadd.f32 %v3139, %v3432
    %v3465 = vadd.f32 %v3140, %v3433
    %v3466 = vadd.f32 %v3141, %v3434
    %v3467 = vadd.f32 %v3142, %v3435
    %v3468 = vadd.f32 %v3143, %v3436
    %v3469 = vadd.f32 %v3144, %v3437
    %v3470 = vadd.f32 %v3145, %v3438
    %v3471 = vadd.f32 %v3146, %v3439
    %v3472 = vadd.f32 %v3147, %v3440
    %v3473 = vadd.f32 %v3148, %v3441
    %v3474 = vadd.f32 %v3149, %v3442
    %v3475 = vadd.f32 %v3150, %v3443
    %v3476 = vadd.f32 %v3151, %v3444
    %v3477 = vadd.f32 %v3152, %v3445
    %v3478 = vadd.f32 %v3153, %v3446
    %v3479 = vadd.f32 %v3154, %v3447
    %v3480 = vadd.f32 %v3155, %v3448
    %v3481 = vadd.f32 %v3156, %v3449
    %v3482 = vadd.f32 %v3157, %v3450
    %v3483 = vadd.f32 %v3158, %v3451
    %v3484 = vadd.f32 %v3159, %v3452
    %v3485 = vadd.f32 %v3160, %v3453
    %v3486 = vadd.f32 %v3161, %v3454
    %vm3487 = vcmask 261120
    %3488 = vst.msk [vmem:[#allocation4] sm:$0xff] %vm3487, %v3455
    %3489 = vst.msk [vmem:[#allocation4 + $0x8] sm:$0xff] %vm3487, %v3456
    %3490 = vst.msk [vmem:[#allocation4 + $0x10] sm:$0xff] %vm3487, %v3457
    %3491 = vst.msk [vmem:[#allocation4 + $0x18] sm:$0xff] %vm3487, %v3458
    %3492 = vst.msk [vmem:[#allocation4 + $0x20] sm:$0xff] %vm3487, %v3459
    %3493 = vst.msk [vmem:[#allocation4 + $0x28] sm:$0xff] %vm3487, %v3460
    %3494 = vst.msk [vmem:[#allocation4 + $0x30] sm:$0xff] %vm3487, %v3461
    %3495 = vst.msk [vmem:[#allocation4 + $0x38] sm:$0xff] %vm3487, %v3462
    %3496 = vst.msk [vmem:[#allocation4 + $0x40] sm:$0xff] %vm3487, %v3463
    %3497 = vst.msk [vmem:[#allocation4 + $0x48] sm:$0xff] %vm3487, %v3464
    %3498 = vst.msk [vmem:[#allocation4 + $0x50] sm:$0xff] %vm3487, %v3465
    %3499 = vst.msk [vmem:[#allocation4 + $0x58] sm:$0xff] %vm3487, %v3466
    %3500 = vst.msk [vmem:[#allocation4 + $0x60] sm:$0xff] %vm3487, %v3467
    %3501 = vst.msk [vmem:[#allocation4 + $0x68] sm:$0xff] %vm3487, %v3468
    %3502 = vst.msk [vmem:[#allocation4 + $0x70] sm:$0xff] %vm3487, %v3469
    %3503 = vst.msk [vmem:[#allocation4 + $0x78] sm:$0xff] %vm3487, %v3470
    %3504 = vst.msk [vmem:[#allocation4 + $0x80] sm:$0xff] %vm3487, %v3471
    %3505 = vst.msk [vmem:[#allocation4 + $0x88] sm:$0xff] %vm3487, %v3472
    %3506 = vst.msk [vmem:[#allocation4 + $0x90] sm:$0xff] %vm3487, %v3473
    %3507 = vst.msk [vmem:[#allocation4 + $0x98] sm:$0xff] %vm3487, %v3474
    %3508 = vst.msk [vmem:[#allocation4 + $0xa0] sm:$0xff] %vm3487, %v3475
    %3509 = vst.msk [vmem:[#allocation4 + $0xa8] sm:$0xff] %vm3487, %v3476
    %3510 = vst.msk [vmem:[#allocation4 + $0xb0] sm:$0xff] %vm3487, %v3477
    %3511 = vst.msk [vmem:[#allocation4 + $0xb8] sm:$0xff] %vm3487, %v3478
    %3512 = vst.msk [vmem:[#allocation4 + $0xc0] sm:$0xff] %vm3487, %v3479
    %3513 = vst.msk [vmem:[#allocation4 + $0xc8] sm:$0xff] %vm3487, %v3480
    %3514 = vst.msk [vmem:[#allocation4 + $0xd0] sm:$0xff] %vm3487, %v3481
    %3515 = vst.msk [vmem:[#allocation4 + $0xd8] sm:$0xff] %vm3487, %v3482
    %3516 = vst.msk [vmem:[#allocation4 + $0xe0] sm:$0xff] %vm3487, %v3483
    %3517 = vst.msk [vmem:[#allocation4 + $0xe8] sm:$0xff] %vm3487, %v3484
    %3518 = vst.msk [vmem:[#allocation4 + $0xf0] sm:$0xff] %vm3487, %v3485
    %3519 = vst.msk [vmem:[#allocation4 + $0xf8] sm:$0xff] %vm3487, %v3486
    %v3520 = vld [vmem:[%s5] sm:$0xff]
    %v3521 = vld [vmem:[%s5 + $0x8] sm:$0xff]
    %v3522 = vld [vmem:[%s6] sm:$0xff]
    %v3523 = vld [vmem:[%s6 + $0x8] sm:$0xff]
    %v3524 = vld [vmem:[%s6 + $0x10] sm:$0xff]
    %v3525 = vld [vmem:[%s6 + $0x18] sm:$0xff]
    %v3526 = vld [vmem:[%s6 + $0x20] sm:$0xff]
    %v3527 = vld [vmem:[%s6 + $0x28] sm:$0xff]
    %v3528 = vld [vmem:[%s6 + $0x30] sm:$0xff]
    %v3529 = vld [vmem:[%s6 + $0x38] sm:$0xff]
    %v3530 = vld [vmem:[%s6 + $0x40] sm:$0xff]
    %v3531 = vld [vmem:[%s6 + $0x48] sm:$0xff]
    %v3532 = vld [vmem:[%s6 + $0x50] sm:$0xff]
    %v3533 = vld [vmem:[%s6 + $0x58] sm:$0xff]
    %v3534 = vld [vmem:[%s6 + $0x60] sm:$0xf]
    %v3535 = vld [vmem:[%s7] sm:$0x1]
    %v3537 = vlaneseq
    %v3538 = vshrl.u32 %v3537, 7
    %v3539 = vsub.s32 0, %v3538
    %v3540 = vrot.slane %v3535, %v3539
    %vm3542 = vcmask 818176
    %v3544 = vsel %vm3542, %v3520, 0
    %v3547 = vsel %vm3542, %v3521, 0
    %vm3549 = vcmask 1043456
    %v3551 = vsel %vm3549, %v3534, 0
    %3553 = vmatprep.subr.mxu0 0.0
    %3554 = vmatpush1.msra.mxu0 %v3522
    %3555 = vmatprep.subr.mxu0 0.0
    %3556 = vmatpush1.msra.mxu0 %v3523
    %3557 = vmatprep.subr.mxu0 0.0
    %3558 = vmatpush1.msra.mxu0 %v3524
    %3559 = vmatprep.subr.mxu0 0.0
    %3560 = vmatpush1.msra.mxu0 %v3525
    %3561 = vmatprep.subr.mxu0 0.0
    %3562 = vmatpush1.msra.mxu0 %v3526
    %3563 = vmatprep.subr.mxu0 0.0
    %3564 = vmatpush1.msra.mxu0 %v3527
    %3565 = vmatprep.subr.mxu0 0.0
    %3566 = vmatpush1.msra.mxu0 %v3528
    %3567 = vmatprep.subr.mxu0 0.0
    %3568 = vmatpush1.msra.mxu0 %v3529
    %3569 = vmatprep.subr.mxu0 0.0
    %3570 = vmatpush1.msra.mxu0 %v3530
    %3571 = vmatprep.subr.mxu0 0.0
    %3572 = vmatpush1.msra.mxu0 %v3531
    %3573 = vmatprep.subr.mxu0 0.0
    %3574 = vmatpush1.msra.mxu0 %v3532
    %3575 = vmatprep.subr.mxu0 0.0
    %3576 = vmatpush1.msra.mxu0 %v3533
    %3577 = vmatprep.subr.mxu0 0.0
    %3578 = vmatpush1.msra.mxu0 %v3551
    %3579 = vmatprep.subr.mxu0 0.0
    %3580 = vmatpush1.msra.mxu0 0.0
    %3581 = vmatprep.subr.mxu0 0.0
    %3582 = vmatpush1.msra.mxu0 0.0
    %3583 = vmatprep.subr.mxu0 0.0
    %3584 = vmatpush1.msra.mxu0 0.0
    %3585 = vmatprep.subr.mxu0 0.0
    %3586 = vmatpush1.msra.mxu0 0.0
    %3587 = vmatprep.subr.mxu0 0.0
    %3588 = vmatpush1.msra.mxu0 0.0
    %3589 = vmatprep.subr.mxu0 0.0
    %3590 = vmatpush1.msra.mxu0 0.0
    %3591 = vmatprep.subr.mxu0 0.0
    %3592 = vmatpush1.msra.mxu0 0.0
    %3593 = vmatprep.subr.mxu0 0.0
    %3594 = vmatpush1.msra.mxu0 0.0
    %3595 = vmatprep.subr.mxu0 0.0
    %3596 = vmatpush1.msra.mxu0 0.0
    %3597 = vmatprep.subr.mxu0 0.0
    %3598 = vmatpush1.msra.mxu0 0.0
    %3599 = vmatprep.subr.mxu0 0.0
    %3600 = vmatpush1.msra.mxu0 0.0
    %3601 = vmatprep.subr.mxu0 0.0
    %3602 = vmatpush1.msra.mxu0 0.0
    %3603 = vmatprep.subr.mxu0 0.0
    %3604 = vmatpush1.msra.mxu0 0.0
    %3605 = vmatprep.subr.mxu0 0.0
    %3606 = vmatpush1.msra.mxu0 0.0
    %3607 = vmatprep.subr.mxu0 0.0
    %3608 = vmatpush1.msra.mxu0 0.0
    %3609 = vmatprep.subr.mxu0 0.0
    %3610 = vmatpush1.msra.mxu0 0.0
    %3611 = vmatprep.subr.mxu0 0.0
    %3612 = vmatpush1.msra.mxu0 0.0
    %3613 = vmatprep.subr.mxu0 0.0
    %3614 = vmatpush1.msra.mxu0 0.0
    %3615 = vmatprep.subr.mxu0 0.0
    %3616 = vmatpush1.msra.mxu0 0.0
    %3617 = vmatprep.mubr.f32.mxu0 0.0
    %3618 = vmatmul.mubr.f32.gmra.mrb[0].mxu0 %v3544
    %v3619 = vpop.f32.mrb[0].mxu0
    %v3620 = vadd.f32 %v3540, %v3619
    %v3621 = vpop.f32.mrb[0].mxu0
    %3622 = vmatprep.mubr.f32.mxu0 0.0
    %3623 = vmatmul.mubr.f32.gmra.mrb[0].mxu0 %v3547
    %v3624 = vpop.f32.mrb[0].mxu0
    %v3625 = vadd.f32 %v3540, %v3624
    %v3626 = vpop.f32.mrb[0].mxu0
    %3627 = vdwg.mxu0
    %3628 = vst.msk [vmem:[#allocation2] sm:$0xff] %vm3487, %v3620
    %3629 = vst.msk [vmem:[#allocation2 + $0x8] sm:$0xff] %vm3487, %v3625
    // Predicated region
    $region34: #{gvp_embedder_forward.1} parent=1 // pred_check
      _
    $region35: #{gvp_embedder_forward.1} parent=1 // pred_check_branch
      %3631 = sbr.rel (0) target = $region37
    $region36: #{gvp_embedder_forward.1} parent=1 // pred_region
      %s3633 = ssub.s32 256, 256
      %3634 = vsyncadd [#allocation3], %s3633
      %s3635 = sshll.u32 [#allocation2], 4
      %s3636 = int_to_ptr.vmem [resolvable:$true] %s3635
      %3641 = dma.vmem_to_hbm [thread:$0]  %s3636, 256, %s8, [#allocation3], 128, 128, 8
    $region37: #{gvp_embedder_forward.1} parent=1 // pred_fallthru
      _
    // Predicated region
    $region38: #{gvp_embedder_forward.1} parent=1 // pred_check
      _
    $region39: #{gvp_embedder_forward.1} parent=1 // pred_check_branch
      %3643 = sbr.rel (0) target = $region41
    $region40: #{gvp_embedder_forward.1} parent=1 // pred_region
      %s3645 = ssub.s32 4096, 4096
      %3646 = vsyncadd [#allocation5], %s3645
      %s3647 = sshll.u32 [#allocation4], 4
      %s3648 = int_to_ptr.vmem [resolvable:$true] %s3647
      %3653 = dma.vmem_to_hbm [thread:$0]  %s3648, 4096, %s9, [#allocation5], 128, 128, 8
    $region41: #{gvp_embedder_forward.1} parent=1 // pred_fallthru
      _
    // Predicated region
    $region42: #{gvp_embedder_forward.1} parent=1 // pred_check
      _
    $region43: #{gvp_embedder_forward.1} parent=1 // pred_check_branch
      %3655 = sbr.rel (0) target = $region45
    $region44: #{gvp_embedder_forward.1} parent=1 // pred_region
      %3656 = dma.done [#allocation3], 256
    $region45: #{gvp_embedder_forward.1} parent=1 // pred_fallthru
      _
    // Predicated region
    $region46: #{gvp_embedder_forward.1} parent=1 // pred_check
      _
    $region47: #{gvp_embedder_forward.1} parent=1 // pred_check_branch
      %3658 = sbr.rel (0) target = $region49
    $region48: #{gvp_embedder_forward.1} parent=1 // pred_region
      %3659 = dma.done [#allocation5], 4096
    $region49: #{gvp_embedder_forward.1} parent=1 // pred_fallthru
      _
    %3660 = vsyncpa [#allocation3], 1
    %3661 = vsyncpa [#allocation5], 1

</llo_original>
